<compile_context>
chip_gen: v7x
topology: tpu7x:2x2x1
jax: 0.10.0
libtpu: 0.0.40
codegen_flags: <defaults>
</compile_context>

<pallas_src>
import functools

import jax
import jax.numpy as jnp
from jax.experimental import pallas as pl
from jax.experimental.pallas import tpu as pltpu

BN_EPS = 1e-5                       # PyTorch BatchNorm2d default eps
VMEM_LIMIT = 32 * 1024 * 1024       # <= 48 MiB so tiles stay safe on v7x (64 MiB VMEM)
MAX_TR = 1024                       # row-tile cap
MAX_TK = 2048                       # K-tile cap
BN_TILE_BYTES = 16 * 1024 * 1024    # per-step byte budget for the BN-apply kernel


def _round_up(x, m):
    return (x + m - 1) // m * m


def _prefer_narrow_n():
    """v5e/v5p MXUs are 128 wide -> tn=128; v6e/v7x are 256 wide -> prefer 256."""
    try:
        return "v5" in jax.devices()[0].device_kind.lower()
    except Exception:  # pragma: no cover - defensive
        return False


def _pick_k_tile(c_pad):
    """Largest K tile <= MAX_TK that evenly divides c_pad (multiple of 128)."""
    u = c_pad // 128
    for parts in range(1, u + 1):
        if u % parts == 0 and c_pad // parts <= MAX_TK:
            return c_pad // parts
    return 128


# ------------------------------ Pallas kernels ----------------------------- #
def _col_stats(acc):
    """Fold per-column sum / sum-of-squares onto 8 sublanes (tree reduction)."""
    a3 = acc.reshape(acc.shape[0] // 8, 8, acc.shape[1])
    return jnp.sum(a3, axis=0), jnp.sum(a3 * a3, axis=0)


def _gemm_kernel_1k(p_ref, w_ref, *refs, with_stats):
    """Single-K-tile GEMM: write the output block directly (no scratch).

    grid = (row tiles, out-col tiles).
    p_ref : (tr, Cp) bf16   w_ref : (Cp, tn) bf16
    o_ref : (tr, tn)        sum/sq_ref : (8, tn) f32 partial BN stats
    """
    acc = jnp.dot(p_ref[...], w_ref[...], preferred_element_type=jnp.float32)
    if with_stats:
        o_ref, sum_ref, sq_ref = refs
        s, q = _col_stats(acc)
        sum_ref[...] = s
        sq_ref[...] = q
    else:
        (o_ref,) = refs
    o_ref[...] = acc.astype(o_ref.dtype)


def _gemm_kernel_acc(p_ref, w_ref, *refs, with_stats):
    """Multi-K-tile GEMM with f32 VMEM accumulator (output may be bf16).

    grid = (row tiles, out-col tiles, K tiles); K is the innermost reduction.
    """
    if with_stats:
        o_ref, sum_ref, sq_ref, acc_ref = refs
    else:
        o_ref, acc_ref = refs

    k = pl.program_id(2)

    @pl.when(k == 0)
    def _():
        acc_ref[...] = jnp.zeros_like(acc_ref)

    acc_ref[...] += jnp.dot(p_ref[...], w_ref[...],
                            preferred_element_type=jnp.float32)

    @pl.when(k == pl.num_programs(2) - 1)
    def _():
        acc = acc_ref[...]
        o_ref[...] = acc.astype(o_ref.dtype)
        if with_stats:
            s, q = _col_stats(acc)
            sum_ref[...] = s
            sq_ref[...] = q


def _bn_relu_kernel(x_ref, scale_ref, shift_ref, o_ref):
    """Fused per-column affine (BN scale/shift) + ReLU, bf16 in / bf16 out."""
    y = x_ref[...].astype(jnp.float32) * scale_ref[...] + shift_ref[...]
    o_ref[...] = jnp.maximum(y, 0.0).astype(o_ref.dtype)


# ----------------------------- pallas_call glue ----------------------------- #
def _gemm(patches, w_mat, with_stats, out_dtype):
    """patches (R, C) bf16 @ w_mat (Cp, Np) bf16 -> (Rp, Np) out_dtype [+ stats]."""
    R, C = patches.shape
    Cp, Np = w_mat.shape

    tn = 128 if (_prefer_narrow_n() or Np % 256 != 0) else 256
    n_j = Np // tn

    # Row tiling: biggest tile up to MAX_TR, but expose >= 2 parallel grid
    # tiles whenever possible so both v7x TensorCores get work.
    rp = _round_up(R, 8)
    if rp <= MAX_TR:
        tr = rp
        if n_j == 1 and rp >= 16 and (rp // 2) % 8 == 0:
            tr = rp // 2
    else:
        tr = MAX_TR
        rp = _round_up(R, tr)
    n_i = rp // tr

    tk = _pick_k_tile(Cp)
    n_k = Cp // tk

    p_pad = jnp.pad(patches, ((0, rp - R), (0, Cp - C)))

    if n_k == 1:
        grid = (n_i, n_j)
        in_specs = [pl.BlockSpec((tr, Cp), lambda i, j: (i, 0)),
                    pl.BlockSpec((Cp, tn), lambda i, j: (0, j))]
        out_specs = [pl.BlockSpec((tr, tn), lambda i, j: (i, j))]
        stat_spec = pl.BlockSpec((8, tn), lambda i, j: (i, j))
        kernel = functools.partial(_gemm_kernel_1k, with_stats=with_stats)
        scratch = []
        dims = ("parallel", "parallel")
    else:
        grid = (n_i, n_j, n_k)
        in_specs = [pl.BlockSpec((tr, tk), lambda i, j, k: (i, k)),
                    pl.BlockSpec((tk, tn), lambda i, j, k: (k, j))]
        out_specs = [pl.BlockSpec((tr, tn), lambda i, j, k: (i, j))]
        stat_spec = pl.BlockSpec((8, tn), lambda i, j, k: (i, j))
        kernel = functools.partial(_gemm_kernel_acc, with_stats=with_stats)
        scratch = [pltpu.VMEM((tr, tn), jnp.float32)]
        dims = ("parallel", "parallel", "arbitrary")

    out_shape = [jax.ShapeDtypeStruct((rp, Np), out_dtype)]
    if with_stats:
        out_shape += [jax.ShapeDtypeStruct((8 * n_i, Np), jnp.float32)] * 2
        out_specs += [stat_spec, stat_spec]

    outs = pl.pallas_call(
        kernel,
        grid=grid,
        in_specs=in_specs,
        out_specs=out_specs,
        out_shape=out_shape,
        scratch_shapes=scratch,
        compiler_params=pltpu.CompilerParams(
            dimension_semantics=dims, vmem_limit_bytes=VMEM_LIMIT),
    )(p_pad, w_mat)
    return outs


def _bn_row_tile(rp, np_):
    """Largest row tile (multiple of 8, divisor of rp) inside the byte budget,
    keeping >= 2 grid steps when possible (v7x megacore)."""
    per_row = np_ * 8          # bf16 in + bf16 out, double-buffered
    min_tiles = 2 if rp >= 16 else 1
    best = 8
    for d in range(8, rp + 1, 8):
        if rp % d == 0 and d * per_row <= BN_TILE_BYTES and rp // d >= min_tiles:
            best = d
    return best


def _bn_relu_apply(conv, scale, shift):
    """Pure data-movement pass: full-width blocks, big row tiles."""
    rp, np_ = conv.shape
    tr = _bn_row_tile(rp, np_)
    return pl.pallas_call(
        _bn_relu_kernel,
        grid=(rp // tr,),
        in_specs=[
            pl.BlockSpec((tr, np_), lambda i: (i, 0)),
            pl.BlockSpec((1, np_), lambda i: (0, 0)),
            pl.BlockSpec((1, np_), lambda i: (0, 0)),
        ],
        out_specs=pl.BlockSpec((tr, np_), lambda i: (i, 0)),
        out_shape=jax.ShapeDtypeStruct((rp, np_), jnp.bfloat16),
        compiler_params=pltpu.CompilerParams(
            dimension_semantics=("parallel",),
            vmem_limit_bytes=VMEM_LIMIT),
    )(conv, scale, shift)


def _gemm_bn_relu(patches, w_mat, meta):
    """GEMM + train-mode BatchNorm (batch stats over ALL rows) + ReLU."""
    conv, sums, sqs = _gemm(patches, w_mat, with_stats=True,
                            out_dtype=jnp.bfloat16)
    rows = patches.shape[0]                      # real (unpadded) row count
    g, cout, np_ = meta["G"], meta["Cout"], meta["Np"]
    nc = g * cout
    ch_sum = jnp.sum(sums, axis=0)[:nc].reshape(g, cout).sum(axis=0)
    ch_sq = jnp.sum(sqs, axis=0)[:nc].reshape(g, cout).sum(axis=0)
    count = float(rows * g)
    mean = ch_sum / count
    var = jnp.maximum(ch_sq / count - mean * mean, 0.0)   # biased, as PyTorch
    inv = jax.lax.rsqrt(var + BN_EPS)                     # gamma=1, beta=0
    scale = jnp.pad(jnp.tile(inv, g), (0, np_ - nc)).reshape(1, np_)
    shift = jnp.pad(jnp.tile(-mean * inv, g), (0, np_ - nc)).reshape(1, np_)
    return _bn_relu_apply(conv, scale, shift)


# ------------------------- layer lowering (JAX glue) ------------------------ #
def _patches_3x3(x):
    """im2col of a (spatially) 1-padded input with a 3x3 window.

    x : (N, H, W, Cin) -> (N*H*W, 9*Cin); column = (dy*3 + dx)*Cin + cin.
    TODO(synk): halo-tile DMA fusion of this gather into the GEMM not implemented.
    """
    n, h, w, cin = x.shape
    xp = jnp.pad(x, ((0, 0), (1, 1), (1, 1), (0, 0)))
    cols = [xp[:, dy:dy + h, dx:dx + w, :]
            for dy in range(3) for dx in range(3)]
    return jnp.concatenate(cols, axis=-1).reshape(n * h * w, 9 * cin)


def _s2_subkernel_matrix(w):
    """Phase-decomposed weight for ConvTranspose2d(K=4, stride=2, pad=1).

    w : (Cin, Cout, 4, 4) -> (9*Cin, 4*Cout).  Output column group
    (ph*2 + pw) writes output pixel (2m+ph, 2j+pw); window tap (dy, dx)
    maps to original kernel tap kh = ph + 3 - 2*dy (kw likewise); taps that
    fall outside [0, 4) are zero.
    """
    cin, cout = int(w.shape[0]), int(w.shape[1])
    sub = jnp.zeros((3, 3, cin, 2, 2, cout), w.dtype)
    for dy in range(3):
        for ph in range(2):
            kh = ph + 3 - 2 * dy
            if not 0 <= kh < 4:
                continue
            for dx in range(3):
                for pw in range(2):
                    kw = pw + 3 - 2 * dx
                    if not 0 <= kw < 4:
                        continue
                    sub = sub.at[dy, dx, :, ph, pw, :].set(w[:, :, kh, kw])
    return sub.reshape(9 * cin, 4 * cout)


def prepare_params(params):
    """One-time conversion of PyTorch ConvTranspose2d weights into padded bf16
    GEMM matrices plus static layout metadata (done outside the jit)."""
    mats, metas = [], []
    for idx, name in enumerate(("w1", "w2", "w3", "w4")):
        w = params[name]
        cout = int(w.shape[1])
        if idx == 0:            # 1x1 input, stride 1, pad 0 -> direct GEMM
            mat = jnp.transpose(w, (0, 2, 3, 1)).reshape(int(w.shape[0]),
                                                         16 * cout)
            g = 16
        else:                   # stride 2, pad 1 -> 4-phase 3x3 sub-kernel
            mat = _s2_subkernel_matrix(w)
            g = 4
        c, ncol = int(mat.shape[0]), int(mat.shape[1])
        cp, np_ = _round_up(c, 128), _round_up(ncol, 128)
        mats.append(
            jnp.pad(mat, ((0, cp - c), (0, np_ - ncol))).astype(jnp.bfloat16))
        metas.append(dict(G=g, Cout=cout, Np=np_))
    return mats, metas


def _deconv_s2_layer(x, w_mat, meta, act):
    """Stride-2 ConvTranspose2d (+BN/ReLU or Tanh): (N,H,W,Cin) -> (N,2H,2W,Cout)."""
    n, h, w, _ = x.shape
    patches = _patches_3x3(x)
    rows = n * h * w
    cout = meta["Cout"]
    if act == "bn_relu":
        y = _gemm_bn_relu(patches, w_mat, meta)[:rows, :4 * cout]
    else:
        (y,) = _gemm(patches, w_mat, with_stats=False, out_dtype=jnp.float32)
        y = jnp.tanh(y[:rows, :4 * cout])   # tanh only on real columns/rows
    y = y.reshape(n, h, w, 2, 2, cout)
    # TODO(synk): depth-to-space interleave / NCHW relayout stay in XLA.
    return jnp.transpose(y, (0, 1, 3, 2, 4, 5)).reshape(n, 2 * h, 2 * w, cout)


def generator_forward(z_nchw, weights, *, metas):
    """Equivalent of Generator.forward: (N, z_dim, 1, 1) -> (N, C, 32, 32)."""
    n = z_nchw.shape[0]
    # Layer 1: ConvTranspose2d(z_dim, 4*fg, 4, stride=1, pad=0) on a 1x1 input
    # is a plain GEMM over latent channels; columns ordered (kh, kw, cout).
    m0 = metas[0]
    z2d = z_nchw.reshape(n, -1).astype(jnp.bfloat16)
    y = _gemm_bn_relu(z2d, weights[0], m0)
    x = y[:n, :16 * m0["Cout"]].reshape(n, 4, 4, m0["Cout"])
    # Layers 2-3: stride-2 ConvTranspose2d + BN + ReLU
    x = _deconv_s2_layer(x, weights[1], metas[1], act="bn_relu")
    x = _deconv_s2_layer(x, weights[2], metas[2], act="bn_relu")
    # Layer 4: stride-2 ConvTranspose2d + Tanh
    x = _deconv_s2_layer(x, weights[3], metas[3], act="tanh")
    return jnp.transpose(x, (0, 3, 1, 2)).astype(jnp.float32)   # NHWC -> NCHW


# ------------------------- pure-JAX f32 reference --------------------------- #
def _reference_forward(z, params):
    """Reference: dilate+pad+conv lowering, train-mode BN (gamma=1, beta=0)."""
    cfg = [("w1", 1, 0, "bn_relu"), ("w2", 2, 1, "bn_relu"),
           ("w3", 2, 1, "bn_relu"), ("w4", 2, 1, "tanh")]
    x = z
    for name, s, p, act in cfg:
        w = params[name]
        k = int(w.shape[2])
        w_conv = jnp.transpose(jnp.flip(w, (2, 3)), (1, 0, 2, 3))   # OIHW
        x = jax.lax.conv_general_dilated(
            x, w_conv, window_strides=(1, 1),
            padding=[(k - 1 - p, k - 1 - p)] * 2,
            lhs_dilation=(s, s),
            dimension_numbers=("NCHW", "OIHW", "NCHW"),
            precision=jax.lax.Precision.HIGHEST)
        if act == "bn_relu":
            mean = jnp.mean(x, axis=(0, 2, 3), keepdims=True)
            var = jnp.mean(jnp.square(x - mean), axis=(0, 2, 3), keepdims=True)
            x = jnp.maximum((x - mean) * jax.lax.rsqrt(var + BN_EPS), 0.0)
        else:
            x = jnp.tanh(x)
    return x


# ----------------------------------- main ----------------------------------- #
if __name__ == "__main__":
    # Small deterministic config (module defaults are z_dim=100, feature_g=64).
    z_dim, feature_g, img_channels, batch = 32, 16, 1, 2

    key = jax.random.PRNGKey(0)
    k1, k2, k3, k4, kz = jax.random.split(key, 5)
    # DCGAN-style N(0, 0.02) init, PyTorch ConvTranspose2d layout (Cin,Cout,K,K).
    params = {
        "w1": 0.02 * jax.random.normal(k1, (z_dim, feature_g * 4, 4, 4), jnp.float32),
        "w2": 0.02 * jax.random.normal(k2, (feature_g * 4, feature_g * 2, 4, 4), jnp.float32),
        "w3": 0.02 * jax.random.normal(k3, (feature_g * 2, feature_g, 4, 4), jnp.float32),
        "w4": 0.02 * jax.random.normal(k4, (feature_g, img_channels, 4, 4), jnp.float32),
    }
    z = jax.random.normal(kz, (batch, z_dim, 1, 1), jnp.float32)

    weights, metas = prepare_params(params)          # once, outside the jit
    fwd = jax.jit(functools.partial(generator_forward, metas=metas))

    out = jax.block_until_ready(fwd(z, weights))

    assert out.shape == (batch, img_channels, 32, 32), out.shape
    assert bool(jnp.all(jnp.isfinite(out)))
    assert bool(jnp.all(jnp.abs(out) <= 1.0))        # tanh output range

    ref = _reference_forward(z, params)
    err = float(jnp.max(jnp.abs(out - ref)))
    assert err < 5e-2, f"max abs diff vs reference = {err}"

    print("KERNEL_OK")
</pallas_src>

<mosaic_0001>
module attributes {stable_mosaic.version = 11 : i64} {
  func.func @_gemm_kernel_1k(%arg0: i32, %arg1: i32, %arg2: memref<8x128xbf16, #tpu.memory_space<vmem>>, %arg3: memref<128x256xbf16, #tpu.memory_space<vmem>>, %arg4: memref<8x256xbf16, #tpu.memory_space<vmem>>, %arg5: memref<8x256xf32, #tpu.memory_space<vmem>>, %arg6: memref<8x256xf32, #tpu.memory_space<vmem>>) attributes {dimension_semantics = [#tpu.dimension_semantics<parallel>, #tpu.dimension_semantics<parallel>], iteration_bounds = array<i64: 1, 4>, scalar_prefetch = 0 : i64, scratch_operands = 0 : i64, tpu.core_type = #tpu.core_type<tc>, window_params = [{transform_indices = @transform_0, window_bounds = array<i64: 8, 128>}, {transform_indices = @transform_1, window_bounds = array<i64: 128, 256>}, {transform_indices = @transform_2, window_bounds = array<i64: 8, 256>}, {transform_indices = @transform_3, window_bounds = array<i64: 8, 256>}, {transform_indices = @transform_4, window_bounds = array<i64: 8, 256>}]} {
    %c0 = arith.constant 0 : index
    %c0_0 = arith.constant 0 : index
    %0 = vector.load %arg2[%c0, %c0_0] : memref<8x128xbf16, #tpu.memory_space<vmem>>, vector<8x128xbf16>
    %c0_1 = arith.constant 0 : index
    %c0_2 = arith.constant 0 : index
    %1 = vector.load %arg3[%c0_1, %c0_2] : memref<128x256xbf16, #tpu.memory_space<vmem>>, vector<128x256xbf16>
    %cst = arith.constant dense<0.000000e+00> : vector<8x256xf32>
    %2 = tpu.matmul %0, %1, %cst {dimension_numbers = #tpu.dot_dimension_numbers<[1], [0], [0], [1], [0, 0, 1, 1], [], []>} : vector<8x128xbf16>, vector<128x256xbf16>, vector<8x256xf32> -> vector<8x256xf32>
    %3 = vector.shape_cast %2 : vector<8x256xf32> to vector<1x8x256xf32>
    %cst_3 = arith.constant dense<0.000000e+00> : vector<8x256xf32>
    %4 = vector.multi_reduction <add>, %3, %cst_3 [0] : vector<1x8x256xf32> to vector<8x256xf32>
    %5 = arith.mulf %3, %3 : vector<1x8x256xf32>
    %cst_4 = arith.constant dense<0.000000e+00> : vector<8x256xf32>
    %6 = vector.multi_reduction <add>, %5, %cst_4 [0] : vector<1x8x256xf32> to vector<8x256xf32>
    %c0_5 = arith.constant 0 : index
    %c0_6 = arith.constant 0 : index
    %7 = vector.load %arg5[%c0_5, %c0_6] : memref<8x256xf32, #tpu.memory_space<vmem>>, vector<8x256xf32>
    tpu.vector_store %arg5[%c0_5, %c0_6], %4 {strides = array<i32>} : memref<8x256xf32, #tpu.memory_space<vmem>>, vector<8x256xf32>,
    %c0_7 = arith.constant 0 : index
    %c0_8 = arith.constant 0 : index
    %8 = vector.load %arg6[%c0_7, %c0_8] : memref<8x256xf32, #tpu.memory_space<vmem>>, vector<8x256xf32>
    tpu.vector_store %arg6[%c0_7, %c0_8], %6 {strides = array<i32>} : memref<8x256xf32, #tpu.memory_space<vmem>>, vector<8x256xf32>,
    %9 = arith.truncf %2 : vector<8x256xf32> to vector<8x256xbf16>
    %c0_9 = arith.constant 0 : index
    %c0_10 = arith.constant 0 : index
    %10 = vector.load %arg4[%c0_9, %c0_10] : memref<8x256xbf16, #tpu.memory_space<vmem>>, vector<8x256xbf16>
    tpu.vector_store %arg4[%c0_9, %c0_10], %9 {strides = array<i32>} : memref<8x256xbf16, #tpu.memory_space<vmem>>, vector<8x256xbf16>,
    return
  }
  func.func @transform_0(%arg0: i32, %arg1: i32) -> (i32, i32) {
    %c0_i32 = arith.constant 0 : i32
    %c0_i32_0 = arith.constant 0 : i32
    return %arg0, %c0_i32 : i32, i32
  }
  func.func @transform_1(%arg0: i32, %arg1: i32) -> (i32, i32) {
    %c0_i32 = arith.constant 0 : i32
    %c0_i32_0 = arith.constant 0 : i32
    return %c0_i32, %arg1 : i32, i32
  }
  func.func @transform_2(%arg0: i32, %arg1: i32) -> (i32, i32) {
    %c0_i32 = arith.constant 0 : i32
    return %arg0, %arg1 : i32, i32
  }
  func.func @transform_3(%arg0: i32, %arg1: i32) -> (i32, i32) {
    %c0_i32 = arith.constant 0 : i32
    return %arg0, %arg1 : i32, i32
  }
  func.func @transform_4(%arg0: i32, %arg1: i32) -> (i32, i32) {
    %c0_i32 = arith.constant 0 : i32
    return %arg0, %arg1 : i32, i32
  }
}

module attributes {stable_mosaic.version = 11 : i64} {
  func.func @_bn_relu_kernel(%arg0: i32, %arg1: memref<8x1024xbf16, #tpu.memory_space<vmem>>, %arg2: memref<1x1024xf32, #tpu.memory_space<vmem>>, %arg3: memref<1x1024xf32, #tpu.memory_space<vmem>>, %arg4: memref<8x1024xbf16, #tpu.memory_space<vmem>>) attributes {dimension_semantics = [#tpu.dimension_semantics<parallel>], iteration_bounds = array<i64: 1>, scalar_prefetch = 0 : i64, scratch_operands = 0 : i64, tpu.core_type = #tpu.core_type<tc>, window_params = [{transform_indices = @transform_0, window_bounds = array<i64: 8, 1024>}, {pipeline_mode = #tpu.pipeline_mode<synchronous>, transform_indices = @transform_1, window_bounds = array<i64: 1, 1024>}, {pipeline_mode = #tpu.pipeline_mode<synchronous>, transform_indices = @transform_2, window_bounds = array<i64: 1, 1024>}, {transform_indices = @transform_3, window_bounds = array<i64: 8, 1024>}]} {
    %c0 = arith.constant 0 : index
    %c0_0 = arith.constant 0 : index
    %0 = vector.load %arg1[%c0, %c0_0] : memref<8x1024xbf16, #tpu.memory_space<vmem>>, vector<8x1024xbf16>
    %1 = arith.extf %0 : vector<8x1024xbf16> to vector<8x1024xf32>
    %c0_1 = arith.constant 0 : index
    %c0_2 = arith.constant 0 : index
    %2 = vector.load %arg2[%c0_1, %c0_2] : memref<1x1024xf32, #tpu.memory_space<vmem>>, vector<1x1024xf32>
    %3 = vector.broadcast %2 : vector<1x1024xf32> to vector<8x1024xf32>
    %4 = arith.mulf %1, %3 : vector<8x1024xf32>
    %c0_3 = arith.constant 0 : index
    %c0_4 = arith.constant 0 : index
    %5 = vector.load %arg3[%c0_3, %c0_4] : memref<1x1024xf32, #tpu.memory_space<vmem>>, vector<1x1024xf32>
    %6 = vector.broadcast %5 : vector<1x1024xf32> to vector<8x1024xf32>
    %7 = arith.addf %4, %6 : vector<8x1024xf32>
    %cst = arith.constant 0.000000e+00 : f32
    %8 = vector.broadcast %cst : f32 to vector<8x1024xf32>
    %9 = arith.maximumf %7, %8 : vector<8x1024xf32>
    %10 = arith.truncf %9 : vector<8x1024xf32> to vector<8x1024xbf16>
    %c0_5 = arith.constant 0 : index
    %c0_6 = arith.constant 0 : index
    %11 = vector.load %arg4[%c0_5, %c0_6] : memref<8x1024xbf16, #tpu.memory_space<vmem>>, vector<8x1024xbf16>
    tpu.vector_store %arg4[%c0_5, %c0_6], %10 {strides = array<i32>} : memref<8x1024xbf16, #tpu.memory_space<vmem>>, vector<8x1024xbf16>,
    return
  }
  func.func @transform_0(%arg0: i32) -> (i32, i32) {
    %c0_i32 = arith.constant 0 : i32
    %c0_i32_0 = arith.constant 0 : i32
    return %arg0, %c0_i32 : i32, i32
  }
  func.func @transform_1(%arg0: i32) -> (i32, i32) {
    %c0_i32 = arith.constant 0 : i32
    %c0_i32_0 = arith.constant 0 : i32
    %c0_i32_1 = arith.constant 0 : i32
    return %c0_i32, %c0_i32_0 : i32, i32
  }
  func.func @transform_2(%arg0: i32) -> (i32, i32) {
    %c0_i32 = arith.constant 0 : i32
    %c0_i32_0 = arith.constant 0 : i32
    %c0_i32_1 = arith.constant 0 : i32
    return %c0_i32, %c0_i32_0 : i32, i32
  }
  func.func @transform_3(%arg0: i32) -> (i32, i32) {
    %c0_i32 = arith.constant 0 : i32
    %c0_i32_0 = arith.constant 0 : i32
    return %arg0, %c0_i32 : i32, i32
  }
}

module attributes {stable_mosaic.version = 11 : i64} {
  func.func @_gemm_kernel_1k(%arg0: i32, %arg1: i32, %arg2: memref<16x640xbf16, #tpu.memory_space<vmem>>, %arg3: memref<640x128xbf16, #tpu.memory_space<vmem>>, %arg4: memref<16x128xbf16, #tpu.memory_space<vmem>>, %arg5: memref<8x128xf32, #tpu.memory_space<vmem>>, %arg6: memref<8x128xf32, #tpu.memory_space<vmem>>) attributes {dimension_semantics = [#tpu.dimension_semantics<parallel>, #tpu.dimension_semantics<parallel>], iteration_bounds = array<i64: 2, 1>, scalar_prefetch = 0 : i64, scratch_operands = 0 : i64, tpu.core_type = #tpu.core_type<tc>, window_params = [{transform_indices = @transform_0, window_bounds = array<i64: 16, 640>}, {transform_indices = @transform_1, window_bounds = array<i64: 640, 128>}, {transform_indices = @transform_2, window_bounds = array<i64: 16, 128>}, {transform_indices = @transform_3, window_bounds = array<i64: 8, 128>}, {transform_indices = @transform_4, window_bounds = array<i64: 8, 128>}]} {
    %c0 = arith.constant 0 : index
    %c0_0 = arith.constant 0 : index
    %0 = vector.load %arg2[%c0, %c0_0] : memref<16x640xbf16, #tpu.memory_space<vmem>>, vector<16x640xbf16>
    %c0_1 = arith.constant 0 : index
    %c0_2 = arith.constant 0 : index
    %1 = vector.load %arg3[%c0_1, %c0_2] : memref<640x128xbf16, #tpu.memory_space<vmem>>, vector<640x128xbf16>
    %cst = arith.constant dense<0.000000e+00> : vector<16x128xf32>
    %2 = tpu.matmul %0, %1, %cst {dimension_numbers = #tpu.dot_dimension_numbers<[1], [0], [0], [1], [0, 0, 1, 1], [], []>} : vector<16x640xbf16>, vector<640x128xbf16>, vector<16x128xf32> -> vector<16x128xf32>
    %3 = vector.shape_cast %2 : vector<16x128xf32> to vector<2x8x128xf32>
    %cst_3 = arith.constant dense<0.000000e+00> : vector<8x128xf32>
    %4 = vector.multi_reduction <add>, %3, %cst_3 [0] : vector<2x8x128xf32> to vector<8x128xf32>
    %5 = arith.mulf %3, %3 : vector<2x8x128xf32>
    %cst_4 = arith.constant dense<0.000000e+00> : vector<8x128xf32>
    %6 = vector.multi_reduction <add>, %5, %cst_4 [0] : vector<2x8x128xf32> to vector<8x128xf32>
    %c0_5 = arith.constant 0 : index
    %c0_6 = arith.constant 0 : index
    %7 = vector.load %arg5[%c0_5, %c0_6] : memref<8x128xf32, #tpu.memory_space<vmem>>, vector<8x128xf32>
    tpu.vector_store %arg5[%c0_5, %c0_6], %4 {strides = array<i32>} : memref<8x128xf32, #tpu.memory_space<vmem>>, vector<8x128xf32>,
    %c0_7 = arith.constant 0 : index
    %c0_8 = arith.constant 0 : index
    %8 = vector.load %arg6[%c0_7, %c0_8] : memref<8x128xf32, #tpu.memory_space<vmem>>, vector<8x128xf32>
    tpu.vector_store %arg6[%c0_7, %c0_8], %6 {strides = array<i32>} : memref<8x128xf32, #tpu.memory_space<vmem>>, vector<8x128xf32>,
    %9 = arith.truncf %2 : vector<16x128xf32> to vector<16x128xbf16>
    %c0_9 = arith.constant 0 : index
    %c0_10 = arith.constant 0 : index
    %10 = vector.load %arg4[%c0_9, %c0_10] : memref<16x128xbf16, #tpu.memory_space<vmem>>, vector<16x128xbf16>
    tpu.vector_store %arg4[%c0_9, %c0_10], %9 {strides = array<i32>} : memref<16x128xbf16, #tpu.memory_space<vmem>>, vector<16x128xbf16>,
    return
  }
  func.func @transform_0(%arg0: i32, %arg1: i32) -> (i32, i32) {
    %c0_i32 = arith.constant 0 : i32
    %c0_i32_0 = arith.constant 0 : i32
    return %arg0, %c0_i32 : i32, i32
  }
  func.func @transform_1(%arg0: i32, %arg1: i32) -> (i32, i32) {
    %c0_i32 = arith.constant 0 : i32
    %c0_i32_0 = arith.constant 0 : i32
    return %c0_i32, %arg1 : i32, i32
  }
  func.func @transform_2(%arg0: i32, %arg1: i32) -> (i32, i32) {
    %c0_i32 = arith.constant 0 : i32
    return %arg0, %arg1 : i32, i32
  }
  func.func @transform_3(%arg0: i32, %arg1: i32) -> (i32, i32) {
    %c0_i32 = arith.constant 0 : i32
    return %arg0, %arg1 : i32, i32
  }
  func.func @transform_4(%arg0: i32, %arg1: i32) -> (i32, i32) {
    %c0_i32 = arith.constant 0 : i32
    return %arg0, %arg1 : i32, i32
  }
}

module attributes {stable_mosaic.version = 11 : i64} {
  func.func @_bn_relu_kernel(%arg0: i32, %arg1: memref<16x128xbf16, #tpu.memory_space<vmem>>, %arg2: memref<1x128xf32, #tpu.memory_space<vmem>>, %arg3: memref<1x128xf32, #tpu.memory_space<vmem>>, %arg4: memref<16x128xbf16, #tpu.memory_space<vmem>>) attributes {dimension_semantics = [#tpu.dimension_semantics<parallel>], iteration_bounds = array<i64: 2>, scalar_prefetch = 0 : i64, scratch_operands = 0 : i64, tpu.core_type = #tpu.core_type<tc>, window_params = [{transform_indices = @transform_0, window_bounds = array<i64: 16, 128>}, {pipeline_mode = #tpu.pipeline_mode<synchronous>, transform_indices = @transform_1, window_bounds = array<i64: 1, 128>}, {pipeline_mode = #tpu.pipeline_mode<synchronous>, transform_indices = @transform_2, window_bounds = array<i64: 1, 128>}, {transform_indices = @transform_3, window_bounds = array<i64: 16, 128>}]} {
    %c0 = arith.constant 0 : index
    %c0_0 = arith.constant 0 : index
    %0 = vector.load %arg1[%c0, %c0_0] : memref<16x128xbf16, #tpu.memory_space<vmem>>, vector<16x128xbf16>
    %1 = arith.extf %0 : vector<16x128xbf16> to vector<16x128xf32>
    %c0_1 = arith.constant 0 : index
    %c0_2 = arith.constant 0 : index
    %2 = vector.load %arg2[%c0_1, %c0_2] : memref<1x128xf32, #tpu.memory_space<vmem>>, vector<1x128xf32>
    %3 = vector.broadcast %2 : vector<1x128xf32> to vector<16x128xf32>
    %4 = arith.mulf %1, %3 : vector<16x128xf32>
    %c0_3 = arith.constant 0 : index
    %c0_4 = arith.constant 0 : index
    %5 = vector.load %arg3[%c0_3, %c0_4] : memref<1x128xf32, #tpu.memory_space<vmem>>, vector<1x128xf32>
    %6 = vector.broadcast %5 : vector<1x128xf32> to vector<16x128xf32>
    %7 = arith.addf %4, %6 : vector<16x128xf32>
    %cst = arith.constant 0.000000e+00 : f32
    %8 = vector.broadcast %cst : f32 to vector<16x128xf32>
    %9 = arith.maximumf %7, %8 : vector<16x128xf32>
    %10 = arith.truncf %9 : vector<16x128xf32> to vector<16x128xbf16>
    %c0_5 = arith.constant 0 : index
    %c0_6 = arith.constant 0 : index
    %11 = vector.load %arg4[%c0_5, %c0_6] : memref<16x128xbf16, #tpu.memory_space<vmem>>, vector<16x128xbf16>
    tpu.vector_store %arg4[%c0_5, %c0_6], %10 {strides = array<i32>} : memref<16x128xbf16, #tpu.memory_space<vmem>>, vector<16x128xbf16>,
    return
  }
  func.func @transform_0(%arg0: i32) -> (i32, i32) {
    %c0_i32 = arith.constant 0 : i32
    %c0_i32_0 = arith.constant 0 : i32
    return %arg0, %c0_i32 : i32, i32
  }
  func.func @transform_1(%arg0: i32) -> (i32, i32) {
    %c0_i32 = arith.constant 0 : i32
    %c0_i32_0 = arith.constant 0 : i32
    %c0_i32_1 = arith.constant 0 : i32
    return %c0_i32, %c0_i32_0 : i32, i32
  }
  func.func @transform_2(%arg0: i32) -> (i32, i32) {
    %c0_i32 = arith.constant 0 : i32
    %c0_i32_0 = arith.constant 0 : i32
    %c0_i32_1 = arith.constant 0 : i32
    return %c0_i32, %c0_i32_0 : i32, i32
  }
  func.func @transform_3(%arg0: i32) -> (i32, i32) {
    %c0_i32 = arith.constant 0 : i32
    %c0_i32_0 = arith.constant 0 : i32
    return %arg0, %c0_i32 : i32, i32
  }
}

module attributes {stable_mosaic.version = 11 : i64} {
  func.func @_gemm_kernel_1k(%arg0: i32, %arg1: i32, %arg2: memref<64x384xbf16, #tpu.memory_space<vmem>>, %arg3: memref<384x128xbf16, #tpu.memory_space<vmem>>, %arg4: memref<64x128xbf16, #tpu.memory_space<vmem>>, %arg5: memref<8x128xf32, #tpu.memory_space<vmem>>, %arg6: memref<8x128xf32, #tpu.memory_space<vmem>>) attributes {dimension_semantics = [#tpu.dimension_semantics<parallel>, #tpu.dimension_semantics<parallel>], iteration_bounds = array<i64: 2, 1>, scalar_prefetch = 0 : i64, scratch_operands = 0 : i64, tpu.core_type = #tpu.core_type<tc>, window_params = [{transform_indices = @transform_0, window_bounds = array<i64: 64, 384>}, {transform_indices = @transform_1, window_bounds = array<i64: 384, 128>}, {transform_indices = @transform_2, window_bounds = array<i64: 64, 128>}, {transform_indices = @transform_3, window_bounds = array<i64: 8, 128>}, {transform_indices = @transform_4, window_bounds = array<i64: 8, 128>}]} {
    %c0 = arith.constant 0 : index
    %c0_0 = arith.constant 0 : index
    %0 = vector.load %arg2[%c0, %c0_0] : memref<64x384xbf16, #tpu.memory_space<vmem>>, vector<64x384xbf16>
    %c0_1 = arith.constant 0 : index
    %c0_2 = arith.constant 0 : index
    %1 = vector.load %arg3[%c0_1, %c0_2] : memref<384x128xbf16, #tpu.memory_space<vmem>>, vector<384x128xbf16>
    %cst = arith.constant dense<0.000000e+00> : vector<64x128xf32>
    %2 = tpu.matmul %0, %1, %cst {dimension_numbers = #tpu.dot_dimension_numbers<[1], [0], [0], [1], [0, 0, 1, 1], [], []>} : vector<64x384xbf16>, vector<384x128xbf16>, vector<64x128xf32> -> vector<64x128xf32>
    %3 = vector.shape_cast %2 : vector<64x128xf32> to vector<8x8x128xf32>
    %cst_3 = arith.constant dense<0.000000e+00> : vector<8x128xf32>
    %4 = vector.multi_reduction <add>, %3, %cst_3 [0] : vector<8x8x128xf32> to vector<8x128xf32>
    %5 = arith.mulf %3, %3 : vector<8x8x128xf32>
    %cst_4 = arith.constant dense<0.000000e+00> : vector<8x128xf32>
    %6 = vector.multi_reduction <add>, %5, %cst_4 [0] : vector<8x8x128xf32> to vector<8x128xf32>
    %c0_5 = arith.constant 0 : index
    %c0_6 = arith.constant 0 : index
    %7 = vector.load %arg5[%c0_5, %c0_6] : memref<8x128xf32, #tpu.memory_space<vmem>>, vector<8x128xf32>
    tpu.vector_store %arg5[%c0_5, %c0_6], %4 {strides = array<i32>} : memref<8x128xf32, #tpu.memory_space<vmem>>, vector<8x128xf32>,
    %c0_7 = arith.constant 0 : index
    %c0_8 = arith.constant 0 : index
    %8 = vector.load %arg6[%c0_7, %c0_8] : memref<8x128xf32, #tpu.memory_space<vmem>>, vector<8x128xf32>
    tpu.vector_store %arg6[%c0_7, %c0_8], %6 {strides = array<i32>} : memref<8x128xf32, #tpu.memory_space<vmem>>, vector<8x128xf32>,
    %9 = arith.truncf %2 : vector<64x128xf32> to vector<64x128xbf16>
    %c0_9 = arith.constant 0 : index
    %c0_10 = arith.constant 0 : index
    %10 = vector.load %arg4[%c0_9, %c0_10] : memref<64x128xbf16, #tpu.memory_space<vmem>>, vector<64x128xbf16>
    tpu.vector_store %arg4[%c0_9, %c0_10], %9 {strides = array<i32>} : memref<64x128xbf16, #tpu.memory_space<vmem>>, vector<64x128xbf16>,
    return
  }
  func.func @transform_0(%arg0: i32, %arg1: i32) -> (i32, i32) {
    %c0_i32 = arith.constant 0 : i32
    %c0_i32_0 = arith.constant 0 : i32
    return %arg0, %c0_i32 : i32, i32
  }
  func.func @transform_1(%arg0: i32, %arg1: i32) -> (i32, i32) {
    %c0_i32 = arith.constant 0 : i32
    %c0_i32_0 = arith.constant 0 : i32
    return %c0_i32, %arg1 : i32, i32
  }
  func.func @transform_2(%arg0: i32, %arg1: i32) -> (i32, i32) {
    %c0_i32 = arith.constant 0 : i32
    return %arg0, %arg1 : i32, i32
  }
  func.func @transform_3(%arg0: i32, %arg1: i32) -> (i32, i32) {
    %c0_i32 = arith.constant 0 : i32
    return %arg0, %arg1 : i32, i32
  }
  func.func @transform_4(%arg0: i32, %arg1: i32) -> (i32, i32) {
    %c0_i32 = arith.constant 0 : i32
    return %arg0, %arg1 : i32, i32
  }
}

module attributes {stable_mosaic.version = 11 : i64} {
  func.func @_bn_relu_kernel(%arg0: i32, %arg1: memref<64x128xbf16, #tpu.memory_space<vmem>>, %arg2: memref<1x128xf32, #tpu.memory_space<vmem>>, %arg3: memref<1x128xf32, #tpu.memory_space<vmem>>, %arg4: memref<64x128xbf16, #tpu.memory_space<vmem>>) attributes {dimension_semantics = [#tpu.dimension_semantics<parallel>], iteration_bounds = array<i64: 2>, scalar_prefetch = 0 : i64, scratch_operands = 0 : i64, tpu.core_type = #tpu.core_type<tc>, window_params = [{transform_indices = @transform_0, window_bounds = array<i64: 64, 128>}, {pipeline_mode = #tpu.pipeline_mode<synchronous>, transform_indices = @transform_1, window_bounds = array<i64: 1, 128>}, {pipeline_mode = #tpu.pipeline_mode<synchronous>, transform_indices = @transform_2, window_bounds = array<i64: 1, 128>}, {transform_indices = @transform_3, window_bounds = array<i64: 64, 128>}]} {
    %c0 = arith.constant 0 : index
    %c0_0 = arith.constant 0 : index
    %0 = vector.load %arg1[%c0, %c0_0] : memref<64x128xbf16, #tpu.memory_space<vmem>>, vector<64x128xbf16>
    %1 = arith.extf %0 : vector<64x128xbf16> to vector<64x128xf32>
    %c0_1 = arith.constant 0 : index
    %c0_2 = arith.constant 0 : index
    %2 = vector.load %arg2[%c0_1, %c0_2] : memref<1x128xf32, #tpu.memory_space<vmem>>, vector<1x128xf32>
    %3 = vector.broadcast %2 : vector<1x128xf32> to vector<64x128xf32>
    %4 = arith.mulf %1, %3 : vector<64x128xf32>
    %c0_3 = arith.constant 0 : index
    %c0_4 = arith.constant 0 : index
    %5 = vector.load %arg3[%c0_3, %c0_4] : memref<1x128xf32, #tpu.memory_space<vmem>>, vector<1x128xf32>
    %6 = vector.broadcast %5 : vector<1x128xf32> to vector<64x128xf32>
    %7 = arith.addf %4, %6 : vector<64x128xf32>
    %cst = arith.constant 0.000000e+00 : f32
    %8 = vector.broadcast %cst : f32 to vector<64x128xf32>
    %9 = arith.maximumf %7, %8 : vector<64x128xf32>
    %10 = arith.truncf %9 : vector<64x128xf32> to vector<64x128xbf16>
    %c0_5 = arith.constant 0 : index
    %c0_6 = arith.constant 0 : index
    %11 = vector.load %arg4[%c0_5, %c0_6] : memref<64x128xbf16, #tpu.memory_space<vmem>>, vector<64x128xbf16>
    tpu.vector_store %arg4[%c0_5, %c0_6], %10 {strides = array<i32>} : memref<64x128xbf16, #tpu.memory_space<vmem>>, vector<64x128xbf16>,
    return
  }
  func.func @transform_0(%arg0: i32) -> (i32, i32) {
    %c0_i32 = arith.constant 0 : i32
    %c0_i32_0 = arith.constant 0 : i32
    return %arg0, %c0_i32 : i32, i32
  }
  func.func @transform_1(%arg0: i32) -> (i32, i32) {
    %c0_i32 = arith.constant 0 : i32
    %c0_i32_0 = arith.constant 0 : i32
    %c0_i32_1 = arith.constant 0 : i32
    return %c0_i32, %c0_i32_0 : i32, i32
  }
  func.func @transform_2(%arg0: i32) -> (i32, i32) {
    %c0_i32 = arith.constant 0 : i32
    %c0_i32_0 = arith.constant 0 : i32
    %c0_i32_1 = arith.constant 0 : i32
    return %c0_i32, %c0_i32_0 : i32, i32
  }
  func.func @transform_3(%arg0: i32) -> (i32, i32) {
    %c0_i32 = arith.constant 0 : i32
    %c0_i32_0 = arith.constant 0 : i32
    return %arg0, %c0_i32 : i32, i32
  }
}

module attributes {stable_mosaic.version = 11 : i64} {
  func.func @_gemm_kernel_1k(%arg0: i32, %arg1: i32, %arg2: memref<256x256xbf16, #tpu.memory_space<vmem>>, %arg3: memref<256x128xbf16, #tpu.memory_space<vmem>>, %arg4: memref<256x128xf32, #tpu.memory_space<vmem>>) attributes {dimension_semantics = [#tpu.dimension_semantics<parallel>, #tpu.dimension_semantics<parallel>], iteration_bounds = array<i64: 2, 1>, scalar_prefetch = 0 : i64, scratch_operands = 0 : i64, tpu.core_type = #tpu.core_type<tc>, window_params = [{transform_indices = @transform_0, window_bounds = array<i64: 256, 256>}, {transform_indices = @transform_1, window_bounds = array<i64: 256, 128>}, {transform_indices = @transform_2, window_bounds = array<i64: 256, 128>}]} {
    %c0 = arith.constant 0 : index
    %c0_0 = arith.constant 0 : index
    %0 = vector.load %arg2[%c0, %c0_0] : memref<256x256xbf16, #tpu.memory_space<vmem>>, vector<256x256xbf16>
    %c0_1 = arith.constant 0 : index
    %c0_2 = arith.constant 0 : index
    %1 = vector.load %arg3[%c0_1, %c0_2] : memref<256x128xbf16, #tpu.memory_space<vmem>>, vector<256x128xbf16>
    %cst = arith.constant dense<0.000000e+00> : vector<256x128xf32>
    %2 = tpu.matmul %0, %1, %cst {dimension_numbers = #tpu.dot_dimension_numbers<[1], [0], [0], [1], [0, 0, 1, 1], [], []>} : vector<256x256xbf16>, vector<256x128xbf16>, vector<256x128xf32> -> vector<256x128xf32>
    %c0_3 = arith.constant 0 : index
    %c0_4 = arith.constant 0 : index
    %3 = vector.load %arg4[%c0_3, %c0_4] : memref<256x128xf32, #tpu.memory_space<vmem>>, vector<256x128xf32>
    tpu.vector_store %arg4[%c0_3, %c0_4], %2 {strides = array<i32>} : memref<256x128xf32, #tpu.memory_space<vmem>>, vector<256x128xf32>,
    return
  }
  func.func @transform_0(%arg0: i32, %arg1: i32) -> (i32, i32) {
    %c0_i32 = arith.constant 0 : i32
    %c0_i32_0 = arith.constant 0 : i32
    return %arg0, %c0_i32 : i32, i32
  }
  func.func @transform_1(%arg0: i32, %arg1: i32) -> (i32, i32) {
    %c0_i32 = arith.constant 0 : i32
    %c0_i32_0 = arith.constant 0 : i32
    return %c0_i32, %arg1 : i32, i32
  }
  func.func @transform_2(%arg0: i32, %arg1: i32) -> (i32, i32) {
    %c0_i32 = arith.constant 0 : i32
    return %arg0, %arg1 : i32, i32
  }
}

</mosaic_0001>

<llo_original>
// kernel: tile.38
$region0: #{tile.38}
  #allocation0 [shape = 's32[1]{0}', space=sflag, size = 0x4, scoped, tag = 'scoped memory for tile.38']
  %s0 = inlined_call_operand.vmem [shape: f32[64], index: 0, kind: input, shape index: {}]
  %s1 = inlined_call_operand.vmem [shape: f32[16,64], index: 1, kind: output, shape index: {}]
  // Predicated region
  $region2: #{tile.38} parent=0 // pred_check
    _
  $region3: #{tile.38} parent=0 // pred_check_branch
    %3 = sbr.rel (0) target = $region5
  $region4: #{tile.38} parent=0 // pred_region
    _
  $region5: #{tile.38} parent=0 // pred_fallthru
    _
  %v4 = vld [vmem:[%s0] ss:$0 sm:$0xff]
  %5 = vst [vmem:[%s1] sm:$0xff] %v4
  %s6 = scalar_lea.vmem %s1, 8
  %7 = vst [vmem:[%s6] sm:$0xff] %v4

// kernel: generator_forward.7
$region0: #{generator_forward.7}
  #allocation0 [shape = 'u32[]', space=smem, size = 0x4, offset = 0x4, fixed_abs, tag = 'smem constant byte address 0x4 - core index']
  #allocation1 [shape = 'u32[144,128]{1,0:T(1,128)}', space=vmem, size = 0x12000, scoped, tag = 'internal scratch']
  %s0 = inlined_call_operand.vmem [shape: bf16[8,128], index: 0, kind: input, shape index: {}]
  %s1 = inlined_call_operand.hbm [shape: bf16[128,1024], index: 1, kind: input, shape index: {}]
  %s2 = inlined_call_operand.vmem [shape: bf16[8,1024], index: 2, kind: output, shape index: {0}]
  %s3 = inlined_call_operand.vmem [shape: f32[8,1024], index: 3, kind: output, shape index: {1}]
  %s4 = inlined_call_operand.vmem [shape: f32[8,1024], index: 4, kind: output, shape index: {2}]
  %5 = xla_tuple %s2, %s3, %s4
  %s6 = sld [smem:[#allocation0]]
  $region61: #{generator_forward.7} parent=0
    _
  %s8 = ssub.s32 1, %s6
  %s9 = scalar_select 0, %s8, %s6
  $region1: #{generator_forward.7} parent=0
    #allocation2 [shape = 'u8[131072]{0}', space=vmem, size = 0x20000, scoped, tag = 'input window, operand 1']
    #allocation3 [shape = 's32[2]{0}', space=sflag, size = 0x8, scoped, tag = 'scoped memory for generator_forward.7']
    %10 = vsyncpa [#allocation3], 0
    %s11 = scalar_lea.sflag [#allocation3], 1
    %12 = vsyncpa %s11, 0
    loop: start=0, step=1, limit=6
    $region2: #{generator_forward.7} parent=1 // loop_pre_header
      _
    $region3: #{generator_forward.7} parent=1 // loop_header
      %s14 = sphi 0, %s18
      %p15 = scmp.ge.s32.totalorder %s14, 6
      %s21 = sphi 0, %s33
      %s22 = sphi 0, %s29
      %s23 = sphi 0, %s21
      %s24 = sphi 0, %s22
      %s25 = sphi 0, %s23
      %s26 = sphi 0, %s24
      %s36 = sphi 0, %s38
      %s39 = sphi 0, %s36
      %s40 = sphi 0, %s39
      %s56 = sphi 0, %s40
      %s62 = sphi 0, %s64
      %s65 = sphi 0, %s62
      %s66 = sphi 0, %s65
      %s82 = sphi 0, %s66
      %s90 = sphi 0, %s92
      %s93 = sphi 0, %s90
      %s94 = sphi 0, %s93
      %s110 = sphi 0, %s94
      %s118 = sphi 0, %s120
      %s121 = sphi 0, %s118
      %s122 = sphi 0, %s121
      %s138 = sphi 0, %s122
      %s146 = sphi 0, %s148
      %s149 = sphi 0, %s146
      %s150 = sphi 0, %s149
      %s166 = sphi 0, %s150
    $region4: #{generator_forward.7} parent=1 // loop_header_branch
      %17 = sbr.rel (%p15) target = $region8
    $region5: #{generator_forward.7} parent=1 // loop_body
      %s19 = ssub.s32 %s14, 1
      %s20 = ssub.s32 %s14, 2
      %s27 = sadd.s32 1, %s22
      %p28 = scmp.ge.s32.totalorder %s27, 4
      %s29 = scalar_select %p28, 0, %s27
      %s30 = sadd.s32 1, %s21
      %s31 = scalar_select %p28, %s30, %s21
      %p32 = scmp.ge.s32.totalorder %s31, 1
      %s33 = scalar_select %p32, 0, %s31
      %s34 = ssub.s32 %s21, %s33
      %p35 = scmp.eq.s32.totalorder %s34, 0
      %s37 = sadd.s32 %s36, 1
      %s38 = scalar_select %p35, %s36, %s37
      %p41 = pneg %p35
      %p42 = scmp.eq.s32.totalorder %s14, 3
      %p43 = por %p41, %p42
      %p44 = scmp.ne.s32.totalorder %s36, %s39
      %p45 = scmp.eq.s32.totalorder %s14, 0
      %p46 = por %p44, %p45
      %p47 = scmp.ne.s32.totalorder %s36, %s39
      %p48 = scmp.eq.s32.totalorder %s19, 3
      %p49 = por %p47, %p48
      %p50 = scmp.ne.s32.totalorder %s39, %s40
      %p51 = scmp.eq.s32.totalorder %s19, 0
      %p52 = por %p50, %p51
      %p53 = scmp.ne.s32.totalorder %s39, %s40
      %p54 = scmp.eq.s32.totalorder %s20, 3
      %p55 = por %p53, %p54
      %p57 = scmp.ne.s32.totalorder %s40, %s56
      %p58 = scmp.eq.s32.totalorder %s20, 0
      %p59 = por %p57, %p58
      %s60 = ssub.s32 %s22, %s29
      %p61 = scmp.eq.s32.totalorder %s60, 0
      %s63 = sadd.s32 %s62, 1
      %s64 = scalar_select %p61, %s62, %s63
      %p67 = pneg %p61
      %p68 = scmp.eq.s32.totalorder %s14, 3
      %p69 = por %p67, %p68
      %p70 = scmp.ne.s32.totalorder %s62, %s65
      %p71 = scmp.eq.s32.totalorder %s14, 0
      %p72 = por %p70, %p71
      %p73 = scmp.ne.s32.totalorder %s62, %s65
      %p74 = scmp.eq.s32.totalorder %s19, 3
      %p75 = por %p73, %p74
      %p76 = scmp.ne.s32.totalorder %s65, %s66
      %p77 = scmp.eq.s32.totalorder %s19, 0
      %p78 = por %p76, %p77
      %p79 = scmp.ne.s32.totalorder %s65, %s66
      %p80 = scmp.eq.s32.totalorder %s20, 3
      %p81 = por %p79, %p80
      %p83 = scmp.ne.s32.totalorder %s66, %s82
      %p84 = scmp.eq.s32.totalorder %s20, 0
      %p85 = por %p83, %p84
      %s86 = ssub.s32 %s21, %s33
      %s87 = ssub.s32 %s22, %s29
      %s88 = sor.u32 %s86, %s87
      %p89 = scmp.eq.s32.totalorder %s88, 0
      %s91 = sadd.s32 %s90, 1
      %s92 = scalar_select %p89, %s90, %s91
      %p95 = pneg %p89
      %p96 = scmp.eq.s32.totalorder %s14, 3
      %p97 = por %p95, %p96
      %p98 = scmp.ne.s32.totalorder %s90, %s93
      %p99 = scmp.eq.s32.totalorder %s14, 0
      %p100 = por %p98, %p99
      %p101 = scmp.ne.s32.totalorder %s90, %s93
      %p102 = scmp.eq.s32.totalorder %s19, 3
      %p103 = por %p101, %p102
      %p104 = scmp.ne.s32.totalorder %s93, %s94
      %p105 = scmp.eq.s32.totalorder %s19, 0
      %p106 = por %p104, %p105
      %p107 = scmp.ne.s32.totalorder %s93, %s94
      %p108 = scmp.eq.s32.totalorder %s20, 3
      %p109 = por %p107, %p108
      %p111 = scmp.ne.s32.totalorder %s94, %s110
      %p112 = scmp.eq.s32.totalorder %s20, 0
      %p113 = por %p111, %p112
      %s114 = ssub.s32 %s21, %s33
      %s115 = ssub.s32 %s22, %s29
      %s116 = sor.u32 %s114, %s115
      %p117 = scmp.eq.s32.totalorder %s116, 0
      %s119 = sadd.s32 %s118, 1
      %s120 = scalar_select %p117, %s118, %s119
      %p123 = pneg %p117
      %p124 = scmp.eq.s32.totalorder %s14, 3
      %p125 = por %p123, %p124
      %p126 = scmp.ne.s32.totalorder %s118, %s121
      %p127 = scmp.eq.s32.totalorder %s14, 0
      %p128 = por %p126, %p127
      %p129 = scmp.ne.s32.totalorder %s118, %s121
      %p130 = scmp.eq.s32.totalorder %s19, 3
      %p131 = por %p129, %p130
      %p132 = scmp.ne.s32.totalorder %s121, %s122
      %p133 = scmp.eq.s32.totalorder %s19, 0
      %p134 = por %p132, %p133
      %p135 = scmp.ne.s32.totalorder %s121, %s122
      %p136 = scmp.eq.s32.totalorder %s20, 3
      %p137 = por %p135, %p136
      %p139 = scmp.ne.s32.totalorder %s122, %s138
      %p140 = scmp.eq.s32.totalorder %s20, 0
      %p141 = por %p139, %p140
      %s142 = ssub.s32 %s21, %s33
      %s143 = ssub.s32 %s22, %s29
      %s144 = sor.u32 %s142, %s143
      %p145 = scmp.eq.s32.totalorder %s144, 0
      %s147 = sadd.s32 %s146, 1
      %s148 = scalar_select %p145, %s146, %s147
      %p151 = pneg %p145
      %p152 = scmp.eq.s32.totalorder %s14, 3
      %p153 = por %p151, %p152
      %p154 = scmp.ne.s32.totalorder %s146, %s149
      %p155 = scmp.eq.s32.totalorder %s14, 0
      %p156 = por %p154, %p155
      %p157 = scmp.ne.s32.totalorder %s146, %s149
      %p158 = scmp.eq.s32.totalorder %s19, 3
      %p159 = por %p157, %p158
      %p160 = scmp.ne.s32.totalorder %s149, %s150
      %p161 = scmp.eq.s32.totalorder %s19, 0
      %p162 = por %p160, %p161
      %p163 = scmp.ne.s32.totalorder %s149, %s150
      %p164 = scmp.eq.s32.totalorder %s20, 3
      %p165 = por %p163, %p164
      %p167 = scmp.ne.s32.totalorder %s150, %s166
      %p168 = scmp.eq.s32.totalorder %s20, 0
      %p169 = por %p167, %p168
      %p170 = scmp.le.s32.totalorder 1, %s14
      %p171 = scmp.lt.s32.totalorder %s14, 5
      %p172 = pnand %p170, %p171
      %p173 = pneg %p172
      // Predicated region
      $region9: #{generator_forward.7} parent=5 // pred_check
        _
      $region10: #{generator_forward.7} parent=5 // pred_check_branch
        %175 = sbr.rel (%p172) target = $region12
      $region11: #{generator_forward.7} parent=5 // pred_region
        %s176 = ssub.s32 %s14, 1
        // Predicated region
        $region13: #{generator_forward.7} parent=11 // pred_check
          %p177 = pneg %p52
        $region14: #{generator_forward.7} parent=11 // pred_check_branch
          %179 = sbr.rel (%p177) target = $region16
        $region15: #{generator_forward.7} parent=11 // pred_region
          %p180 = scmp.lt.s32.totalorder %s23, 0
          %s181 = scalar_select %p180, %s23, 0
          %s182 = smul.addr %s181, 4
          %s183 = scalar_lea.vmem %s0, %s182
        $region16: #{generator_forward.7} parent=11 // pred_fallthru
          _
      $region12: #{generator_forward.7} parent=5 // pred_fallthru
        _
      %p184 = scmp.lt.s32.totalorder %s14, 4
      // Predicated region
      $region17: #{generator_forward.7} parent=5 // pred_check
        %p185 = pneg %p184
      $region18: #{generator_forward.7} parent=5 // pred_check_branch
        %187 = sbr.rel (%p185) target = $region20
      $region19: #{generator_forward.7} parent=5 // pred_region
        // Predicated region
        $region21: #{generator_forward.7} parent=19 // pred_check
          %p188 = pneg %p72
        $region22: #{generator_forward.7} parent=19 // pred_check_branch
          %190 = sbr.rel (%p188) target = $region24
        $region23: #{generator_forward.7} parent=19 // pred_region
          %s191 = sand.u32 %s62, 1
          %s192 = scalar_lea.sflag [#allocation3], %s191
          %s193 = sand.u32 %s62, 1
          %s194 = smul.addr %s193, 128
          %s195 = scalar_lea.vmem [#allocation2], %s194
          %s196 = smul.u32 2, %s22
          %s198 = ssub.s32 2048, 2048
          %199 = vsyncadd %s192, %s198
          %s200 = smul.addr %s196, 64
          %s201 = scalar_lea.hbm %s1, %s200
          %s202 = sshll.u32 %s195, 4
          %s203 = int_to_ptr.vmem [resolvable:$true] %s202
          %208 = dma.hbm_to_vmem [thread:$0]  %s201, 2048, %s203, %s192, 512, 128, 8
        $region24: #{generator_forward.7} parent=19 // pred_fallthru
          _
      $region20: #{generator_forward.7} parent=5 // pred_fallthru
        _
      %p209 = scmp.le.s32.totalorder 1, %s14
      %p210 = scmp.lt.s32.totalorder %s14, 5
      %p211 = pnand %p209, %p210
      %p212 = pneg %p211
      // Predicated region
      $region25: #{generator_forward.7} parent=5 // pred_check
        _
      $region26: #{generator_forward.7} parent=5 // pred_check_branch
        %214 = sbr.rel (%p211) target = $region28
      $region27: #{generator_forward.7} parent=5 // pred_region
        %s215 = ssub.s32 %s14, 1
        %s216 = sand.u32 %s65, 1
        %s217 = scalar_lea.sflag [#allocation3], %s216
        %s218 = sand.u32 %s65, 1
        %s219 = smul.addr %s218, 128
        %s220 = scalar_lea.vmem [#allocation2], %s219
        // Predicated region
        $region29: #{generator_forward.7} parent=27 // pred_check
          %p221 = pneg %p78
        $region30: #{generator_forward.7} parent=27 // pred_check_branch
          %223 = sbr.rel (%p221) target = $region32
        $region31: #{generator_forward.7} parent=27 // pred_region
          %224 = dma.done %s217, 2048
        $region32: #{generator_forward.7} parent=27 // pred_fallthru
          _
        %p225 = scmp.lt.s32.totalorder %s23, 0
        %s226 = scalar_select %p225, %s23, 0
        %s227 = smul.addr %s226, 4
        %s228 = scalar_lea.vmem %s0, %s227
        %p229 = pneg %p52
        %p230 = pneg %p49
        %s231 = sand.u32 %s65, 1
        %s232 = scalar_lea.sflag [#allocation3], %s231
        %s233 = sand.u32 %s65, 1
        %s234 = smul.addr %s233, 128
        %s235 = scalar_lea.vmem [#allocation2], %s234
        %p236 = pneg %p78
        %p237 = pneg %p75
        %p238 = pneg %p106
        %p239 = pneg %p103
        %s240 = smul.u32 2, %s24
        %p241 = scmp.lt.s32.totalorder %s23, 0
        %s242 = scalar_select %p241, %s23, 0
        %p243 = scmp.lt.s32.totalorder %s240, 7
        %s244 = scalar_select %p243, %s240, 7
        %s245 = smul.addr %s242, 8
        %s246 = sadd.s32 %s244, %s245
        %s247 = smul.addr %s246, 4
        %s248 = scalar_lea.vmem %s2, %s247
        %p249 = pneg %p134
        %p250 = pneg %p131
        %s251 = smul.u32 2, %s24
        %p252 = scmp.lt.s32.totalorder %s23, 0
        %s253 = scalar_select %p252, %s23, 0
        %p254 = scmp.lt.s32.totalorder %s251, 7
        %s255 = scalar_select %p254, %s251, 7
        %s256 = smul.addr %s253, 8
        %s257 = sadd.s32 %s255, %s256
        %s258 = smul.addr %s257, 8
        %s259 = scalar_lea.vmem %s3, %s258
        %p260 = pneg %p162
        %p261 = pneg %p159
        %s262 = smul.u32 2, %s24
        %p263 = scmp.lt.s32.totalorder %s23, 0
        %s264 = scalar_select %p263, %s23, 0
        %p265 = scmp.lt.s32.totalorder %s262, 7
        %s266 = scalar_select %p265, %s262, 7
        %s267 = smul.addr %s264, 8
        %s268 = sadd.s32 %s266, %s267
        %s269 = smul.addr %s268, 8
        %s270 = scalar_lea.vmem %s4, %s269
        %p271 = scmp.lt.s32.totalorder %s23, 0
        %s272 = scalar_select %p271, %s23, 0
        %s273 = smul.addr %s272, 4
        %s274 = scalar_lea.vmem %s0, %s273
        %s275 = smul.u32 2, %s24
        %s276 = smul.u32 2, %s24
        %p277 = scmp.lt.s32.totalorder %s23, 0
        %s278 = scalar_select %p277, %s23, 0
        %p279 = scmp.lt.s32.totalorder %s276, 7
        %s280 = scalar_select %p279, %s276, 7
        %s281 = smul.addr %s278, 8
        %s282 = sadd.s32 %s280, %s281
        %s283 = smul.addr %s282, 4
        %s284 = scalar_lea.vmem %s2, %s283
        %s285 = smul.u32 2, %s24
        %s286 = smul.u32 2, %s24
        %p287 = scmp.lt.s32.totalorder %s23, 0
        %s288 = scalar_select %p287, %s23, 0
        %p289 = scmp.lt.s32.totalorder %s286, 7
        %s290 = scalar_select %p289, %s286, 7
        %s291 = smul.addr %s288, 8
        %s292 = sadd.s32 %s290, %s291
        %s293 = smul.addr %s292, 8
        %s294 = scalar_lea.vmem %s3, %s293
        %s295 = smul.u32 2, %s24
        %s296 = smul.u32 2, %s24
        %p297 = scmp.lt.s32.totalorder %s23, 0
        %s298 = scalar_select %p297, %s23, 0
        %p299 = scmp.lt.s32.totalorder %s296, 7
        %s300 = scalar_select %p299, %s296, 7
        %s301 = smul.addr %s298, 8
        %s302 = sadd.s32 %s300, %s301
        %s303 = smul.addr %s302, 8
        %s304 = scalar_lea.vmem %s4, %s303
        %s305 = smul.u32 2, %s24
        %v307 = vld [vmem:[%s274] sm:$0xf]
        %v308 = vld [vmem:[%s220] sm:$0xff]
        %v309 = vld [vmem:[%s220 + $0x8] sm:$0xff]
        %v310 = vld [vmem:[%s220 + $0x10] sm:$0xff]
        %v311 = vld [vmem:[%s220 + $0x18] sm:$0xff]
        %v312 = vld [vmem:[%s220 + $0x20] sm:$0xff]
        %v313 = vld [vmem:[%s220 + $0x28] sm:$0xff]
        %v314 = vld [vmem:[%s220 + $0x30] sm:$0xff]
        %v315 = vld [vmem:[%s220 + $0x38] sm:$0xff]
        %v316 = vld [vmem:[%s220 + $0x40] sm:$0xff]
        %v317 = vld [vmem:[%s220 + $0x48] sm:$0xff]
        %v318 = vld [vmem:[%s220 + $0x50] sm:$0xff]
        %v319 = vld [vmem:[%s220 + $0x58] sm:$0xff]
        %v320 = vld [vmem:[%s220 + $0x60] sm:$0xff]
        %v321 = vld [vmem:[%s220 + $0x68] sm:$0xff]
        %v322 = vld [vmem:[%s220 + $0x70] sm:$0xff]
        %v323 = vld [vmem:[%s220 + $0x78] sm:$0xff]
        %v340 = vunpack.c.l.b16 %v308
        %v341 = vunpack.c.h.b16 %v308
        %v342 = vunpack.c.l.b16 %v309
        %v343 = vunpack.c.h.b16 %v309
        %v344 = vunpack.c.l.b16 %v310
        %v345 = vunpack.c.h.b16 %v310
        %v346 = vunpack.c.l.b16 %v311
        %v347 = vunpack.c.h.b16 %v311
        %v348 = vunpack.c.l.b16 %v312
        %v349 = vunpack.c.h.b16 %v312
        %v350 = vunpack.c.l.b16 %v313
        %v351 = vunpack.c.h.b16 %v313
        %v352 = vunpack.c.l.b16 %v314
        %v353 = vunpack.c.h.b16 %v314
        %v354 = vunpack.c.l.b16 %v315
        %v355 = vunpack.c.h.b16 %v315
        %v356 = vunpack.c.l.b16 %v316
        %v357 = vunpack.c.h.b16 %v316
        %v358 = vunpack.c.l.b16 %v317
        %v359 = vunpack.c.h.b16 %v317
        %v360 = vunpack.c.l.b16 %v318
        %v361 = vunpack.c.h.b16 %v318
        %v362 = vunpack.c.l.b16 %v319
        %v363 = vunpack.c.h.b16 %v319
        %v364 = vunpack.c.l.b16 %v320
        %v365 = vunpack.c.h.b16 %v320
        %v366 = vunpack.c.l.b16 %v321
        %v367 = vunpack.c.h.b16 %v321
        %v368 = vunpack.c.l.b16 %v322
        %v369 = vunpack.c.h.b16 %v322
        %v370 = vunpack.c.l.b16 %v323
        %v371 = vunpack.c.h.b16 %v323
        %v372 = vpack.c.b16 %v342, %v340
        %v373 = vpack.c.b16 %v343, %v341
        %v374 = vpack.c.b16 %v346, %v344
        %v375 = vpack.c.b16 %v347, %v345
        %v376 = vpack.c.b16 %v350, %v348
        %v377 = vpack.c.b16 %v351, %v349
        %v378 = vpack.c.b16 %v354, %v352
        %v379 = vpack.c.b16 %v355, %v353
        %v380 = vpack.c.b16 %v358, %v356
        %v381 = vpack.c.b16 %v359, %v357
        %v382 = vpack.c.b16 %v362, %v360
        %v383 = vpack.c.b16 %v363, %v361
        %v384 = vpack.c.b16 %v366, %v364
        %v385 = vpack.c.b16 %v367, %v365
        %v386 = vpack.c.b16 %v370, %v368
        %v387 = vpack.c.b16 %v371, %v369
        %404 = vmatprep.subr.bf16.mxu0 %v373
        %405 = vmatpush1.bf16.msra.mxu0 %v372
        %406 = vmatprep.subr.bf16.mxu0 %v375
        %407 = vmatpush1.bf16.msra.mxu0 %v374
        %408 = vmatprep.subr.bf16.mxu0 %v377
        %409 = vmatpush1.bf16.msra.mxu0 %v376
        %410 = vmatprep.subr.bf16.mxu0 %v379
        %411 = vmatpush1.bf16.msra.mxu0 %v378
        %412 = vmatprep.subr.bf16.mxu0 %v381
        %413 = vmatpush1.bf16.msra.mxu0 %v380
        %414 = vmatprep.subr.bf16.mxu0 %v383
        %415 = vmatpush1.bf16.msra.mxu0 %v382
        %416 = vmatprep.subr.bf16.mxu0 %v385
        %417 = vmatpush1.bf16.msra.mxu0 %v384
        %418 = vmatprep.subr.bf16.mxu0 %v387
        %419 = vmatpush1.bf16.msra.mxu0 %v386
        %420 = vmatprep.subr.bf16.mxu0 0
        %421 = vmatpush1.bf16.msra.mxu0 0
        %422 = vmatprep.subr.bf16.mxu0 0
        %423 = vmatpush1.bf16.msra.mxu0 0
        %424 = vmatprep.subr.bf16.mxu0 0
        %425 = vmatpush1.bf16.msra.mxu0 0
        %426 = vmatprep.subr.bf16.mxu0 0
        %427 = vmatpush1.bf16.msra.mxu0 0
        %428 = vmatprep.subr.bf16.mxu0 0
        %429 = vmatpush1.bf16.msra.mxu0 0
        %430 = vmatprep.subr.bf16.mxu0 0
        %431 = vmatpush1.bf16.msra.mxu0 0
        %432 = vmatprep.subr.bf16.mxu0 0
        %433 = vmatpush1.bf16.msra.mxu0 0
        %434 = vmatprep.subr.bf16.mxu0 0
        %435 = vmatpush1.bf16.msra.mxu0 0
        %436 = vmatprep.mubr.bf16.mxu0 0
        %437 = vmatmul.mubr.bf16.gmra.mrb[0].mxu0 %v307
        %v438 = vpop.f32.mrb[0].mxu0
        %v439 = vadd.f32 0.0, %v438
        %v440 = vpop.f32.mrb[0].mxu0
        %v441 = vadd.f32 0.0, %v440
        %v442 = vpop.f32.mrb[0].mxu0
        %v443 = vpop.f32.mrb[0].mxu0
        %444 = vdwg.mxu0
        %v445 = vadd.f32 %v439, 0.0
        %v446 = vadd.f32 %v441, 0.0
        %v447 = vmul.f32 %v439, %v439
        %v448 = vmul.f32 %v441, %v441
        %v449 = vadd.f32 %v447, 0.0
        %v450 = vadd.f32 %v448, 0.0
        %451 = vst [vmem:[%s294] sm:$0xff] %v445
        %452 = vst [vmem:[%s294 + $0x8] sm:$0xff] %v446
        %453 = vst [vmem:[%s304] sm:$0xff] %v449
        %454 = vst [vmem:[%s304 + $0x8] sm:$0xff] %v450
        %v455 = vpack.c.bf16 %v439, %v439
        %v456 = vpack.c.bf16 %v441, %v441
        %v459 = vunpack.c.l.b16 %v455
        %v460 = vunpack.c.l.b16 %v456
        %v461 = vpack.c.b16 %v460, %v459
        %463 = vst [vmem:[%s284] sm:$0xff] %v461
        %s464 = smul.u32 2, %s24
        %p465 = scmp.lt.s32.totalorder %s23, 0
        %s466 = scalar_select %p465, %s23, 0
        %p467 = scmp.lt.s32.totalorder %s464, 7
        %s468 = scalar_select %p467, %s464, 7
        %s469 = smul.addr %s466, 8
        %s470 = sadd.s32 %s468, %s469
        %s471 = smul.addr %s470, 4
        %s472 = scalar_lea.vmem %s2, %s471
        %s473 = smul.u32 2, %s24
        %p474 = scmp.lt.s32.totalorder %s23, 0
        %s475 = scalar_select %p474, %s23, 0
        %p476 = scmp.lt.s32.totalorder %s473, 7
        %s477 = scalar_select %p476, %s473, 7
        %s478 = smul.addr %s475, 8
        %s479 = sadd.s32 %s477, %s478
        %s480 = smul.addr %s479, 8
        %s481 = scalar_lea.vmem %s3, %s480
        %s482 = smul.u32 2, %s24
        %p483 = scmp.lt.s32.totalorder %s23, 0
        %s484 = scalar_select %p483, %s23, 0
        %p485 = scmp.lt.s32.totalorder %s482, 7
        %s486 = scalar_select %p485, %s482, 7
        %s487 = smul.addr %s484, 8
        %s488 = sadd.s32 %s486, %s487
        %s489 = smul.addr %s488, 8
        %s490 = scalar_lea.vmem %s4, %s489
        // Predicated region
        $region33: #{generator_forward.7} parent=27 // pred_check
          %p491 = pneg %p103
        $region34: #{generator_forward.7} parent=27 // pred_check_branch
          %493 = sbr.rel (%p491) target = $region36
        $region35: #{generator_forward.7} parent=27 // pred_region
          %s494 = smul.u32 2, %s24
        $region36: #{generator_forward.7} parent=27 // pred_fallthru
          _
        // Predicated region
        $region37: #{generator_forward.7} parent=27 // pred_check
          %p495 = pneg %p131
        $region38: #{generator_forward.7} parent=27 // pred_check_branch
          %497 = sbr.rel (%p495) target = $region40
        $region39: #{generator_forward.7} parent=27 // pred_region
          %s498 = smul.u32 2, %s24
        $region40: #{generator_forward.7} parent=27 // pred_fallthru
          _
        // Predicated region
        $region41: #{generator_forward.7} parent=27 // pred_check
          %p499 = pneg %p159
        $region42: #{generator_forward.7} parent=27 // pred_check_branch
          %501 = sbr.rel (%p499) target = $region44
        $region43: #{generator_forward.7} parent=27 // pred_region
          %s502 = smul.u32 2, %s24
        $region44: #{generator_forward.7} parent=27 // pred_fallthru
          _
      $region28: #{generator_forward.7} parent=5 // pred_fallthru
        _
      %p503 = scmp.le.s32.totalorder 2, %s14
      // Predicated region
      $region45: #{generator_forward.7} parent=5 // pred_check
        %p504 = pneg %p503
      $region46: #{generator_forward.7} parent=5 // pred_check_branch
        %506 = sbr.rel (%p504) target = $region48
      $region47: #{generator_forward.7} parent=5 // pred_region
        %s507 = ssub.s32 %s14, 2
        // Predicated region
        $region49: #{generator_forward.7} parent=47 // pred_check
          %p508 = pneg %p109
        $region50: #{generator_forward.7} parent=47 // pred_check_branch
          %510 = sbr.rel (%p508) target = $region52
        $region51: #{generator_forward.7} parent=47 // pred_region
          %s511 = smul.u32 2, %s26
          %p512 = scmp.lt.s32.totalorder %s25, 0
          %s513 = scalar_select %p512, %s25, 0
          %p514 = scmp.lt.s32.totalorder %s511, 7
          %s515 = scalar_select %p514, %s511, 7
          %s516 = smul.addr %s513, 8
          %s517 = sadd.s32 %s515, %s516
          %s518 = smul.addr %s517, 4
          %s519 = scalar_lea.vmem %s2, %s518
        $region52: #{generator_forward.7} parent=47 // pred_fallthru
          _
        // Predicated region
        $region53: #{generator_forward.7} parent=47 // pred_check
          %p520 = pneg %p137
        $region54: #{generator_forward.7} parent=47 // pred_check_branch
          %522 = sbr.rel (%p520) target = $region56
        $region55: #{generator_forward.7} parent=47 // pred_region
          %s523 = smul.u32 2, %s26
          %p524 = scmp.lt.s32.totalorder %s25, 0
          %s525 = scalar_select %p524, %s25, 0
          %p526 = scmp.lt.s32.totalorder %s523, 7
          %s527 = scalar_select %p526, %s523, 7
          %s528 = smul.addr %s525, 8
          %s529 = sadd.s32 %s527, %s528
          %s530 = smul.addr %s529, 8
          %s531 = scalar_lea.vmem %s3, %s530
        $region56: #{generator_forward.7} parent=47 // pred_fallthru
          _
        // Predicated region
        $region57: #{generator_forward.7} parent=47 // pred_check
          %p532 = pneg %p165
        $region58: #{generator_forward.7} parent=47 // pred_check_branch
          %534 = sbr.rel (%p532) target = $region60
        $region59: #{generator_forward.7} parent=47 // pred_region
          %s535 = smul.u32 2, %s26
          %p536 = scmp.lt.s32.totalorder %s25, 0
          %s537 = scalar_select %p536, %s25, 0
          %p538 = scmp.lt.s32.totalorder %s535, 7
          %s539 = scalar_select %p538, %s535, 7
          %s540 = smul.addr %s537, 8
          %s541 = sadd.s32 %s539, %s540
          %s542 = smul.addr %s541, 8
          %s543 = scalar_lea.vmem %s4, %s542
        $region60: #{generator_forward.7} parent=47 // pred_fallthru
          _
      $region48: #{generator_forward.7} parent=5 // pred_fallthru
        _
    $region6: #{generator_forward.7} parent=1 // loop_footer
      %s18 = sadd.s32 1, %s14
    $region7: #{generator_forward.7} parent=1 // loop_footer_branch
      %13 = sbr.rel target = $region3
    $region8: #{generator_forward.7} parent=1 // loop_exit
      _
    %544 = vsyncpa [#allocation3], 1
    %s545 = scalar_lea.sflag [#allocation3], 1
    %546 = vsyncpa %s545, 1

// kernel: tile.48
$region0: #{tile.48}
  #allocation0 [shape = 's32[1]{0}', space=sflag, size = 0x4, scoped, tag = 'scoped memory for tile.48']
  %s0 = inlined_call_operand.vmem [shape: f32[32], index: 0, kind: input, shape index: {}]
  %s1 = inlined_call_operand.vmem [shape: f32[4,32], index: 1, kind: output, shape index: {}]
  // Predicated region
  $region2: #{tile.48} parent=0 // pred_check
    _
  $region3: #{tile.48} parent=0 // pred_check_branch
    %3 = sbr.rel (0) target = $region5
  $region4: #{tile.48} parent=0 // pred_region
    _
  $region5: #{tile.48} parent=0 // pred_fallthru
    _
  %v4 = vld [vmem:[%s0] ss:$0 sm:$0xff]
  %5 = vst [vmem:[%s1] sm:$0xf] %v4

// kernel: generator_forward.8
$region0: #{generator_forward.8}
  #allocation0 [shape = 'u32[]', space=smem, size = 0x4, offset = 0x4, fixed_abs, tag = 'smem constant byte address 0x4 - core index']
  #allocation1 [shape = 'u32[144,128]{1,0:T(1,128)}', space=vmem, size = 0x12000, scoped, tag = 'internal scratch']
  %s0 = inlined_call_operand.vmem [shape: bf16[8,1024], index: 0, kind: input, shape index: {}]
  %s1 = inlined_call_operand.vmem [shape: f32[1,1024], index: 1, kind: input, shape index: {}]
  %s2 = inlined_call_operand.vmem [shape: f32[1,1024], index: 2, kind: input, shape index: {}]
  %s3 = inlined_call_operand.vmem [shape: bf16[8,1024], index: 3, kind: output, shape index: {}]
  %s4 = sld [smem:[#allocation0]]
  $region22: #{generator_forward.8} parent=0
    _
  %s6 = ssub.s32 1, %s4
  %s7 = scalar_select 0, %s6, %s4
  // Predicated region
  $region2: #{generator_forward.8} parent=0 // pred_check
    _
  $region3: #{generator_forward.8} parent=0 // pred_check_branch
    %9 = sbr.rel (0) target = $region5
  $region4: #{generator_forward.8} parent=0 // pred_region
    _
  $region5: #{generator_forward.8} parent=0 // pred_fallthru
    _
  // Predicated region
  $region6: #{generator_forward.8} parent=0 // pred_check
    _
  $region7: #{generator_forward.8} parent=0 // pred_check_branch
    %11 = sbr.rel (0) target = $region9
  $region8: #{generator_forward.8} parent=0 // pred_region
    _
  $region9: #{generator_forward.8} parent=0 // pred_fallthru
    _
  // Predicated region
  $region10: #{generator_forward.8} parent=0 // pred_check
    _
  $region11: #{generator_forward.8} parent=0 // pred_check_branch
    %13 = sbr.rel (0) target = $region13
  $region12: #{generator_forward.8} parent=0 // pred_region
    _
  $region13: #{generator_forward.8} parent=0 // pred_fallthru
    _
  %v14 = vld [vmem:[%s0] sm:$0xff]
  %v15 = vld [vmem:[%s0 + $0x8] sm:$0xff]
  %v16 = vld [vmem:[%s0 + $0x10] sm:$0xff]
  %v17 = vld [vmem:[%s0 + $0x18] sm:$0xff]
  %v18 = vunpack.c.l.bf16 %v14
  %v19 = vunpack.c.h.bf16 %v14
  %v20 = vunpack.c.l.bf16 %v15
  %v21 = vunpack.c.h.bf16 %v15
  %v22 = vunpack.c.l.bf16 %v16
  %v23 = vunpack.c.h.bf16 %v16
  %v24 = vunpack.c.l.bf16 %v17
  %v25 = vunpack.c.h.bf16 %v17
  %v26 = vld [vmem:[%s1] sm:$0xff]
  %v28 = vlaneseq
  %v29 = vshrl.u32 %v28, 7
  %v30 = vsub.s32 0, %v29
  %v31 = vrot.slane %v26, %v30
  %v32 = vlaneseq
  %v33 = vshrl.u32 %v32, 7
  %v34 = vsub.s32 1, %v33
  %v35 = vrot.slane %v26, %v34
  %v36 = vlaneseq
  %v37 = vshrl.u32 %v36, 7
  %v38 = vsub.s32 2, %v37
  %v39 = vrot.slane %v26, %v38
  %v40 = vlaneseq
  %v41 = vshrl.u32 %v40, 7
  %v42 = vsub.s32 3, %v41
  %v43 = vrot.slane %v26, %v42
  %v44 = vlaneseq
  %v45 = vshrl.u32 %v44, 7
  %v46 = vsub.s32 4, %v45
  %v47 = vrot.slane %v26, %v46
  %v48 = vlaneseq
  %v49 = vshrl.u32 %v48, 7
  %v50 = vsub.s32 5, %v49
  %v51 = vrot.slane %v26, %v50
  %v52 = vlaneseq
  %v53 = vshrl.u32 %v52, 7
  %v54 = vsub.s32 6, %v53
  %v55 = vrot.slane %v26, %v54
  %v56 = vlaneseq
  %v57 = vshrl.u32 %v56, 7
  %v58 = vsub.s32 7, %v57
  %v59 = vrot.slane %v26, %v58
  %v68 = vmul.f32 %v18, %v31
  %v69 = vmul.f32 %v19, %v35
  %v70 = vmul.f32 %v20, %v39
  %v71 = vmul.f32 %v21, %v43
  %v72 = vmul.f32 %v22, %v47
  %v73 = vmul.f32 %v23, %v51
  %v74 = vmul.f32 %v24, %v55
  %v75 = vmul.f32 %v25, %v59
  %v76 = vld [vmem:[%s2] sm:$0xff]
  %v78 = vlaneseq
  %v79 = vshrl.u32 %v78, 7
  %v80 = vsub.s32 0, %v79
  %v81 = vrot.slane %v76, %v80
  %v82 = vlaneseq
  %v83 = vshrl.u32 %v82, 7
  %v84 = vsub.s32 1, %v83
  %v85 = vrot.slane %v76, %v84
  %v86 = vlaneseq
  %v87 = vshrl.u32 %v86, 7
  %v88 = vsub.s32 2, %v87
  %v89 = vrot.slane %v76, %v88
  %v90 = vlaneseq
  %v91 = vshrl.u32 %v90, 7
  %v92 = vsub.s32 3, %v91
  %v93 = vrot.slane %v76, %v92
  %v94 = vlaneseq
  %v95 = vshrl.u32 %v94, 7
  %v96 = vsub.s32 4, %v95
  %v97 = vrot.slane %v76, %v96
  %v98 = vlaneseq
  %v99 = vshrl.u32 %v98, 7
  %v100 = vsub.s32 5, %v99
  %v101 = vrot.slane %v76, %v100
  %v102 = vlaneseq
  %v103 = vshrl.u32 %v102, 7
  %v104 = vsub.s32 6, %v103
  %v105 = vrot.slane %v76, %v104
  %v106 = vlaneseq
  %v107 = vshrl.u32 %v106, 7
  %v108 = vsub.s32 7, %v107
  %v109 = vrot.slane %v76, %v108
  %v118 = vadd.f32 %v68, %v81
  %v119 = vadd.f32 %v69, %v85
  %v120 = vadd.f32 %v70, %v89
  %v121 = vadd.f32 %v71, %v93
  %v122 = vadd.f32 %v72, %v97
  %v123 = vadd.f32 %v73, %v101
  %v124 = vadd.f32 %v74, %v105
  %v125 = vadd.f32 %v75, %v109
  %v126 = vmax.f32 %v118, 0.0
  %v127 = vmax.f32 %v119, 0.0
  %v128 = vmax.f32 %v120, 0.0
  %v129 = vmax.f32 %v121, 0.0
  %v130 = vmax.f32 %v122, 0.0
  %v131 = vmax.f32 %v123, 0.0
  %v132 = vmax.f32 %v124, 0.0
  %v133 = vmax.f32 %v125, 0.0
  %v134 = vpack.c.bf16 %v126, %v126
  %v135 = vpack.c.bf16 %v127, %v127
  %v136 = vpack.c.bf16 %v128, %v128
  %v137 = vpack.c.bf16 %v129, %v129
  %v138 = vpack.c.bf16 %v130, %v130
  %v139 = vpack.c.bf16 %v131, %v131
  %v140 = vpack.c.bf16 %v132, %v132
  %v141 = vpack.c.bf16 %v133, %v133
  %v150 = vunpack.c.l.b16 %v134
  %v151 = vunpack.c.l.b16 %v135
  %v152 = vunpack.c.l.b16 %v136
  %v153 = vunpack.c.l.b16 %v137
  %v154 = vunpack.c.l.b16 %v138
  %v155 = vunpack.c.l.b16 %v139
  %v156 = vunpack.c.l.b16 %v140
  %v157 = vunpack.c.l.b16 %v141
  %v158 = vpack.c.b16 %v151, %v150
  %v159 = vpack.c.b16 %v153, %v152
  %v160 = vpack.c.b16 %v155, %v154
  %v161 = vpack.c.b16 %v157, %v156
  %166 = vst [vmem:[%s3] sm:$0xff] %v158
  %167 = vst [vmem:[%s3 + $0x8] sm:$0xff] %v159
  %168 = vst [vmem:[%s3 + $0x10] sm:$0xff] %v160
  %169 = vst [vmem:[%s3 + $0x18] sm:$0xff] %v161
  // Predicated region
  $region14: #{generator_forward.8} parent=0 // pred_check
    _
  $region15: #{generator_forward.8} parent=0 // pred_check_branch
    %171 = sbr.rel (0) target = $region17
  $region16: #{generator_forward.8} parent=0 // pred_region
    _
  $region17: #{generator_forward.8} parent=0 // pred_fallthru
    _
  // Predicated region
  $region18: #{generator_forward.8} parent=0 // pred_check
    _
  $region19: #{generator_forward.8} parent=0 // pred_check_branch
    %173 = sbr.rel (0) target = $region21
  $region20: #{generator_forward.8} parent=0 // pred_region
    _
  $region21: #{generator_forward.8} parent=0 // pred_fallthru
    _

// kernel: generator_forward.9
$region0: #{generator_forward.9}
  #allocation0 [shape = 'u32[]', space=smem, size = 0x4, offset = 0x4, fixed_abs, tag = 'smem constant byte address 0x4 - core index']
  #allocation1 [shape = 'u32[144,128]{1,0:T(1,128)}', space=vmem, size = 0x12000, scoped, tag = 'internal scratch']
  %s0 = inlined_call_operand.vmem [shape: bf16[32,640], index: 0, kind: input, shape index: {}]
  %s1 = inlined_call_operand.vmem [shape: bf16[640,128], index: 1, kind: input, shape index: {}]
  %s2 = inlined_call_operand.vmem [shape: bf16[32,128], index: 2, kind: output, shape index: {0}]
  %s3 = inlined_call_operand.vmem [shape: f32[16,128], index: 3, kind: output, shape index: {1}]
  %s4 = inlined_call_operand.vmem [shape: f32[16,128], index: 4, kind: output, shape index: {2}]
  %5 = xla_tuple %s2, %s3, %s4
  %s6 = sld [smem:[#allocation0]]
  $region57: #{generator_forward.9} parent=0
    _
  %s8 = ssub.s32 1, %s6
  %s9 = scalar_select 0, %s8, %s6
  loop: start=0, step=1, limit=4
  $region2: #{generator_forward.9} parent=0 // loop_pre_header
    _
  $region3: #{generator_forward.9} parent=0 // loop_header
    %s11 = sphi 0, %s15
    %p12 = scmp.ge.s32.totalorder %s11, 4
    %s18 = sphi 0, %s30
    %s19 = sphi 0, %s26
    %s20 = sphi 0, %s18
    %s21 = sphi 0, %s19
    %s22 = sphi 0, %s20
    %s23 = sphi 0, %s21
    %s33 = sphi 0, %s35
    %s36 = sphi 0, %s33
    %s37 = sphi 0, %s36
    %s53 = sphi 0, %s37
    %s59 = sphi 0, %s61
    %s62 = sphi 0, %s59
    %s63 = sphi 0, %s62
    %s79 = sphi 0, %s63
    %s87 = sphi 0, %s89
    %s90 = sphi 0, %s87
    %s91 = sphi 0, %s90
    %s107 = sphi 0, %s91
    %s115 = sphi 0, %s117
    %s118 = sphi 0, %s115
    %s119 = sphi 0, %s118
    %s135 = sphi 0, %s119
    %s143 = sphi 0, %s145
    %s146 = sphi 0, %s143
    %s147 = sphi 0, %s146
    %s163 = sphi 0, %s147
  $region4: #{generator_forward.9} parent=0 // loop_header_branch
    %14 = sbr.rel (%p12) target = $region8
  $region5: #{generator_forward.9} parent=0 // loop_body
    %s16 = ssub.s32 %s11, 1
    %s17 = ssub.s32 %s11, 2
    %s24 = sadd.s32 1, %s19
    %p25 = scmp.ge.s32.totalorder %s24, 1
    %s26 = scalar_select %p25, 0, %s24
    %s27 = sadd.s32 1, %s18
    %s28 = scalar_select %p25, %s27, %s18
    %p29 = scmp.ge.s32.totalorder %s28, 2
    %s30 = scalar_select %p29, 0, %s28
    %s31 = ssub.s32 %s18, %s30
    %p32 = scmp.eq.s32.totalorder %s31, 0
    %s34 = sadd.s32 %s33, 1
    %s35 = scalar_select %p32, %s33, %s34
    %p38 = pneg %p32
    %p39 = scmp.eq.s32.totalorder %s11, 1
    %p40 = por %p38, %p39
    %p41 = scmp.ne.s32.totalorder %s33, %s36
    %p42 = scmp.eq.s32.totalorder %s11, 0
    %p43 = por %p41, %p42
    %p44 = scmp.ne.s32.totalorder %s33, %s36
    %p45 = scmp.eq.s32.totalorder %s16, 1
    %p46 = por %p44, %p45
    %p47 = scmp.ne.s32.totalorder %s36, %s37
    %p48 = scmp.eq.s32.totalorder %s16, 0
    %p49 = por %p47, %p48
    %p50 = scmp.ne.s32.totalorder %s36, %s37
    %p51 = scmp.eq.s32.totalorder %s17, 1
    %p52 = por %p50, %p51
    %p54 = scmp.ne.s32.totalorder %s37, %s53
    %p55 = scmp.eq.s32.totalorder %s17, 0
    %p56 = por %p54, %p55
    %s57 = ssub.s32 %s19, %s26
    %p58 = scmp.eq.s32.totalorder %s57, 0
    %s60 = sadd.s32 %s59, 1
    %s61 = scalar_select %p58, %s59, %s60
    %p64 = pneg %p58
    %p65 = scmp.eq.s32.totalorder %s11, 1
    %p66 = por %p64, %p65
    %p67 = scmp.ne.s32.totalorder %s59, %s62
    %p68 = scmp.eq.s32.totalorder %s11, 0
    %p69 = por %p67, %p68
    %p70 = scmp.ne.s32.totalorder %s59, %s62
    %p71 = scmp.eq.s32.totalorder %s16, 1
    %p72 = por %p70, %p71
    %p73 = scmp.ne.s32.totalorder %s62, %s63
    %p74 = scmp.eq.s32.totalorder %s16, 0
    %p75 = por %p73, %p74
    %p76 = scmp.ne.s32.totalorder %s62, %s63
    %p77 = scmp.eq.s32.totalorder %s17, 1
    %p78 = por %p76, %p77
    %p80 = scmp.ne.s32.totalorder %s63, %s79
    %p81 = scmp.eq.s32.totalorder %s17, 0
    %p82 = por %p80, %p81
    %s83 = ssub.s32 %s18, %s30
    %s84 = ssub.s32 %s19, %s26
    %s85 = sor.u32 %s83, %s84
    %p86 = scmp.eq.s32.totalorder %s85, 0
    %s88 = sadd.s32 %s87, 1
    %s89 = scalar_select %p86, %s87, %s88
    %p92 = pneg %p86
    %p93 = scmp.eq.s32.totalorder %s11, 1
    %p94 = por %p92, %p93
    %p95 = scmp.ne.s32.totalorder %s87, %s90
    %p96 = scmp.eq.s32.totalorder %s11, 0
    %p97 = por %p95, %p96
    %p98 = scmp.ne.s32.totalorder %s87, %s90
    %p99 = scmp.eq.s32.totalorder %s16, 1
    %p100 = por %p98, %p99
    %p101 = scmp.ne.s32.totalorder %s90, %s91
    %p102 = scmp.eq.s32.totalorder %s16, 0
    %p103 = por %p101, %p102
    %p104 = scmp.ne.s32.totalorder %s90, %s91
    %p105 = scmp.eq.s32.totalorder %s17, 1
    %p106 = por %p104, %p105
    %p108 = scmp.ne.s32.totalorder %s91, %s107
    %p109 = scmp.eq.s32.totalorder %s17, 0
    %p110 = por %p108, %p109
    %s111 = ssub.s32 %s18, %s30
    %s112 = ssub.s32 %s19, %s26
    %s113 = sor.u32 %s111, %s112
    %p114 = scmp.eq.s32.totalorder %s113, 0
    %s116 = sadd.s32 %s115, 1
    %s117 = scalar_select %p114, %s115, %s116
    %p120 = pneg %p114
    %p121 = scmp.eq.s32.totalorder %s11, 1
    %p122 = por %p120, %p121
    %p123 = scmp.ne.s32.totalorder %s115, %s118
    %p124 = scmp.eq.s32.totalorder %s11, 0
    %p125 = por %p123, %p124
    %p126 = scmp.ne.s32.totalorder %s115, %s118
    %p127 = scmp.eq.s32.totalorder %s16, 1
    %p128 = por %p126, %p127
    %p129 = scmp.ne.s32.totalorder %s118, %s119
    %p130 = scmp.eq.s32.totalorder %s16, 0
    %p131 = por %p129, %p130
    %p132 = scmp.ne.s32.totalorder %s118, %s119
    %p133 = scmp.eq.s32.totalorder %s17, 1
    %p134 = por %p132, %p133
    %p136 = scmp.ne.s32.totalorder %s119, %s135
    %p137 = scmp.eq.s32.totalorder %s17, 0
    %p138 = por %p136, %p137
    %s139 = ssub.s32 %s18, %s30
    %s140 = ssub.s32 %s19, %s26
    %s141 = sor.u32 %s139, %s140
    %p142 = scmp.eq.s32.totalorder %s141, 0
    %s144 = sadd.s32 %s143, 1
    %s145 = scalar_select %p142, %s143, %s144
    %p148 = pneg %p142
    %p149 = scmp.eq.s32.totalorder %s11, 1
    %p150 = por %p148, %p149
    %p151 = scmp.ne.s32.totalorder %s143, %s146
    %p152 = scmp.eq.s32.totalorder %s11, 0
    %p153 = por %p151, %p152
    %p154 = scmp.ne.s32.totalorder %s143, %s146
    %p155 = scmp.eq.s32.totalorder %s16, 1
    %p156 = por %p154, %p155
    %p157 = scmp.ne.s32.totalorder %s146, %s147
    %p158 = scmp.eq.s32.totalorder %s16, 0
    %p159 = por %p157, %p158
    %p160 = scmp.ne.s32.totalorder %s146, %s147
    %p161 = scmp.eq.s32.totalorder %s17, 1
    %p162 = por %p160, %p161
    %p164 = scmp.ne.s32.totalorder %s147, %s163
    %p165 = scmp.eq.s32.totalorder %s17, 0
    %p166 = por %p164, %p165
    %p167 = scmp.le.s32.totalorder 1, %s11
    %p168 = scmp.lt.s32.totalorder %s11, 3
    %p169 = pnand %p167, %p168
    %p170 = pneg %p169
    // Predicated region
    $region9: #{generator_forward.9} parent=5 // pred_check
      _
    $region10: #{generator_forward.9} parent=5 // pred_check_branch
      %172 = sbr.rel (%p169) target = $region12
    $region11: #{generator_forward.9} parent=5 // pred_region
      %s173 = ssub.s32 %s11, 1
      // Predicated region
      $region13: #{generator_forward.9} parent=11 // pred_check
        %p174 = pneg %p75
      $region14: #{generator_forward.9} parent=11 // pred_check_branch
        %176 = sbr.rel (%p174) target = $region16
      $region15: #{generator_forward.9} parent=11 // pred_region
        %p177 = scmp.lt.s32.totalorder %s21, 0
        %s178 = scalar_select %p177, %s21, 0
        %s179 = smul.addr %s178, 4
        %s180 = scalar_lea.vmem %s1, %s179
      $region16: #{generator_forward.9} parent=11 // pred_fallthru
        _
    $region12: #{generator_forward.9} parent=5 // pred_fallthru
      _
    %p181 = scmp.lt.s32.totalorder %s11, 2
    // Predicated region
    $region17: #{generator_forward.9} parent=5 // pred_check
      %p182 = pneg %p181
    $region18: #{generator_forward.9} parent=5 // pred_check_branch
      %184 = sbr.rel (%p182) target = $region20
    $region19: #{generator_forward.9} parent=5 // pred_region
      // Predicated region
      $region21: #{generator_forward.9} parent=19 // pred_check
        %p185 = pneg %p43
      $region22: #{generator_forward.9} parent=19 // pred_check_branch
        %187 = sbr.rel (%p185) target = $region24
      $region23: #{generator_forward.9} parent=19 // pred_region
        %s188 = smul.u32 2, %s18
        %p189 = scmp.lt.s32.totalorder %s188, 3
        %s190 = scalar_select %p189, %s188, 3
        %s191 = smul.addr %s190, 5
        %s192 = smul.addr %s191, 4
        %s193 = scalar_lea.vmem %s0, %s192
        %s194 = smul.u32 2, %s18
      $region24: #{generator_forward.9} parent=19 // pred_fallthru
        _
    $region20: #{generator_forward.9} parent=5 // pred_fallthru
      _
    %p195 = scmp.le.s32.totalorder 1, %s11
    %p196 = scmp.lt.s32.totalorder %s11, 3
    %p197 = pnand %p195, %p196
    %p198 = pneg %p197
    // Predicated region
    $region25: #{generator_forward.9} parent=5 // pred_check
      _
    $region26: #{generator_forward.9} parent=5 // pred_check_branch
      %200 = sbr.rel (%p197) target = $region28
    $region27: #{generator_forward.9} parent=5 // pred_region
      %s201 = ssub.s32 %s11, 1
      %s202 = smul.u32 2, %s20
      %p203 = scmp.lt.s32.totalorder %s202, 3
      %s204 = scalar_select %p203, %s202, 3
      %s205 = smul.addr %s204, 5
      %s206 = smul.addr %s205, 4
      %s207 = scalar_lea.vmem %s0, %s206
      %p208 = pneg %p49
      %p209 = pneg %p46
      %p210 = scmp.lt.s32.totalorder %s21, 0
      %s211 = scalar_select %p210, %s21, 0
      %s212 = smul.addr %s211, 4
      %s213 = scalar_lea.vmem %s1, %s212
      %p214 = pneg %p75
      %p215 = pneg %p72
      %p216 = pneg %p103
      %p217 = pneg %p100
      %s218 = smul.u32 2, %s20
      %p219 = scmp.lt.s32.totalorder %s218, 3
      %s220 = scalar_select %p219, %s218, 3
      %p221 = scmp.lt.s32.totalorder %s21, 0
      %s222 = scalar_select %p221, %s21, 0
      %s223 = sadd.s32 %s222, %s220
      %s224 = smul.addr %s223, 4
      %s225 = scalar_lea.vmem %s2, %s224
      %p226 = pneg %p131
      %p227 = pneg %p128
      %p228 = scmp.lt.s32.totalorder %s20, 1
      %s229 = scalar_select %p228, %s20, 1
      %p230 = scmp.lt.s32.totalorder %s21, 0
      %s231 = scalar_select %p230, %s21, 0
      %s232 = sadd.s32 %s231, %s229
      %s233 = smul.addr %s232, 8
      %s234 = scalar_lea.vmem %s3, %s233
      %p235 = pneg %p159
      %p236 = pneg %p156
      %p237 = scmp.lt.s32.totalorder %s20, 1
      %s238 = scalar_select %p237, %s20, 1
      %p239 = scmp.lt.s32.totalorder %s21, 0
      %s240 = scalar_select %p239, %s21, 0
      %s241 = sadd.s32 %s240, %s238
      %s242 = smul.addr %s241, 8
      %s243 = scalar_lea.vmem %s4, %s242
      %s244 = smul.u32 2, %s20
      %p245 = scmp.lt.s32.totalorder %s244, 3
      %s246 = scalar_select %p245, %s244, 3
      %s247 = smul.addr %s246, 5
      %s248 = smul.addr %s247, 4
      %s249 = scalar_lea.vmem %s0, %s248
      %s250 = smul.u32 2, %s20
      %p251 = scmp.lt.s32.totalorder %s21, 0
      %s252 = scalar_select %p251, %s21, 0
      %s253 = smul.addr %s252, 4
      %s254 = scalar_lea.vmem %s1, %s253
      %s255 = smul.u32 2, %s20
      %p256 = scmp.lt.s32.totalorder %s255, 3
      %s257 = scalar_select %p256, %s255, 3
      %p258 = scmp.lt.s32.totalorder %s21, 0
      %s259 = scalar_select %p258, %s21, 0
      %s260 = sadd.s32 %s259, %s257
      %s261 = smul.addr %s260, 4
      %s262 = scalar_lea.vmem %s2, %s261
      %s263 = smul.u32 2, %s20
      %p264 = scmp.lt.s32.totalorder %s20, 1
      %s265 = scalar_select %p264, %s20, 1
      %p266 = scmp.lt.s32.totalorder %s21, 0
      %s267 = scalar_select %p266, %s21, 0
      %s268 = sadd.s32 %s267, %s265
      %s269 = smul.addr %s268, 8
      %s270 = scalar_lea.vmem %s3, %s269
      %p271 = scmp.lt.s32.totalorder %s20, 1
      %s272 = scalar_select %p271, %s20, 1
      %p273 = scmp.lt.s32.totalorder %s21, 0
      %s274 = scalar_select %p273, %s21, 0
      %s275 = sadd.s32 %s274, %s272
      %s276 = smul.addr %s275, 8
      %s277 = scalar_lea.vmem %s4, %s276
      %v279 = vld [vmem:[%s249] sm:$0xff]
      %v280 = vld [vmem:[%s249 + $0x8] sm:$0xff]
      %v281 = vld [vmem:[%s249 + $0x10] sm:$0xf]
      %v282 = vld [vmem:[%s249 + $0x14] sm:$0xff]
      %v283 = vld [vmem:[%s249 + $0x1c] sm:$0xff]
      %v284 = vld [vmem:[%s249 + $0x24] sm:$0xf]
      %v285 = vld [vmem:[%s254] sm:$0xf]
      %v286 = vld [vmem:[%s254 + $0x4] sm:$0xf]
      %v287 = vld [vmem:[%s254 + $0x8] sm:$0xf]
      %v288 = vld [vmem:[%s254 + $0xc] sm:$0xf]
      %v289 = vld [vmem:[%s254 + $0x10] sm:$0xf]
      %v290 = vld [vmem:[%s254 + $0x14] sm:$0xf]
      %v291 = vld [vmem:[%s254 + $0x18] sm:$0xf]
      %v292 = vld [vmem:[%s254 + $0x1c] sm:$0xf]
      %v293 = vld [vmem:[%s254 + $0x20] sm:$0xf]
      %v294 = vld [vmem:[%s254 + $0x24] sm:$0xf]
      %v295 = vld [vmem:[%s254 + $0x28] sm:$0xf]
      %v296 = vld [vmem:[%s254 + $0x2c] sm:$0xf]
      %v297 = vld [vmem:[%s254 + $0x30] sm:$0xf]
      %v298 = vld [vmem:[%s254 + $0x34] sm:$0xf]
      %v299 = vld [vmem:[%s254 + $0x38] sm:$0xf]
      %v300 = vld [vmem:[%s254 + $0x3c] sm:$0xf]
      %v301 = vld [vmem:[%s254 + $0x40] sm:$0xf]
      %v302 = vld [vmem:[%s254 + $0x44] sm:$0xf]
      %v303 = vld [vmem:[%s254 + $0x48] sm:$0xf]
      %v304 = vld [vmem:[%s254 + $0x4c] sm:$0xf]
      %v305 = vld [vmem:[%s254 + $0x50] sm:$0xf]
      %v306 = vld [vmem:[%s254 + $0x54] sm:$0xf]
      %v307 = vld [vmem:[%s254 + $0x58] sm:$0xf]
      %v308 = vld [vmem:[%s254 + $0x5c] sm:$0xf]
      %v309 = vld [vmem:[%s254 + $0x60] sm:$0xf]
      %v310 = vld [vmem:[%s254 + $0x64] sm:$0xf]
      %v311 = vld [vmem:[%s254 + $0x68] sm:$0xf]
      %v312 = vld [vmem:[%s254 + $0x6c] sm:$0xf]
      %v313 = vld [vmem:[%s254 + $0x70] sm:$0xf]
      %v314 = vld [vmem:[%s254 + $0x74] sm:$0xf]
      %v315 = vld [vmem:[%s254 + $0x78] sm:$0xf]
      %v316 = vld [vmem:[%s254 + $0x7c] sm:$0xf]
      %v317 = vld [vmem:[%s254 + $0x80] sm:$0xf]
      %v318 = vld [vmem:[%s254 + $0x84] sm:$0xf]
      %v319 = vld [vmem:[%s254 + $0x88] sm:$0xf]
      %v320 = vld [vmem:[%s254 + $0x8c] sm:$0xf]
      %v321 = vld [vmem:[%s254 + $0x90] sm:$0xf]
      %v322 = vld [vmem:[%s254 + $0x94] sm:$0xf]
      %v323 = vld [vmem:[%s254 + $0x98] sm:$0xf]
      %v324 = vld [vmem:[%s254 + $0x9c] sm:$0xf]
      %v325 = vld [vmem:[%s254 + $0xa0] sm:$0xf]
      %v326 = vld [vmem:[%s254 + $0xa4] sm:$0xf]
      %v327 = vld [vmem:[%s254 + $0xa8] sm:$0xf]
      %v328 = vld [vmem:[%s254 + $0xac] sm:$0xf]
      %v329 = vld [vmem:[%s254 + $0xb0] sm:$0xf]
      %v330 = vld [vmem:[%s254 + $0xb4] sm:$0xf]
      %v331 = vld [vmem:[%s254 + $0xb8] sm:$0xf]
      %v332 = vld [vmem:[%s254 + $0xbc] sm:$0xf]
      %v333 = vld [vmem:[%s254 + $0xc0] sm:$0xf]
      %v334 = vld [vmem:[%s254 + $0xc4] sm:$0xf]
      %v335 = vld [vmem:[%s254 + $0xc8] sm:$0xf]
      %v336 = vld [vmem:[%s254 + $0xcc] sm:$0xf]
      %v337 = vld [vmem:[%s254 + $0xd0] sm:$0xf]
      %v338 = vld [vmem:[%s254 + $0xd4] sm:$0xf]
      %v339 = vld [vmem:[%s254 + $0xd8] sm:$0xf]
      %v340 = vld [vmem:[%s254 + $0xdc] sm:$0xf]
      %v341 = vld [vmem:[%s254 + $0xe0] sm:$0xf]
      %v342 = vld [vmem:[%s254 + $0xe4] sm:$0xf]
      %v343 = vld [vmem:[%s254 + $0xe8] sm:$0xf]
      %v344 = vld [vmem:[%s254 + $0xec] sm:$0xf]
      %v345 = vld [vmem:[%s254 + $0xf0] sm:$0xf]
      %v346 = vld [vmem:[%s254 + $0xf4] sm:$0xf]
      %v347 = vld [vmem:[%s254 + $0xf8] sm:$0xf]
      %v348 = vld [vmem:[%s254 + $0xfc] sm:$0xf]
      %v349 = vld [vmem:[%s254 + $0x100] sm:$0xf]
      %v350 = vld [vmem:[%s254 + $0x104] sm:$0xf]
      %v351 = vld [vmem:[%s254 + $0x108] sm:$0xf]
      %v352 = vld [vmem:[%s254 + $0x10c] sm:$0xf]
      %v353 = vld [vmem:[%s254 + $0x110] sm:$0xf]
      %v354 = vld [vmem:[%s254 + $0x114] sm:$0xf]
      %v355 = vld [vmem:[%s254 + $0x118] sm:$0xf]
      %v356 = vld [vmem:[%s254 + $0x11c] sm:$0xf]
      %v357 = vld [vmem:[%s254 + $0x120] sm:$0xf]
      %v358 = vld [vmem:[%s254 + $0x124] sm:$0xf]
      %v359 = vld [vmem:[%s254 + $0x128] sm:$0xf]
      %v360 = vld [vmem:[%s254 + $0x12c] sm:$0xf]
      %v361 = vld [vmem:[%s254 + $0x130] sm:$0xf]
      %v362 = vld [vmem:[%s254 + $0x134] sm:$0xf]
      %v363 = vld [vmem:[%s254 + $0x138] sm:$0xf]
      %v364 = vld [vmem:[%s254 + $0x13c] sm:$0xf]
      %v371 = vunpack.c.l.b16 %v279
      %v372 = vunpack.c.h.b16 %v279
      %v373 = vunpack.c.l.b16 %v280
      %v374 = vunpack.c.h.b16 %v280
      %v375 = vunpack.c.l.b16 %v281
      %v376 = vunpack.c.l.b16 %v282
      %v377 = vunpack.c.h.b16 %v282
      %v378 = vunpack.c.l.b16 %v283
      %v379 = vunpack.c.h.b16 %v283
      %v380 = vunpack.c.l.b16 %v284
      %v381 = vpack.c.b16 %v376, %v371
      %v382 = vpack.c.b16 %v377, %v372
      %v383 = vpack.c.b16 %v378, %v373
      %v384 = vpack.c.b16 %v379, %v374
      %v385 = vpack.c.b16 %v380, %v375
      %v471 = vunpack.c.l.b16 %v285
      %v472 = vunpack.c.l.b16 %v286
      %v473 = vunpack.c.l.b16 %v287
      %v474 = vunpack.c.l.b16 %v288
      %v475 = vunpack.c.l.b16 %v289
      %v476 = vunpack.c.l.b16 %v290
      %v477 = vunpack.c.l.b16 %v291
      %v478 = vunpack.c.l.b16 %v292
      %v479 = vunpack.c.l.b16 %v293
      %v480 = vunpack.c.l.b16 %v294
      %v481 = vunpack.c.l.b16 %v295
      %v482 = vunpack.c.l.b16 %v296
      %v483 = vunpack.c.l.b16 %v297
      %v484 = vunpack.c.l.b16 %v298
      %v485 = vunpack.c.l.b16 %v299
      %v486 = vunpack.c.l.b16 %v300
      %v487 = vunpack.c.l.b16 %v301
      %v488 = vunpack.c.l.b16 %v302
      %v489 = vunpack.c.l.b16 %v303
      %v490 = vunpack.c.l.b16 %v304
      %v491 = vunpack.c.l.b16 %v305
      %v492 = vunpack.c.l.b16 %v306
      %v493 = vunpack.c.l.b16 %v307
      %v494 = vunpack.c.l.b16 %v308
      %v495 = vunpack.c.l.b16 %v309
      %v496 = vunpack.c.l.b16 %v310
      %v497 = vunpack.c.l.b16 %v311
      %v498 = vunpack.c.l.b16 %v312
      %v499 = vunpack.c.l.b16 %v313
      %v500 = vunpack.c.l.b16 %v314
      %v501 = vunpack.c.l.b16 %v315
      %v502 = vunpack.c.l.b16 %v316
      %v503 = vunpack.c.l.b16 %v317
      %v504 = vunpack.c.l.b16 %v318
      %v505 = vunpack.c.l.b16 %v319
      %v506 = vunpack.c.l.b16 %v320
      %v507 = vunpack.c.l.b16 %v321
      %v508 = vunpack.c.l.b16 %v322
      %v509 = vunpack.c.l.b16 %v323
      %v510 = vunpack.c.l.b16 %v324
      %v511 = vunpack.c.l.b16 %v325
      %v512 = vunpack.c.l.b16 %v326
      %v513 = vunpack.c.l.b16 %v327
      %v514 = vunpack.c.l.b16 %v328
      %v515 = vunpack.c.l.b16 %v329
      %v516 = vunpack.c.l.b16 %v330
      %v517 = vunpack.c.l.b16 %v331
      %v518 = vunpack.c.l.b16 %v332
      %v519 = vunpack.c.l.b16 %v333
      %v520 = vunpack.c.l.b16 %v334
      %v521 = vunpack.c.l.b16 %v335
      %v522 = vunpack.c.l.b16 %v336
      %v523 = vunpack.c.l.b16 %v337
      %v524 = vunpack.c.l.b16 %v338
      %v525 = vunpack.c.l.b16 %v339
      %v526 = vunpack.c.l.b16 %v340
      %v527 = vunpack.c.l.b16 %v341
      %v528 = vunpack.c.l.b16 %v342
      %v529 = vunpack.c.l.b16 %v343
      %v530 = vunpack.c.l.b16 %v344
      %v531 = vunpack.c.l.b16 %v345
      %v532 = vunpack.c.l.b16 %v346
      %v533 = vunpack.c.l.b16 %v347
      %v534 = vunpack.c.l.b16 %v348
      %v535 = vunpack.c.l.b16 %v349
      %v536 = vunpack.c.l.b16 %v350
      %v537 = vunpack.c.l.b16 %v351
      %v538 = vunpack.c.l.b16 %v352
      %v539 = vunpack.c.l.b16 %v353
      %v540 = vunpack.c.l.b16 %v354
      %v541 = vunpack.c.l.b16 %v355
      %v542 = vunpack.c.l.b16 %v356
      %v543 = vunpack.c.l.b16 %v357
      %v544 = vunpack.c.l.b16 %v358
      %v545 = vunpack.c.l.b16 %v359
      %v546 = vunpack.c.l.b16 %v360
      %v547 = vunpack.c.l.b16 %v361
      %v548 = vunpack.c.l.b16 %v362
      %v549 = vunpack.c.l.b16 %v363
      %v550 = vunpack.c.l.b16 %v364
      %v551 = vpack.c.b16 %v472, %v471
      %v552 = vpack.c.b16 %v474, %v473
      %v553 = vpack.c.b16 %v476, %v475
      %v554 = vpack.c.b16 %v478, %v477
      %v555 = vpack.c.b16 %v480, %v479
      %v556 = vpack.c.b16 %v482, %v481
      %v557 = vpack.c.b16 %v484, %v483
      %v558 = vpack.c.b16 %v486, %v485
      %v559 = vpack.c.b16 %v488, %v487
      %v560 = vpack.c.b16 %v490, %v489
      %v561 = vpack.c.b16 %v492, %v491
      %v562 = vpack.c.b16 %v494, %v493
      %v563 = vpack.c.b16 %v496, %v495
      %v564 = vpack.c.b16 %v498, %v497
      %v565 = vpack.c.b16 %v500, %v499
      %v566 = vpack.c.b16 %v502, %v501
      %v567 = vpack.c.b16 %v504, %v503
      %v568 = vpack.c.b16 %v506, %v505
      %v569 = vpack.c.b16 %v508, %v507
      %v570 = vpack.c.b16 %v510, %v509
      %v571 = vpack.c.b16 %v512, %v511
      %v572 = vpack.c.b16 %v514, %v513
      %v573 = vpack.c.b16 %v516, %v515
      %v574 = vpack.c.b16 %v518, %v517
      %v575 = vpack.c.b16 %v520, %v519
      %v576 = vpack.c.b16 %v522, %v521
      %v577 = vpack.c.b16 %v524, %v523
      %v578 = vpack.c.b16 %v526, %v525
      %v579 = vpack.c.b16 %v528, %v527
      %v580 = vpack.c.b16 %v530, %v529
      %v581 = vpack.c.b16 %v532, %v531
      %v582 = vpack.c.b16 %v534, %v533
      %v583 = vpack.c.b16 %v536, %v535
      %v584 = vpack.c.b16 %v538, %v537
      %v585 = vpack.c.b16 %v540, %v539
      %v586 = vpack.c.b16 %v542, %v541
      %v587 = vpack.c.b16 %v544, %v543
      %v588 = vpack.c.b16 %v546, %v545
      %v589 = vpack.c.b16 %v548, %v547
      %v590 = vpack.c.b16 %v550, %v549
      %631 = vmatprep.subr.bf16.mxu0 0
      %632 = vmatpush1.bf16.msra.mxu0 %v551
      %633 = vmatprep.subr.bf16.mxu0 0
      %634 = vmatpush1.bf16.msra.mxu0 %v552
      %635 = vmatprep.subr.bf16.mxu0 0
      %636 = vmatpush1.bf16.msra.mxu0 %v553
      %637 = vmatprep.subr.bf16.mxu0 0
      %638 = vmatpush1.bf16.msra.mxu0 %v554
      %639 = vmatprep.subr.bf16.mxu0 0
      %640 = vmatpush1.bf16.msra.mxu0 %v555
      %641 = vmatprep.subr.bf16.mxu0 0
      %642 = vmatpush1.bf16.msra.mxu0 %v556
      %643 = vmatprep.subr.bf16.mxu0 0
      %644 = vmatpush1.bf16.msra.mxu0 %v557
      %645 = vmatprep.subr.bf16.mxu0 0
      %646 = vmatpush1.bf16.msra.mxu0 %v558
      %647 = vmatprep.subr.bf16.mxu0 0
      %648 = vmatpush1.bf16.msra.mxu0 %v559
      %649 = vmatprep.subr.bf16.mxu0 0
      %650 = vmatpush1.bf16.msra.mxu0 %v560
      %651 = vmatprep.subr.bf16.mxu0 0
      %652 = vmatpush1.bf16.msra.mxu0 %v561
      %653 = vmatprep.subr.bf16.mxu0 0
      %654 = vmatpush1.bf16.msra.mxu0 %v562
      %655 = vmatprep.subr.bf16.mxu0 0
      %656 = vmatpush1.bf16.msra.mxu0 %v563
      %657 = vmatprep.subr.bf16.mxu0 0
      %658 = vmatpush1.bf16.msra.mxu0 %v564
      %659 = vmatprep.subr.bf16.mxu0 0
      %660 = vmatpush1.bf16.msra.mxu0 %v565
      %661 = vmatprep.subr.bf16.mxu0 0
      %662 = vmatpush1.bf16.msra.mxu0 %v566
      %663 = vmatprep.mubr.bf16.mxu0 %v382
      %664 = vmatmul.mubr.bf16.gmra.mrb[0].mxu0 %v381
      %v665 = vpop.f32.mrb[0].mxu0
      %v666 = vadd.f32 0.0, %v665
      %v667 = vpop.f32.mrb[0].mxu0
      %v668 = vpop.f32.mrb[0].mxu0
      %v669 = vadd.f32 0.0, %v668
      %v670 = vpop.f32.mrb[0].mxu0
      %671 = vdwg.mxu0
      %672 = vmatprep.subr.bf16.mxu0 0
      %673 = vmatpush1.bf16.msra.mxu0 %v567
      %674 = vmatprep.subr.bf16.mxu0 0
      %675 = vmatpush1.bf16.msra.mxu0 %v568
      %676 = vmatprep.subr.bf16.mxu0 0
      %677 = vmatpush1.bf16.msra.mxu0 %v569
      %678 = vmatprep.subr.bf16.mxu0 0
      %679 = vmatpush1.bf16.msra.mxu0 %v570
      %680 = vmatprep.subr.bf16.mxu0 0
      %681 = vmatpush1.bf16.msra.mxu0 %v571
      %682 = vmatprep.subr.bf16.mxu0 0
      %683 = vmatpush1.bf16.msra.mxu0 %v572
      %684 = vmatprep.subr.bf16.mxu0 0
      %685 = vmatpush1.bf16.msra.mxu0 %v573
      %686 = vmatprep.subr.bf16.mxu0 0
      %687 = vmatpush1.bf16.msra.mxu0 %v574
      %688 = vmatprep.subr.bf16.mxu0 0
      %689 = vmatpush1.bf16.msra.mxu0 %v575
      %690 = vmatprep.subr.bf16.mxu0 0
      %691 = vmatpush1.bf16.msra.mxu0 %v576
      %692 = vmatprep.subr.bf16.mxu0 0
      %693 = vmatpush1.bf16.msra.mxu0 %v577
      %694 = vmatprep.subr.bf16.mxu0 0
      %695 = vmatpush1.bf16.msra.mxu0 %v578
      %696 = vmatprep.subr.bf16.mxu0 0
      %697 = vmatpush1.bf16.msra.mxu0 %v579
      %698 = vmatprep.subr.bf16.mxu0 0
      %699 = vmatpush1.bf16.msra.mxu0 %v580
      %700 = vmatprep.subr.bf16.mxu0 0
      %701 = vmatpush1.bf16.msra.mxu0 %v581
      %702 = vmatprep.subr.bf16.mxu0 0
      %703 = vmatpush1.bf16.msra.mxu0 %v582
      %704 = vmatprep.mubr.bf16.mxu0 %v384
      %705 = vmatmul.mubr.bf16.gmra.mrb[0].mxu0 %v383
      %v706 = vpop.f32.mrb[0].mxu0
      %v707 = vadd.f32 %v666, %v706
      %v708 = vpop.f32.mrb[0].mxu0
      %v709 = vpop.f32.mrb[0].mxu0
      %v710 = vadd.f32 %v669, %v709
      %v711 = vpop.f32.mrb[0].mxu0
      %712 = vdwg.mxu0
      %713 = vmatprep.subr.bf16.mxu0 0
      %714 = vmatpush1.bf16.msra.mxu0 %v583
      %715 = vmatprep.subr.bf16.mxu0 0
      %716 = vmatpush1.bf16.msra.mxu0 %v584
      %717 = vmatprep.subr.bf16.mxu0 0
      %718 = vmatpush1.bf16.msra.mxu0 %v585
      %719 = vmatprep.subr.bf16.mxu0 0
      %720 = vmatpush1.bf16.msra.mxu0 %v586
      %721 = vmatprep.subr.bf16.mxu0 0
      %722 = vmatpush1.bf16.msra.mxu0 %v587
      %723 = vmatprep.subr.bf16.mxu0 0
      %724 = vmatpush1.bf16.msra.mxu0 %v588
      %725 = vmatprep.subr.bf16.mxu0 0
      %726 = vmatpush1.bf16.msra.mxu0 %v589
      %727 = vmatprep.subr.bf16.mxu0 0
      %728 = vmatpush1.bf16.msra.mxu0 %v590
      %729 = vmatprep.subr.bf16.mxu0 0
      %730 = vmatpush1.bf16.msra.mxu0 0
      %731 = vmatprep.subr.bf16.mxu0 0
      %732 = vmatpush1.bf16.msra.mxu0 0
      %733 = vmatprep.subr.bf16.mxu0 0
      %734 = vmatpush1.bf16.msra.mxu0 0
      %735 = vmatprep.subr.bf16.mxu0 0
      %736 = vmatpush1.bf16.msra.mxu0 0
      %737 = vmatprep.subr.bf16.mxu0 0
      %738 = vmatpush1.bf16.msra.mxu0 0
      %739 = vmatprep.subr.bf16.mxu0 0
      %740 = vmatpush1.bf16.msra.mxu0 0
      %741 = vmatprep.subr.bf16.mxu0 0
      %742 = vmatpush1.bf16.msra.mxu0 0
      %743 = vmatprep.subr.bf16.mxu0 0
      %744 = vmatpush1.bf16.msra.mxu0 0
      %745 = vmatprep.mubr.bf16.mxu0 0
      %746 = vmatmul.mubr.bf16.gmra.mrb[0].mxu0 %v385
      %v747 = vpop.f32.mrb[0].mxu0
      %v748 = vadd.f32 %v707, %v747
      %v749 = vpop.f32.mrb[0].mxu0
      %v750 = vpop.f32.mrb[0].mxu0
      %v751 = vadd.f32 %v710, %v750
      %v752 = vpop.f32.mrb[0].mxu0
      %753 = vdwg.mxu0
      %v754 = vadd.f32 %v748, %v751
      %v755 = vmul.f32 %v748, %v748
      %v756 = vmul.f32 %v751, %v751
      %v757 = vadd.f32 %v755, %v756
      %758 = vst [vmem:[%s270] sm:$0xff] %v754
      %759 = vst [vmem:[%s277] sm:$0xff] %v757
      %v760 = vpack.c.bf16 %v751, %v748
      %v762 = vunpack.c.l.b16 %v760
      %v763 = vunpack.c.h.b16 %v760
      %v764 = vpack.c.b16 %v762, %v762
      %v765 = vpack.c.b16 %v763, %v763
      %768 = vst [vmem:[%s262] sm:$0xf] %v764
      %769 = vst [vmem:[%s262 + $0x4] sm:$0xf] %v765
      %s770 = smul.u32 2, %s20
      %p771 = scmp.lt.s32.totalorder %s770, 3
      %s772 = scalar_select %p771, %s770, 3
      %p773 = scmp.lt.s32.totalorder %s21, 0
      %s774 = scalar_select %p773, %s21, 0
      %s775 = sadd.s32 %s774, %s772
      %s776 = smul.addr %s775, 4
      %s777 = scalar_lea.vmem %s2, %s776
      %p778 = scmp.lt.s32.totalorder %s20, 1
      %s779 = scalar_select %p778, %s20, 1
      %p780 = scmp.lt.s32.totalorder %s21, 0
      %s781 = scalar_select %p780, %s21, 0
      %s782 = sadd.s32 %s781, %s779
      %s783 = smul.addr %s782, 8
      %s784 = scalar_lea.vmem %s3, %s783
      %p785 = scmp.lt.s32.totalorder %s20, 1
      %s786 = scalar_select %p785, %s20, 1
      %p787 = scmp.lt.s32.totalorder %s21, 0
      %s788 = scalar_select %p787, %s21, 0
      %s789 = sadd.s32 %s788, %s786
      %s790 = smul.addr %s789, 8
      %s791 = scalar_lea.vmem %s4, %s790
      // Predicated region
      $region29: #{generator_forward.9} parent=27 // pred_check
        %p792 = pneg %p100
      $region30: #{generator_forward.9} parent=27 // pred_check_branch
        %794 = sbr.rel (%p792) target = $region32
      $region31: #{generator_forward.9} parent=27 // pred_region
        %s795 = smul.u32 2, %s20
      $region32: #{generator_forward.9} parent=27 // pred_fallthru
        _
      // Predicated region
      $region33: #{generator_forward.9} parent=27 // pred_check
        %p796 = pneg %p128
      $region34: #{generator_forward.9} parent=27 // pred_check_branch
        %798 = sbr.rel (%p796) target = $region36
      $region35: #{generator_forward.9} parent=27 // pred_region
        _
      $region36: #{generator_forward.9} parent=27 // pred_fallthru
        _
      // Predicated region
      $region37: #{generator_forward.9} parent=27 // pred_check
        %p799 = pneg %p156
      $region38: #{generator_forward.9} parent=27 // pred_check_branch
        %801 = sbr.rel (%p799) target = $region40
      $region39: #{generator_forward.9} parent=27 // pred_region
        _
      $region40: #{generator_forward.9} parent=27 // pred_fallthru
        _
    $region28: #{generator_forward.9} parent=5 // pred_fallthru
      _
    %p802 = scmp.le.s32.totalorder 2, %s11
    // Predicated region
    $region41: #{generator_forward.9} parent=5 // pred_check
      %p803 = pneg %p802
    $region42: #{generator_forward.9} parent=5 // pred_check_branch
      %805 = sbr.rel (%p803) target = $region44
    $region43: #{generator_forward.9} parent=5 // pred_region
      %s806 = ssub.s32 %s11, 2
      // Predicated region
      $region45: #{generator_forward.9} parent=43 // pred_check
        %p807 = pneg %p106
      $region46: #{generator_forward.9} parent=43 // pred_check_branch
        %809 = sbr.rel (%p807) target = $region48
      $region47: #{generator_forward.9} parent=43 // pred_region
        %s810 = smul.u32 2, %s22
        %p811 = scmp.lt.s32.totalorder %s810, 3
        %s812 = scalar_select %p811, %s810, 3
        %p813 = scmp.lt.s32.totalorder %s23, 0
        %s814 = scalar_select %p813, %s23, 0
        %s815 = sadd.s32 %s814, %s812
        %s816 = smul.addr %s815, 4
        %s817 = scalar_lea.vmem %s2, %s816
      $region48: #{generator_forward.9} parent=43 // pred_fallthru
        _
      // Predicated region
      $region49: #{generator_forward.9} parent=43 // pred_check
        %p818 = pneg %p134
      $region50: #{generator_forward.9} parent=43 // pred_check_branch
        %820 = sbr.rel (%p818) target = $region52
      $region51: #{generator_forward.9} parent=43 // pred_region
        %p821 = scmp.lt.s32.totalorder %s22, 1
        %s822 = scalar_select %p821, %s22, 1
        %p823 = scmp.lt.s32.totalorder %s23, 0
        %s824 = scalar_select %p823, %s23, 0
        %s825 = sadd.s32 %s824, %s822
        %s826 = smul.addr %s825, 8
        %s827 = scalar_lea.vmem %s3, %s826
      $region52: #{generator_forward.9} parent=43 // pred_fallthru
        _
      // Predicated region
      $region53: #{generator_forward.9} parent=43 // pred_check
        %p828 = pneg %p162
      $region54: #{generator_forward.9} parent=43 // pred_check_branch
        %830 = sbr.rel (%p828) target = $region56
      $region55: #{generator_forward.9} parent=43 // pred_region
        %p831 = scmp.lt.s32.totalorder %s22, 1
        %s832 = scalar_select %p831, %s22, 1
        %p833 = scmp.lt.s32.totalorder %s23, 0
        %s834 = scalar_select %p833, %s23, 0
        %s835 = sadd.s32 %s834, %s832
        %s836 = smul.addr %s835, 8
        %s837 = scalar_lea.vmem %s4, %s836
      $region56: #{generator_forward.9} parent=43 // pred_fallthru
        _
    $region44: #{generator_forward.9} parent=5 // pred_fallthru
      _
  $region6: #{generator_forward.9} parent=0 // loop_footer
    %s15 = sadd.s32 1, %s11
  $region7: #{generator_forward.9} parent=0 // loop_footer_branch
    %10 = sbr.rel target = $region3
  $region8: #{generator_forward.9} parent=0 // loop_exit
    _

// kernel: generator_forward.10
$region0: #{generator_forward.10}
  #allocation0 [shape = 'u32[]', space=smem, size = 0x4, offset = 0x4, fixed_abs, tag = 'smem constant byte address 0x4 - core index']
  #allocation1 [shape = 'u32[144,128]{1,0:T(1,128)}', space=vmem, size = 0x12000, scoped, tag = 'internal scratch']
  %s0 = inlined_call_operand.vmem [shape: bf16[32,128], index: 0, kind: input, shape index: {}]
  %s1 = inlined_call_operand.vmem [shape: f32[1,128], index: 1, kind: input, shape index: {}]
  %s2 = inlined_call_operand.vmem [shape: f32[1,128], index: 2, kind: input, shape index: {}]
  %s3 = inlined_call_operand.vmem [shape: bf16[32,128], index: 3, kind: output, shape index: {}]
  %s4 = sld [smem:[#allocation0]]
  $region45: #{generator_forward.10} parent=0
    _
  %s6 = ssub.s32 1, %s4
  %s7 = scalar_select 0, %s6, %s4
  loop: start=0, step=1, limit=4
  $region2: #{generator_forward.10} parent=0 // loop_pre_header
    _
  $region3: #{generator_forward.10} parent=0 // loop_header
    %s9 = sphi 0, %s13
    %p10 = scmp.ge.s32.totalorder %s9, 4
    %s19 = sphi 0, %s21
    %s22 = sphi 0, %s19
    %s23 = sphi 0, %s22
    %s39 = sphi 0, %s23
    %s43 = sphi 0, %s43
    %s45 = sphi 0, %s43
    %s46 = sphi 0, %s45
    %s60 = sphi 0, %s46
    %s64 = sphi 0, %s64
    %s66 = sphi 0, %s64
    %s67 = sphi 0, %s66
    %s81 = sphi 0, %s67
    %s87 = sphi 0, %s89
    %s90 = sphi 0, %s87
    %s91 = sphi 0, %s90
    %s107 = sphi 0, %s91
  $region4: #{generator_forward.10} parent=0 // loop_header_branch
    %12 = sbr.rel (%p10) target = $region8
  $region5: #{generator_forward.10} parent=0 // loop_body
    %s14 = ssub.s32 %s9, 1
    %s15 = ssub.s32 %s9, 2
    %s16 = sadd.s32 %s9, 1
    %s17 = ssub.s32 %s9, %s16
    %p18 = scmp.eq.s32.totalorder %s17, 0
    %s20 = sadd.s32 %s19, 1
    %s21 = scalar_select %p18, %s19, %s20
    %p24 = pneg %p18
    %p25 = scmp.eq.s32.totalorder %s9, 1
    %p26 = por %p24, %p25
    %p27 = scmp.ne.s32.totalorder %s19, %s22
    %p28 = scmp.eq.s32.totalorder %s9, 0
    %p29 = por %p27, %p28
    %p30 = scmp.ne.s32.totalorder %s19, %s22
    %p31 = scmp.eq.s32.totalorder %s14, 1
    %p32 = por %p30, %p31
    %p33 = scmp.ne.s32.totalorder %s22, %s23
    %p34 = scmp.eq.s32.totalorder %s14, 0
    %p35 = por %p33, %p34
    %p36 = scmp.ne.s32.totalorder %s22, %s23
    %p37 = scmp.eq.s32.totalorder %s15, 1
    %p38 = por %p36, %p37
    %p40 = scmp.ne.s32.totalorder %s23, %s39
    %p41 = scmp.eq.s32.totalorder %s15, 0
    %p42 = por %p40, %p41
    %s44 = sadd.s32 %s43, 1
    %p47 = scmp.eq.s32.totalorder %s9, 1
    %p48 = scmp.ne.s32.totalorder %s43, %s45
    %p49 = scmp.eq.s32.totalorder %s9, 0
    %p50 = por %p48, %p49
    %p51 = scmp.ne.s32.totalorder %s43, %s45
    %p52 = scmp.eq.s32.totalorder %s14, 1
    %p53 = por %p51, %p52
    %p54 = scmp.ne.s32.totalorder %s45, %s46
    %p55 = scmp.eq.s32.totalorder %s14, 0
    %p56 = por %p54, %p55
    %p57 = scmp.ne.s32.totalorder %s45, %s46
    %p58 = scmp.eq.s32.totalorder %s15, 1
    %p59 = por %p57, %p58
    %p61 = scmp.ne.s32.totalorder %s46, %s60
    %p62 = scmp.eq.s32.totalorder %s15, 0
    %p63 = por %p61, %p62
    %s65 = sadd.s32 %s64, 1
    %p68 = scmp.eq.s32.totalorder %s9, 1
    %p69 = scmp.ne.s32.totalorder %s64, %s66
    %p70 = scmp.eq.s32.totalorder %s9, 0
    %p71 = por %p69, %p70
    %p72 = scmp.ne.s32.totalorder %s64, %s66
    %p73 = scmp.eq.s32.totalorder %s14, 1
    %p74 = por %p72, %p73
    %p75 = scmp.ne.s32.totalorder %s66, %s67
    %p76 = scmp.eq.s32.totalorder %s14, 0
    %p77 = por %p75, %p76
    %p78 = scmp.ne.s32.totalorder %s66, %s67
    %p79 = scmp.eq.s32.totalorder %s15, 1
    %p80 = por %p78, %p79
    %p82 = scmp.ne.s32.totalorder %s67, %s81
    %p83 = scmp.eq.s32.totalorder %s15, 0
    %p84 = por %p82, %p83
    %s85 = ssub.s32 %s9, %s16
    %p86 = scmp.eq.s32.totalorder %s85, 0
    %s88 = sadd.s32 %s87, 1
    %s89 = scalar_select %p86, %s87, %s88
    %p92 = pneg %p86
    %p93 = scmp.eq.s32.totalorder %s9, 1
    %p94 = por %p92, %p93
    %p95 = scmp.ne.s32.totalorder %s87, %s90
    %p96 = scmp.eq.s32.totalorder %s9, 0
    %p97 = por %p95, %p96
    %p98 = scmp.ne.s32.totalorder %s87, %s90
    %p99 = scmp.eq.s32.totalorder %s14, 1
    %p100 = por %p98, %p99
    %p101 = scmp.ne.s32.totalorder %s90, %s91
    %p102 = scmp.eq.s32.totalorder %s14, 0
    %p103 = por %p101, %p102
    %p104 = scmp.ne.s32.totalorder %s90, %s91
    %p105 = scmp.eq.s32.totalorder %s15, 1
    %p106 = por %p104, %p105
    %p108 = scmp.ne.s32.totalorder %s91, %s107
    %p109 = scmp.eq.s32.totalorder %s15, 0
    %p110 = por %p108, %p109
    %p111 = scmp.le.s32.totalorder 1, %s9
    %p112 = scmp.lt.s32.totalorder %s9, 3
    %p113 = pnand %p111, %p112
    %p114 = pneg %p113
    // Predicated region
    $region9: #{generator_forward.10} parent=5 // pred_check
      _
    $region10: #{generator_forward.10} parent=5 // pred_check_branch
      %116 = sbr.rel (%p113) target = $region12
    $region11: #{generator_forward.10} parent=5 // pred_region
      %s117 = ssub.s32 %s9, 1
      // Predicated region
      $region13: #{generator_forward.10} parent=11 // pred_check
        %p118 = pneg %p56
      $region14: #{generator_forward.10} parent=11 // pred_check_branch
        %120 = sbr.rel (%p118) target = $region16
      $region15: #{generator_forward.10} parent=11 // pred_region
        _
      $region16: #{generator_forward.10} parent=11 // pred_fallthru
        _
      // Predicated region
      $region17: #{generator_forward.10} parent=11 // pred_check
        %p121 = pneg %p77
      $region18: #{generator_forward.10} parent=11 // pred_check_branch
        %123 = sbr.rel (%p121) target = $region20
      $region19: #{generator_forward.10} parent=11 // pred_region
        _
      $region20: #{generator_forward.10} parent=11 // pred_fallthru
        _
    $region12: #{generator_forward.10} parent=5 // pred_fallthru
      _
    %p124 = scmp.lt.s32.totalorder %s9, 2
    // Predicated region
    $region21: #{generator_forward.10} parent=5 // pred_check
      %p125 = pneg %p124
    $region22: #{generator_forward.10} parent=5 // pred_check_branch
      %127 = sbr.rel (%p125) target = $region24
    $region23: #{generator_forward.10} parent=5 // pred_region
      // Predicated region
      $region25: #{generator_forward.10} parent=23 // pred_check
        %p128 = pneg %p29
      $region26: #{generator_forward.10} parent=23 // pred_check_branch
        %130 = sbr.rel (%p128) target = $region28
      $region27: #{generator_forward.10} parent=23 // pred_region
        %s131 = smul.u32 2, %s9
        %p132 = scmp.lt.s32.totalorder %s131, 3
        %s133 = scalar_select %p132, %s131, 3
        %s134 = smul.addr %s133, 4
        %s135 = scalar_lea.vmem %s0, %s134
        %s136 = smul.u32 2, %s9
      $region28: #{generator_forward.10} parent=23 // pred_fallthru
        _
    $region24: #{generator_forward.10} parent=5 // pred_fallthru
      _
    %p137 = scmp.le.s32.totalorder 1, %s9
    %p138 = scmp.lt.s32.totalorder %s9, 3
    %p139 = pnand %p137, %p138
    %p140 = pneg %p139
    // Predicated region
    $region29: #{generator_forward.10} parent=5 // pred_check
      _
    $region30: #{generator_forward.10} parent=5 // pred_check_branch
      %142 = sbr.rel (%p139) target = $region32
    $region31: #{generator_forward.10} parent=5 // pred_region
      %s143 = ssub.s32 %s9, 1
      %s144 = smul.u32 2, %s14
      %p145 = scmp.lt.s32.totalorder %s144, 3
      %s146 = scalar_select %p145, %s144, 3
      %s147 = smul.addr %s146, 4
      %s148 = scalar_lea.vmem %s0, %s147
      %p149 = pneg %p35
      %p150 = pneg %p32
      %p151 = pneg %p56
      %p152 = pneg %p53
      %p153 = pneg %p77
      %p154 = pneg %p74
      %p155 = pneg %p103
      %p156 = pneg %p100
      %s157 = smul.u32 2, %s14
      %p158 = scmp.lt.s32.totalorder %s157, 3
      %s159 = scalar_select %p158, %s157, 3
      %s160 = smul.addr %s159, 4
      %s161 = scalar_lea.vmem %s3, %s160
      %s162 = smul.u32 2, %s14
      %p163 = scmp.lt.s32.totalorder %s162, 3
      %s164 = scalar_select %p163, %s162, 3
      %s165 = smul.addr %s164, 4
      %s166 = scalar_lea.vmem %s0, %s165
      %s167 = smul.u32 2, %s14
      %s168 = smul.u32 2, %s14
      %p169 = scmp.lt.s32.totalorder %s168, 3
      %s170 = scalar_select %p169, %s168, 3
      %s171 = smul.addr %s170, 4
      %s172 = scalar_lea.vmem %s3, %s171
      %s173 = smul.u32 2, %s14
      %v174 = vld [vmem:[%s166] sm:$0xf]
      %v175 = vld [vmem:[%s166 + $0x4] sm:$0xf]
      %v176 = vunpack.c.l.bf16 %v174
      %v177 = vunpack.c.l.bf16 %v175
      %v178 = vld [vmem:[%s1] sm:$0x1]
      %v180 = vlaneseq
      %v181 = vshrl.u32 %v180, 7
      %v182 = vsub.s32 0, %v181
      %v183 = vrot.slane %v178, %v182
      %v185 = vmul.f32 %v176, %v183
      %v186 = vmul.f32 %v177, %v183
      %v187 = vld [vmem:[%s2] sm:$0x1]
      %v189 = vlaneseq
      %v190 = vshrl.u32 %v189, 7
      %v191 = vsub.s32 0, %v190
      %v192 = vrot.slane %v187, %v191
      %v194 = vadd.f32 %v185, %v192
      %v195 = vadd.f32 %v186, %v192
      %v196 = vmax.f32 %v194, 0.0
      %v197 = vmax.f32 %v195, 0.0
      %v198 = vpack.c.bf16 %v197, %v196
      %v200 = vunpack.c.l.b16 %v198
      %v201 = vunpack.c.h.b16 %v198
      %v202 = vpack.c.b16 %v200, %v200
      %v203 = vpack.c.b16 %v201, %v201
      %206 = vst [vmem:[%s172] sm:$0xf] %v202
      %207 = vst [vmem:[%s172 + $0x4] sm:$0xf] %v203
      %s208 = smul.u32 2, %s14
      %p209 = scmp.lt.s32.totalorder %s208, 3
      %s210 = scalar_select %p209, %s208, 3
      %s211 = smul.addr %s210, 4
      %s212 = scalar_lea.vmem %s3, %s211
      // Predicated region
      $region33: #{generator_forward.10} parent=31 // pred_check
        %p213 = pneg %p100
      $region34: #{generator_forward.10} parent=31 // pred_check_branch
        %215 = sbr.rel (%p213) target = $region36
      $region35: #{generator_forward.10} parent=31 // pred_region
        %s216 = smul.u32 2, %s14
      $region36: #{generator_forward.10} parent=31 // pred_fallthru
        _
    $region32: #{generator_forward.10} parent=5 // pred_fallthru
      _
    %p217 = scmp.le.s32.totalorder 2, %s9
    // Predicated region
    $region37: #{generator_forward.10} parent=5 // pred_check
      %p218 = pneg %p217
    $region38: #{generator_forward.10} parent=5 // pred_check_branch
      %220 = sbr.rel (%p218) target = $region40
    $region39: #{generator_forward.10} parent=5 // pred_region
      %s221 = ssub.s32 %s9, 2
      // Predicated region
      $region41: #{generator_forward.10} parent=39 // pred_check
        %p222 = pneg %p106
      $region42: #{generator_forward.10} parent=39 // pred_check_branch
        %224 = sbr.rel (%p222) target = $region44
      $region43: #{generator_forward.10} parent=39 // pred_region
        %s225 = smul.u32 2, %s15
        %p226 = scmp.lt.s32.totalorder %s225, 3
        %s227 = scalar_select %p226, %s225, 3
        %s228 = smul.addr %s227, 4
        %s229 = scalar_lea.vmem %s3, %s228
      $region44: #{generator_forward.10} parent=39 // pred_fallthru
        _
    $region40: #{generator_forward.10} parent=5 // pred_fallthru
      _
  $region6: #{generator_forward.10} parent=0 // loop_footer
    %s13 = sadd.s32 1, %s9
  $region7: #{generator_forward.10} parent=0 // loop_footer_branch
    %8 = sbr.rel target = $region3
  $region8: #{generator_forward.10} parent=0 // loop_exit
    _

// kernel: tile.58
$region0: #{tile.58}
  #allocation0 [shape = 's32[1]{0}', space=sflag, size = 0x4, scoped, tag = 'scoped memory for tile.58']
  %s0 = inlined_call_operand.vmem [shape: f32[16], index: 0, kind: input, shape index: {}]
  %s1 = inlined_call_operand.vmem [shape: f32[4,16], index: 1, kind: output, shape index: {}]
  // Predicated region
  $region2: #{tile.58} parent=0 // pred_check
    _
  $region3: #{tile.58} parent=0 // pred_check_branch
    %3 = sbr.rel (0) target = $region5
  $region4: #{tile.58} parent=0 // pred_region
    _
  $region5: #{tile.58} parent=0 // pred_fallthru
    _
  %v4 = vld [vmem:[%s0] ss:$0 sm:$0xff]
  %5 = vst [vmem:[%s1] sm:$0xf] %v4

// kernel: tile.59
$region0: #{tile.59}
  %s0 = inlined_call_operand.vmem [shape: f32[4,16], index: 0, kind: input, shape index: {}]
  %s1 = inlined_call_operand.vmem [shape: f32[64], index: 1, kind: output, shape index: {}]
  $region1: #{tile.59} parent=0
    #allocation0 [shape = 'u8[4096]{0}', space=vmem, size = 0x1000, scoped, tag = 'scoped mem for output reshape']
    #allocation1 [shape = 'u8[4096]{0}', space=vmem, size = 0x1000, scoped, tag = 'scoped mem for input reshape']
    %s3 = sshllo.u32 0, 4
    %v4 = vld [vmem:[%s0] sm:%s3]
    %5 = vst [vmem:[#allocation1] sm:%s3] %v4
    %v6 = vld [vmem:[#allocation1] sm:$0x1]
    %vm7 = vcmask 130048
    %8 = vst.msk [vmem:[#allocation0] sm:$0x1] %vm7, %v6
    %s9 = scalar_lea.vmem [#allocation1], 3
    %v10 = vld [vmem:[%s9] sm:$0x1]
    %11 = vrot.lane.b32.xlu0 %v10, 48
    %v12 = vpop.permute.xlu0 %11
    %vm13 = vcmask 523648
    %14 = vst.msk [vmem:[#allocation0] sm:$0x1] %vm13, %v12
    %s15 = scalar_lea.vmem [#allocation1], 2
    %v16 = vld [vmem:[%s15] sm:$0x1]
    %17 = vrot.lane.b32.xlu0 %v16, 32
    %v18 = vpop.permute.xlu0 %17
    %vm19 = vcmask 392448
    %20 = vst.msk [vmem:[#allocation0] sm:$0x1] %vm19, %v18
    %s21 = scalar_lea.vmem [#allocation1], 1
    %v22 = vld [vmem:[%s21] sm:$0x1]
    %23 = vrot.lane.b32.xlu0 %v22, 16
    %v24 = vpop.permute.xlu0 %23
    %vm25 = vcmask 261248
    %26 = vst.msk [vmem:[#allocation0] sm:$0x1] %vm25, %v24
    %s28 = sshllo.u32 0, 1
    %v30 = vld [vmem:[#allocation0] sm:%s28]
    %s31 = sshllo.u32 0, 1
    %32 = vst [vmem:[%s1] sm:%s31] %v30

// kernel: generator_forward.12
$region0: #{generator_forward.12}
  #allocation0 [shape = 'u32[]', space=smem, size = 0x4, offset = 0x4, fixed_abs, tag = 'smem constant byte address 0x4 - core index']
  #allocation1 [shape = 'u32[144,128]{1,0:T(1,128)}', space=vmem, size = 0x12000, scoped, tag = 'internal scratch']
  %s0 = inlined_call_operand.vmem [shape: bf16[128,128], index: 0, kind: input, shape index: {}]
  %s1 = inlined_call_operand.vmem [shape: f32[1,128], index: 1, kind: input, shape index: {}]
  %s2 = inlined_call_operand.vmem [shape: f32[1,128], index: 2, kind: input, shape index: {}]
  %s3 = inlined_call_operand.vmem [shape: bf16[128,128], index: 3, kind: output, shape index: {}]
  %s4 = sld [smem:[#allocation0]]
  $region45: #{generator_forward.12} parent=0
    _
  %s6 = ssub.s32 1, %s4
  %s7 = scalar_select 0, %s6, %s4
  loop: start=0, step=1, limit=4
  $region2: #{generator_forward.12} parent=0 // loop_pre_header
    _
  $region3: #{generator_forward.12} parent=0 // loop_header
    %s9 = sphi 0, %s13
    %p10 = scmp.ge.s32.totalorder %s9, 4
    %s19 = sphi 0, %s21
    %s22 = sphi 0, %s19
    %s23 = sphi 0, %s22
    %s39 = sphi 0, %s23
    %s43 = sphi 0, %s43
    %s45 = sphi 0, %s43
    %s46 = sphi 0, %s45
    %s60 = sphi 0, %s46
    %s64 = sphi 0, %s64
    %s66 = sphi 0, %s64
    %s67 = sphi 0, %s66
    %s81 = sphi 0, %s67
    %s87 = sphi 0, %s89
    %s90 = sphi 0, %s87
    %s91 = sphi 0, %s90
    %s107 = sphi 0, %s91
  $region4: #{generator_forward.12} parent=0 // loop_header_branch
    %12 = sbr.rel (%p10) target = $region8
  $region5: #{generator_forward.12} parent=0 // loop_body
    %s14 = ssub.s32 %s9, 1
    %s15 = ssub.s32 %s9, 2
    %s16 = sadd.s32 %s9, 1
    %s17 = ssub.s32 %s9, %s16
    %p18 = scmp.eq.s32.totalorder %s17, 0
    %s20 = sadd.s32 %s19, 1
    %s21 = scalar_select %p18, %s19, %s20
    %p24 = pneg %p18
    %p25 = scmp.eq.s32.totalorder %s9, 1
    %p26 = por %p24, %p25
    %p27 = scmp.ne.s32.totalorder %s19, %s22
    %p28 = scmp.eq.s32.totalorder %s9, 0
    %p29 = por %p27, %p28
    %p30 = scmp.ne.s32.totalorder %s19, %s22
    %p31 = scmp.eq.s32.totalorder %s14, 1
    %p32 = por %p30, %p31
    %p33 = scmp.ne.s32.totalorder %s22, %s23
    %p34 = scmp.eq.s32.totalorder %s14, 0
    %p35 = por %p33, %p34
    %p36 = scmp.ne.s32.totalorder %s22, %s23
    %p37 = scmp.eq.s32.totalorder %s15, 1
    %p38 = por %p36, %p37
    %p40 = scmp.ne.s32.totalorder %s23, %s39
    %p41 = scmp.eq.s32.totalorder %s15, 0
    %p42 = por %p40, %p41
    %s44 = sadd.s32 %s43, 1
    %p47 = scmp.eq.s32.totalorder %s9, 1
    %p48 = scmp.ne.s32.totalorder %s43, %s45
    %p49 = scmp.eq.s32.totalorder %s9, 0
    %p50 = por %p48, %p49
    %p51 = scmp.ne.s32.totalorder %s43, %s45
    %p52 = scmp.eq.s32.totalorder %s14, 1
    %p53 = por %p51, %p52
    %p54 = scmp.ne.s32.totalorder %s45, %s46
    %p55 = scmp.eq.s32.totalorder %s14, 0
    %p56 = por %p54, %p55
    %p57 = scmp.ne.s32.totalorder %s45, %s46
    %p58 = scmp.eq.s32.totalorder %s15, 1
    %p59 = por %p57, %p58
    %p61 = scmp.ne.s32.totalorder %s46, %s60
    %p62 = scmp.eq.s32.totalorder %s15, 0
    %p63 = por %p61, %p62
    %s65 = sadd.s32 %s64, 1
    %p68 = scmp.eq.s32.totalorder %s9, 1
    %p69 = scmp.ne.s32.totalorder %s64, %s66
    %p70 = scmp.eq.s32.totalorder %s9, 0
    %p71 = por %p69, %p70
    %p72 = scmp.ne.s32.totalorder %s64, %s66
    %p73 = scmp.eq.s32.totalorder %s14, 1
    %p74 = por %p72, %p73
    %p75 = scmp.ne.s32.totalorder %s66, %s67
    %p76 = scmp.eq.s32.totalorder %s14, 0
    %p77 = por %p75, %p76
    %p78 = scmp.ne.s32.totalorder %s66, %s67
    %p79 = scmp.eq.s32.totalorder %s15, 1
    %p80 = por %p78, %p79
    %p82 = scmp.ne.s32.totalorder %s67, %s81
    %p83 = scmp.eq.s32.totalorder %s15, 0
    %p84 = por %p82, %p83
    %s85 = ssub.s32 %s9, %s16
    %p86 = scmp.eq.s32.totalorder %s85, 0
    %s88 = sadd.s32 %s87, 1
    %s89 = scalar_select %p86, %s87, %s88
    %p92 = pneg %p86
    %p93 = scmp.eq.s32.totalorder %s9, 1
    %p94 = por %p92, %p93
    %p95 = scmp.ne.s32.totalorder %s87, %s90
    %p96 = scmp.eq.s32.totalorder %s9, 0
    %p97 = por %p95, %p96
    %p98 = scmp.ne.s32.totalorder %s87, %s90
    %p99 = scmp.eq.s32.totalorder %s14, 1
    %p100 = por %p98, %p99
    %p101 = scmp.ne.s32.totalorder %s90, %s91
    %p102 = scmp.eq.s32.totalorder %s14, 0
    %p103 = por %p101, %p102
    %p104 = scmp.ne.s32.totalorder %s90, %s91
    %p105 = scmp.eq.s32.totalorder %s15, 1
    %p106 = por %p104, %p105
    %p108 = scmp.ne.s32.totalorder %s91, %s107
    %p109 = scmp.eq.s32.totalorder %s15, 0
    %p110 = por %p108, %p109
    %p111 = scmp.le.s32.totalorder 1, %s9
    %p112 = scmp.lt.s32.totalorder %s9, 3
    %p113 = pnand %p111, %p112
    %p114 = pneg %p113
    // Predicated region
    $region9: #{generator_forward.12} parent=5 // pred_check
      _
    $region10: #{generator_forward.12} parent=5 // pred_check_branch
      %116 = sbr.rel (%p113) target = $region12
    $region11: #{generator_forward.12} parent=5 // pred_region
      %s117 = ssub.s32 %s9, 1
      // Predicated region
      $region13: #{generator_forward.12} parent=11 // pred_check
        %p118 = pneg %p56
      $region14: #{generator_forward.12} parent=11 // pred_check_branch
        %120 = sbr.rel (%p118) target = $region16
      $region15: #{generator_forward.12} parent=11 // pred_region
        _
      $region16: #{generator_forward.12} parent=11 // pred_fallthru
        _
      // Predicated region
      $region17: #{generator_forward.12} parent=11 // pred_check
        %p121 = pneg %p77
      $region18: #{generator_forward.12} parent=11 // pred_check_branch
        %123 = sbr.rel (%p121) target = $region20
      $region19: #{generator_forward.12} parent=11 // pred_region
        _
      $region20: #{generator_forward.12} parent=11 // pred_fallthru
        _
    $region12: #{generator_forward.12} parent=5 // pred_fallthru
      _
    %p124 = scmp.lt.s32.totalorder %s9, 2
    // Predicated region
    $region21: #{generator_forward.12} parent=5 // pred_check
      %p125 = pneg %p124
    $region22: #{generator_forward.12} parent=5 // pred_check_branch
      %127 = sbr.rel (%p125) target = $region24
    $region23: #{generator_forward.12} parent=5 // pred_region
      // Predicated region
      $region25: #{generator_forward.12} parent=23 // pred_check
        %p128 = pneg %p29
      $region26: #{generator_forward.12} parent=23 // pred_check_branch
        %130 = sbr.rel (%p128) target = $region28
      $region27: #{generator_forward.12} parent=23 // pred_region
        %s131 = smul.u32 8, %s9
        %p132 = scmp.lt.s32.totalorder %s131, 15
        %s133 = scalar_select %p132, %s131, 15
        %s134 = smul.addr %s133, 4
        %s135 = scalar_lea.vmem %s0, %s134
        %s136 = smul.u32 8, %s9
      $region28: #{generator_forward.12} parent=23 // pred_fallthru
        _
    $region24: #{generator_forward.12} parent=5 // pred_fallthru
      _
    %p137 = scmp.le.s32.totalorder 1, %s9
    %p138 = scmp.lt.s32.totalorder %s9, 3
    %p139 = pnand %p137, %p138
    %p140 = pneg %p139
    // Predicated region
    $region29: #{generator_forward.12} parent=5 // pred_check
      _
    $region30: #{generator_forward.12} parent=5 // pred_check_branch
      %142 = sbr.rel (%p139) target = $region32
    $region31: #{generator_forward.12} parent=5 // pred_region
      %s143 = ssub.s32 %s9, 1
      %s144 = smul.u32 8, %s14
      %p145 = scmp.lt.s32.totalorder %s144, 15
      %s146 = scalar_select %p145, %s144, 15
      %s147 = smul.addr %s146, 4
      %s148 = scalar_lea.vmem %s0, %s147
      %p149 = pneg %p35
      %p150 = pneg %p32
      %p151 = pneg %p56
      %p152 = pneg %p53
      %p153 = pneg %p77
      %p154 = pneg %p74
      %p155 = pneg %p103
      %p156 = pneg %p100
      %s157 = smul.u32 8, %s14
      %p158 = scmp.lt.s32.totalorder %s157, 15
      %s159 = scalar_select %p158, %s157, 15
      %s160 = smul.addr %s159, 4
      %s161 = scalar_lea.vmem %s3, %s160
      %s162 = smul.u32 8, %s14
      %p163 = scmp.lt.s32.totalorder %s162, 15
      %s164 = scalar_select %p163, %s162, 15
      %s165 = smul.addr %s164, 4
      %s166 = scalar_lea.vmem %s0, %s165
      %s167 = smul.u32 8, %s14
      %s168 = smul.u32 8, %s14
      %p169 = scmp.lt.s32.totalorder %s168, 15
      %s170 = scalar_select %p169, %s168, 15
      %s171 = smul.addr %s170, 4
      %s172 = scalar_lea.vmem %s3, %s171
      %s173 = smul.u32 8, %s14
      %v174 = vld [vmem:[%s166] sm:$0xf]
      %v175 = vld [vmem:[%s166 + $0x4] sm:$0xf]
      %v176 = vld [vmem:[%s166 + $0x8] sm:$0xf]
      %v177 = vld [vmem:[%s166 + $0xc] sm:$0xf]
      %v178 = vld [vmem:[%s166 + $0x10] sm:$0xf]
      %v179 = vld [vmem:[%s166 + $0x14] sm:$0xf]
      %v180 = vld [vmem:[%s166 + $0x18] sm:$0xf]
      %v181 = vld [vmem:[%s166 + $0x1c] sm:$0xf]
      %v182 = vunpack.c.l.bf16 %v174
      %v183 = vunpack.c.l.bf16 %v175
      %v184 = vunpack.c.l.bf16 %v176
      %v185 = vunpack.c.l.bf16 %v177
      %v186 = vunpack.c.l.bf16 %v178
      %v187 = vunpack.c.l.bf16 %v179
      %v188 = vunpack.c.l.bf16 %v180
      %v189 = vunpack.c.l.bf16 %v181
      %v190 = vld [vmem:[%s1] sm:$0x1]
      %v192 = vlaneseq
      %v193 = vshrl.u32 %v192, 7
      %v194 = vsub.s32 0, %v193
      %v195 = vrot.slane %v190, %v194
      %v197 = vmul.f32 %v182, %v195
      %v198 = vmul.f32 %v183, %v195
      %v199 = vmul.f32 %v184, %v195
      %v200 = vmul.f32 %v185, %v195
      %v201 = vmul.f32 %v186, %v195
      %v202 = vmul.f32 %v187, %v195
      %v203 = vmul.f32 %v188, %v195
      %v204 = vmul.f32 %v189, %v195
      %v205 = vld [vmem:[%s2] sm:$0x1]
      %v207 = vlaneseq
      %v208 = vshrl.u32 %v207, 7
      %v209 = vsub.s32 0, %v208
      %v210 = vrot.slane %v205, %v209
      %v212 = vadd.f32 %v197, %v210
      %v213 = vadd.f32 %v198, %v210
      %v214 = vadd.f32 %v199, %v210
      %v215 = vadd.f32 %v200, %v210
      %v216 = vadd.f32 %v201, %v210
      %v217 = vadd.f32 %v202, %v210
      %v218 = vadd.f32 %v203, %v210
      %v219 = vadd.f32 %v204, %v210
      %v220 = vmax.f32 %v212, 0.0
      %v221 = vmax.f32 %v213, 0.0
      %v222 = vmax.f32 %v214, 0.0
      %v223 = vmax.f32 %v215, 0.0
      %v224 = vmax.f32 %v216, 0.0
      %v225 = vmax.f32 %v217, 0.0
      %v226 = vmax.f32 %v218, 0.0
      %v227 = vmax.f32 %v219, 0.0
      %v228 = vpack.c.bf16 %v221, %v220
      %v229 = vpack.c.bf16 %v223, %v222
      %v230 = vpack.c.bf16 %v225, %v224
      %v231 = vpack.c.bf16 %v227, %v226
      %v236 = vunpack.c.l.b16 %v228
      %v237 = vunpack.c.h.b16 %v228
      %v238 = vunpack.c.l.b16 %v229
      %v239 = vunpack.c.h.b16 %v229
      %v240 = vunpack.c.l.b16 %v230
      %v241 = vunpack.c.h.b16 %v230
      %v242 = vunpack.c.l.b16 %v231
      %v243 = vunpack.c.h.b16 %v231
      %v244 = vpack.c.b16 %v236, %v236
      %v245 = vpack.c.b16 %v237, %v237
      %v246 = vpack.c.b16 %v238, %v238
      %v247 = vpack.c.b16 %v239, %v239
      %v248 = vpack.c.b16 %v240, %v240
      %v249 = vpack.c.b16 %v241, %v241
      %v250 = vpack.c.b16 %v242, %v242
      %v251 = vpack.c.b16 %v243, %v243
      %260 = vst [vmem:[%s172] sm:$0xf] %v244
      %261 = vst [vmem:[%s172 + $0x4] sm:$0xf] %v245
      %262 = vst [vmem:[%s172 + $0x8] sm:$0xf] %v246
      %263 = vst [vmem:[%s172 + $0xc] sm:$0xf] %v247
      %264 = vst [vmem:[%s172 + $0x10] sm:$0xf] %v248
      %265 = vst [vmem:[%s172 + $0x14] sm:$0xf] %v249
      %266 = vst [vmem:[%s172 + $0x18] sm:$0xf] %v250
      %267 = vst [vmem:[%s172 + $0x1c] sm:$0xf] %v251
      %s268 = smul.u32 8, %s14
      %p269 = scmp.lt.s32.totalorder %s268, 15
      %s270 = scalar_select %p269, %s268, 15
      %s271 = smul.addr %s270, 4
      %s272 = scalar_lea.vmem %s3, %s271
      // Predicated region
      $region33: #{generator_forward.12} parent=31 // pred_check
        %p273 = pneg %p100
      $region34: #{generator_forward.12} parent=31 // pred_check_branch
        %275 = sbr.rel (%p273) target = $region36
      $region35: #{generator_forward.12} parent=31 // pred_region
        %s276 = smul.u32 8, %s14
      $region36: #{generator_forward.12} parent=31 // pred_fallthru
        _
    $region32: #{generator_forward.12} parent=5 // pred_fallthru
      _
    %p277 = scmp.le.s32.totalorder 2, %s9
    // Predicated region
    $region37: #{generator_forward.12} parent=5 // pred_check
      %p278 = pneg %p277
    $region38: #{generator_forward.12} parent=5 // pred_check_branch
      %280 = sbr.rel (%p278) target = $region40
    $region39: #{generator_forward.12} parent=5 // pred_region
      %s281 = ssub.s32 %s9, 2
      // Predicated region
      $region41: #{generator_forward.12} parent=39 // pred_check
        %p282 = pneg %p106
      $region42: #{generator_forward.12} parent=39 // pred_check_branch
        %284 = sbr.rel (%p282) target = $region44
      $region43: #{generator_forward.12} parent=39 // pred_region
        %s285 = smul.u32 8, %s15
        %p286 = scmp.lt.s32.totalorder %s285, 15
        %s287 = scalar_select %p286, %s285, 15
        %s288 = smul.addr %s287, 4
        %s289 = scalar_lea.vmem %s3, %s288
      $region44: #{generator_forward.12} parent=39 // pred_fallthru
        _
    $region40: #{generator_forward.12} parent=5 // pred_fallthru
      _
  $region6: #{generator_forward.12} parent=0 // loop_footer
    %s13 = sadd.s32 1, %s9
  $region7: #{generator_forward.12} parent=0 // loop_footer_branch
    %8 = sbr.rel target = $region3
  $region8: #{generator_forward.12} parent=0 // loop_exit
    _

// kernel: generator_forward.11
$region0: #{generator_forward.11}
  #allocation0 [shape = 'u32[]', space=smem, size = 0x4, offset = 0x4, fixed_abs, tag = 'smem constant byte address 0x4 - core index']
  #allocation1 [shape = 'u32[144,128]{1,0:T(1,128)}', space=vmem, size = 0x12000, scoped, tag = 'internal scratch']
  %s0 = inlined_call_operand.vmem [shape: bf16[128,384], index: 0, kind: input, shape index: {}]
  %s1 = inlined_call_operand.vmem [shape: bf16[384,128], index: 1, kind: input, shape index: {}]
  %s2 = inlined_call_operand.vmem [shape: bf16[128,128], index: 2, kind: output, shape index: {0}]
  %s3 = inlined_call_operand.vmem [shape: f32[16,128], index: 3, kind: output, shape index: {1}]
  %s4 = inlined_call_operand.vmem [shape: f32[16,128], index: 4, kind: output, shape index: {2}]
  %5 = xla_tuple %s2, %s3, %s4
  %s6 = sld [smem:[#allocation0]]
  $region57: #{generator_forward.11} parent=0
    _
  %s8 = ssub.s32 1, %s6
  %s9 = scalar_select 0, %s8, %s6
  loop: start=0, step=1, limit=4
  $region2: #{generator_forward.11} parent=0 // loop_pre_header
    _
  $region3: #{generator_forward.11} parent=0 // loop_header
    %s11 = sphi 0, %s15
    %p12 = scmp.ge.s32.totalorder %s11, 4
    %s18 = sphi 0, %s30
    %s19 = sphi 0, %s26
    %s20 = sphi 0, %s18
    %s21 = sphi 0, %s19
    %s22 = sphi 0, %s20
    %s23 = sphi 0, %s21
    %s33 = sphi 0, %s35
    %s36 = sphi 0, %s33
    %s37 = sphi 0, %s36
    %s53 = sphi 0, %s37
    %s59 = sphi 0, %s61
    %s62 = sphi 0, %s59
    %s63 = sphi 0, %s62
    %s79 = sphi 0, %s63
    %s87 = sphi 0, %s89
    %s90 = sphi 0, %s87
    %s91 = sphi 0, %s90
    %s107 = sphi 0, %s91
    %s115 = sphi 0, %s117
    %s118 = sphi 0, %s115
    %s119 = sphi 0, %s118
    %s135 = sphi 0, %s119
    %s143 = sphi 0, %s145
    %s146 = sphi 0, %s143
    %s147 = sphi 0, %s146
    %s163 = sphi 0, %s147
  $region4: #{generator_forward.11} parent=0 // loop_header_branch
    %14 = sbr.rel (%p12) target = $region8
  $region5: #{generator_forward.11} parent=0 // loop_body
    %s16 = ssub.s32 %s11, 1
    %s17 = ssub.s32 %s11, 2
    %s24 = sadd.s32 1, %s19
    %p25 = scmp.ge.s32.totalorder %s24, 1
    %s26 = scalar_select %p25, 0, %s24
    %s27 = sadd.s32 1, %s18
    %s28 = scalar_select %p25, %s27, %s18
    %p29 = scmp.ge.s32.totalorder %s28, 2
    %s30 = scalar_select %p29, 0, %s28
    %s31 = ssub.s32 %s18, %s30
    %p32 = scmp.eq.s32.totalorder %s31, 0
    %s34 = sadd.s32 %s33, 1
    %s35 = scalar_select %p32, %s33, %s34
    %p38 = pneg %p32
    %p39 = scmp.eq.s32.totalorder %s11, 1
    %p40 = por %p38, %p39
    %p41 = scmp.ne.s32.totalorder %s33, %s36
    %p42 = scmp.eq.s32.totalorder %s11, 0
    %p43 = por %p41, %p42
    %p44 = scmp.ne.s32.totalorder %s33, %s36
    %p45 = scmp.eq.s32.totalorder %s16, 1
    %p46 = por %p44, %p45
    %p47 = scmp.ne.s32.totalorder %s36, %s37
    %p48 = scmp.eq.s32.totalorder %s16, 0
    %p49 = por %p47, %p48
    %p50 = scmp.ne.s32.totalorder %s36, %s37
    %p51 = scmp.eq.s32.totalorder %s17, 1
    %p52 = por %p50, %p51
    %p54 = scmp.ne.s32.totalorder %s37, %s53
    %p55 = scmp.eq.s32.totalorder %s17, 0
    %p56 = por %p54, %p55
    %s57 = ssub.s32 %s19, %s26
    %p58 = scmp.eq.s32.totalorder %s57, 0
    %s60 = sadd.s32 %s59, 1
    %s61 = scalar_select %p58, %s59, %s60
    %p64 = pneg %p58
    %p65 = scmp.eq.s32.totalorder %s11, 1
    %p66 = por %p64, %p65
    %p67 = scmp.ne.s32.totalorder %s59, %s62
    %p68 = scmp.eq.s32.totalorder %s11, 0
    %p69 = por %p67, %p68
    %p70 = scmp.ne.s32.totalorder %s59, %s62
    %p71 = scmp.eq.s32.totalorder %s16, 1
    %p72 = por %p70, %p71
    %p73 = scmp.ne.s32.totalorder %s62, %s63
    %p74 = scmp.eq.s32.totalorder %s16, 0
    %p75 = por %p73, %p74
    %p76 = scmp.ne.s32.totalorder %s62, %s63
    %p77 = scmp.eq.s32.totalorder %s17, 1
    %p78 = por %p76, %p77
    %p80 = scmp.ne.s32.totalorder %s63, %s79
    %p81 = scmp.eq.s32.totalorder %s17, 0
    %p82 = por %p80, %p81
    %s83 = ssub.s32 %s18, %s30
    %s84 = ssub.s32 %s19, %s26
    %s85 = sor.u32 %s83, %s84
    %p86 = scmp.eq.s32.totalorder %s85, 0
    %s88 = sadd.s32 %s87, 1
    %s89 = scalar_select %p86, %s87, %s88
    %p92 = pneg %p86
    %p93 = scmp.eq.s32.totalorder %s11, 1
    %p94 = por %p92, %p93
    %p95 = scmp.ne.s32.totalorder %s87, %s90
    %p96 = scmp.eq.s32.totalorder %s11, 0
    %p97 = por %p95, %p96
    %p98 = scmp.ne.s32.totalorder %s87, %s90
    %p99 = scmp.eq.s32.totalorder %s16, 1
    %p100 = por %p98, %p99
    %p101 = scmp.ne.s32.totalorder %s90, %s91
    %p102 = scmp.eq.s32.totalorder %s16, 0
    %p103 = por %p101, %p102
    %p104 = scmp.ne.s32.totalorder %s90, %s91
    %p105 = scmp.eq.s32.totalorder %s17, 1
    %p106 = por %p104, %p105
    %p108 = scmp.ne.s32.totalorder %s91, %s107
    %p109 = scmp.eq.s32.totalorder %s17, 0
    %p110 = por %p108, %p109
    %s111 = ssub.s32 %s18, %s30
    %s112 = ssub.s32 %s19, %s26
    %s113 = sor.u32 %s111, %s112
    %p114 = scmp.eq.s32.totalorder %s113, 0
    %s116 = sadd.s32 %s115, 1
    %s117 = scalar_select %p114, %s115, %s116
    %p120 = pneg %p114
    %p121 = scmp.eq.s32.totalorder %s11, 1
    %p122 = por %p120, %p121
    %p123 = scmp.ne.s32.totalorder %s115, %s118
    %p124 = scmp.eq.s32.totalorder %s11, 0
    %p125 = por %p123, %p124
    %p126 = scmp.ne.s32.totalorder %s115, %s118
    %p127 = scmp.eq.s32.totalorder %s16, 1
    %p128 = por %p126, %p127
    %p129 = scmp.ne.s32.totalorder %s118, %s119
    %p130 = scmp.eq.s32.totalorder %s16, 0
    %p131 = por %p129, %p130
    %p132 = scmp.ne.s32.totalorder %s118, %s119
    %p133 = scmp.eq.s32.totalorder %s17, 1
    %p134 = por %p132, %p133
    %p136 = scmp.ne.s32.totalorder %s119, %s135
    %p137 = scmp.eq.s32.totalorder %s17, 0
    %p138 = por %p136, %p137
    %s139 = ssub.s32 %s18, %s30
    %s140 = ssub.s32 %s19, %s26
    %s141 = sor.u32 %s139, %s140
    %p142 = scmp.eq.s32.totalorder %s141, 0
    %s144 = sadd.s32 %s143, 1
    %s145 = scalar_select %p142, %s143, %s144
    %p148 = pneg %p142
    %p149 = scmp.eq.s32.totalorder %s11, 1
    %p150 = por %p148, %p149
    %p151 = scmp.ne.s32.totalorder %s143, %s146
    %p152 = scmp.eq.s32.totalorder %s11, 0
    %p153 = por %p151, %p152
    %p154 = scmp.ne.s32.totalorder %s143, %s146
    %p155 = scmp.eq.s32.totalorder %s16, 1
    %p156 = por %p154, %p155
    %p157 = scmp.ne.s32.totalorder %s146, %s147
    %p158 = scmp.eq.s32.totalorder %s16, 0
    %p159 = por %p157, %p158
    %p160 = scmp.ne.s32.totalorder %s146, %s147
    %p161 = scmp.eq.s32.totalorder %s17, 1
    %p162 = por %p160, %p161
    %p164 = scmp.ne.s32.totalorder %s147, %s163
    %p165 = scmp.eq.s32.totalorder %s17, 0
    %p166 = por %p164, %p165
    %p167 = scmp.le.s32.totalorder 1, %s11
    %p168 = scmp.lt.s32.totalorder %s11, 3
    %p169 = pnand %p167, %p168
    %p170 = pneg %p169
    // Predicated region
    $region9: #{generator_forward.11} parent=5 // pred_check
      _
    $region10: #{generator_forward.11} parent=5 // pred_check_branch
      %172 = sbr.rel (%p169) target = $region12
    $region11: #{generator_forward.11} parent=5 // pred_region
      %s173 = ssub.s32 %s11, 1
      // Predicated region
      $region13: #{generator_forward.11} parent=11 // pred_check
        %p174 = pneg %p75
      $region14: #{generator_forward.11} parent=11 // pred_check_branch
        %176 = sbr.rel (%p174) target = $region16
      $region15: #{generator_forward.11} parent=11 // pred_region
        %p177 = scmp.lt.s32.totalorder %s21, 0
        %s178 = scalar_select %p177, %s21, 0
        %s179 = smul.addr %s178, 4
        %s180 = scalar_lea.vmem %s1, %s179
      $region16: #{generator_forward.11} parent=11 // pred_fallthru
        _
    $region12: #{generator_forward.11} parent=5 // pred_fallthru
      _
    %p181 = scmp.lt.s32.totalorder %s11, 2
    // Predicated region
    $region17: #{generator_forward.11} parent=5 // pred_check
      %p182 = pneg %p181
    $region18: #{generator_forward.11} parent=5 // pred_check_branch
      %184 = sbr.rel (%p182) target = $region20
    $region19: #{generator_forward.11} parent=5 // pred_region
      // Predicated region
      $region21: #{generator_forward.11} parent=19 // pred_check
        %p185 = pneg %p43
      $region22: #{generator_forward.11} parent=19 // pred_check_branch
        %187 = sbr.rel (%p185) target = $region24
      $region23: #{generator_forward.11} parent=19 // pred_region
        %s188 = smul.u32 8, %s18
        %p189 = scmp.lt.s32.totalorder %s188, 15
        %s190 = scalar_select %p189, %s188, 15
        %s191 = smul.addr %s190, 3
        %s192 = smul.addr %s191, 4
        %s193 = scalar_lea.vmem %s0, %s192
        %s194 = smul.u32 8, %s18
      $region24: #{generator_forward.11} parent=19 // pred_fallthru
        _
    $region20: #{generator_forward.11} parent=5 // pred_fallthru
      _
    %p195 = scmp.le.s32.totalorder 1, %s11
    %p196 = scmp.lt.s32.totalorder %s11, 3
    %p197 = pnand %p195, %p196
    %p198 = pneg %p197
    // Predicated region
    $region25: #{generator_forward.11} parent=5 // pred_check
      _
    $region26: #{generator_forward.11} parent=5 // pred_check_branch
      %200 = sbr.rel (%p197) target = $region28
    $region27: #{generator_forward.11} parent=5 // pred_region
      %s201 = ssub.s32 %s11, 1
      %s202 = smul.u32 8, %s20
      %p203 = scmp.lt.s32.totalorder %s202, 15
      %s204 = scalar_select %p203, %s202, 15
      %s205 = smul.addr %s204, 3
      %s206 = smul.addr %s205, 4
      %s207 = scalar_lea.vmem %s0, %s206
      %p208 = pneg %p49
      %p209 = pneg %p46
      %p210 = scmp.lt.s32.totalorder %s21, 0
      %s211 = scalar_select %p210, %s21, 0
      %s212 = smul.addr %s211, 4
      %s213 = scalar_lea.vmem %s1, %s212
      %p214 = pneg %p75
      %p215 = pneg %p72
      %p216 = pneg %p103
      %p217 = pneg %p100
      %s218 = smul.u32 8, %s20
      %p219 = scmp.lt.s32.totalorder %s218, 15
      %s220 = scalar_select %p219, %s218, 15
      %p221 = scmp.lt.s32.totalorder %s21, 0
      %s222 = scalar_select %p221, %s21, 0
      %s223 = sadd.s32 %s222, %s220
      %s224 = smul.addr %s223, 4
      %s225 = scalar_lea.vmem %s2, %s224
      %p226 = pneg %p131
      %p227 = pneg %p128
      %p228 = scmp.lt.s32.totalorder %s20, 1
      %s229 = scalar_select %p228, %s20, 1
      %p230 = scmp.lt.s32.totalorder %s21, 0
      %s231 = scalar_select %p230, %s21, 0
      %s232 = sadd.s32 %s231, %s229
      %s233 = smul.addr %s232, 8
      %s234 = scalar_lea.vmem %s3, %s233
      %p235 = pneg %p159
      %p236 = pneg %p156
      %p237 = scmp.lt.s32.totalorder %s20, 1
      %s238 = scalar_select %p237, %s20, 1
      %p239 = scmp.lt.s32.totalorder %s21, 0
      %s240 = scalar_select %p239, %s21, 0
      %s241 = sadd.s32 %s240, %s238
      %s242 = smul.addr %s241, 8
      %s243 = scalar_lea.vmem %s4, %s242
      %s244 = smul.u32 8, %s20
      %p245 = scmp.lt.s32.totalorder %s244, 15
      %s246 = scalar_select %p245, %s244, 15
      %s247 = smul.addr %s246, 3
      %s248 = smul.addr %s247, 4
      %s249 = scalar_lea.vmem %s0, %s248
      %s250 = smul.u32 8, %s20
      %p251 = scmp.lt.s32.totalorder %s21, 0
      %s252 = scalar_select %p251, %s21, 0
      %s253 = smul.addr %s252, 4
      %s254 = scalar_lea.vmem %s1, %s253
      %s255 = smul.u32 8, %s20
      %p256 = scmp.lt.s32.totalorder %s255, 15
      %s257 = scalar_select %p256, %s255, 15
      %p258 = scmp.lt.s32.totalorder %s21, 0
      %s259 = scalar_select %p258, %s21, 0
      %s260 = sadd.s32 %s259, %s257
      %s261 = smul.addr %s260, 4
      %s262 = scalar_lea.vmem %s2, %s261
      %s263 = smul.u32 8, %s20
      %p264 = scmp.lt.s32.totalorder %s20, 1
      %s265 = scalar_select %p264, %s20, 1
      %p266 = scmp.lt.s32.totalorder %s21, 0
      %s267 = scalar_select %p266, %s21, 0
      %s268 = sadd.s32 %s267, %s265
      %s269 = smul.addr %s268, 8
      %s270 = scalar_lea.vmem %s3, %s269
      %p271 = scmp.lt.s32.totalorder %s20, 1
      %s272 = scalar_select %p271, %s20, 1
      %p273 = scmp.lt.s32.totalorder %s21, 0
      %s274 = scalar_select %p273, %s21, 0
      %s275 = sadd.s32 %s274, %s272
      %s276 = smul.addr %s275, 8
      %s277 = scalar_lea.vmem %s4, %s276
      %v279 = vld [vmem:[%s249] sm:$0xff]
      %v280 = vld [vmem:[%s249 + $0x8] sm:$0xf]
      %v281 = vld [vmem:[%s249 + $0xc] sm:$0xff]
      %v282 = vld [vmem:[%s249 + $0x14] sm:$0xf]
      %v283 = vld [vmem:[%s249 + $0x18] sm:$0xff]
      %v284 = vld [vmem:[%s249 + $0x20] sm:$0xf]
      %v285 = vld [vmem:[%s249 + $0x24] sm:$0xff]
      %v286 = vld [vmem:[%s249 + $0x2c] sm:$0xf]
      %v287 = vld [vmem:[%s249 + $0x30] sm:$0xff]
      %v288 = vld [vmem:[%s249 + $0x38] sm:$0xf]
      %v289 = vld [vmem:[%s249 + $0x3c] sm:$0xff]
      %v290 = vld [vmem:[%s249 + $0x44] sm:$0xf]
      %v291 = vld [vmem:[%s249 + $0x48] sm:$0xff]
      %v292 = vld [vmem:[%s249 + $0x50] sm:$0xf]
      %v293 = vld [vmem:[%s249 + $0x54] sm:$0xff]
      %v294 = vld [vmem:[%s249 + $0x5c] sm:$0xf]
      %v295 = vld [vmem:[%s254] sm:$0xf]
      %v296 = vld [vmem:[%s254 + $0x4] sm:$0xf]
      %v297 = vld [vmem:[%s254 + $0x8] sm:$0xf]
      %v298 = vld [vmem:[%s254 + $0xc] sm:$0xf]
      %v299 = vld [vmem:[%s254 + $0x10] sm:$0xf]
      %v300 = vld [vmem:[%s254 + $0x14] sm:$0xf]
      %v301 = vld [vmem:[%s254 + $0x18] sm:$0xf]
      %v302 = vld [vmem:[%s254 + $0x1c] sm:$0xf]
      %v303 = vld [vmem:[%s254 + $0x20] sm:$0xf]
      %v304 = vld [vmem:[%s254 + $0x24] sm:$0xf]
      %v305 = vld [vmem:[%s254 + $0x28] sm:$0xf]
      %v306 = vld [vmem:[%s254 + $0x2c] sm:$0xf]
      %v307 = vld [vmem:[%s254 + $0x30] sm:$0xf]
      %v308 = vld [vmem:[%s254 + $0x34] sm:$0xf]
      %v309 = vld [vmem:[%s254 + $0x38] sm:$0xf]
      %v310 = vld [vmem:[%s254 + $0x3c] sm:$0xf]
      %v311 = vld [vmem:[%s254 + $0x40] sm:$0xf]
      %v312 = vld [vmem:[%s254 + $0x44] sm:$0xf]
      %v313 = vld [vmem:[%s254 + $0x48] sm:$0xf]
      %v314 = vld [vmem:[%s254 + $0x4c] sm:$0xf]
      %v315 = vld [vmem:[%s254 + $0x50] sm:$0xf]
      %v316 = vld [vmem:[%s254 + $0x54] sm:$0xf]
      %v317 = vld [vmem:[%s254 + $0x58] sm:$0xf]
      %v318 = vld [vmem:[%s254 + $0x5c] sm:$0xf]
      %v319 = vld [vmem:[%s254 + $0x60] sm:$0xf]
      %v320 = vld [vmem:[%s254 + $0x64] sm:$0xf]
      %v321 = vld [vmem:[%s254 + $0x68] sm:$0xf]
      %v322 = vld [vmem:[%s254 + $0x6c] sm:$0xf]
      %v323 = vld [vmem:[%s254 + $0x70] sm:$0xf]
      %v324 = vld [vmem:[%s254 + $0x74] sm:$0xf]
      %v325 = vld [vmem:[%s254 + $0x78] sm:$0xf]
      %v326 = vld [vmem:[%s254 + $0x7c] sm:$0xf]
      %v327 = vld [vmem:[%s254 + $0x80] sm:$0xf]
      %v328 = vld [vmem:[%s254 + $0x84] sm:$0xf]
      %v329 = vld [vmem:[%s254 + $0x88] sm:$0xf]
      %v330 = vld [vmem:[%s254 + $0x8c] sm:$0xf]
      %v331 = vld [vmem:[%s254 + $0x90] sm:$0xf]
      %v332 = vld [vmem:[%s254 + $0x94] sm:$0xf]
      %v333 = vld [vmem:[%s254 + $0x98] sm:$0xf]
      %v334 = vld [vmem:[%s254 + $0x9c] sm:$0xf]
      %v335 = vld [vmem:[%s254 + $0xa0] sm:$0xf]
      %v336 = vld [vmem:[%s254 + $0xa4] sm:$0xf]
      %v337 = vld [vmem:[%s254 + $0xa8] sm:$0xf]
      %v338 = vld [vmem:[%s254 + $0xac] sm:$0xf]
      %v339 = vld [vmem:[%s254 + $0xb0] sm:$0xf]
      %v340 = vld [vmem:[%s254 + $0xb4] sm:$0xf]
      %v341 = vld [vmem:[%s254 + $0xb8] sm:$0xf]
      %v342 = vld [vmem:[%s254 + $0xbc] sm:$0xf]
      %v359 = vunpack.c.l.b16 %v279
      %v360 = vunpack.c.h.b16 %v279
      %v361 = vunpack.c.l.b16 %v280
      %v362 = vunpack.c.l.b16 %v281
      %v363 = vunpack.c.h.b16 %v281
      %v364 = vunpack.c.l.b16 %v282
      %v365 = vunpack.c.l.b16 %v283
      %v366 = vunpack.c.h.b16 %v283
      %v367 = vunpack.c.l.b16 %v284
      %v368 = vunpack.c.l.b16 %v285
      %v369 = vunpack.c.h.b16 %v285
      %v370 = vunpack.c.l.b16 %v286
      %v371 = vunpack.c.l.b16 %v287
      %v372 = vunpack.c.h.b16 %v287
      %v373 = vunpack.c.l.b16 %v288
      %v374 = vunpack.c.l.b16 %v289
      %v375 = vunpack.c.h.b16 %v289
      %v376 = vunpack.c.l.b16 %v290
      %v377 = vunpack.c.l.b16 %v291
      %v378 = vunpack.c.h.b16 %v291
      %v379 = vunpack.c.l.b16 %v292
      %v380 = vunpack.c.l.b16 %v293
      %v381 = vunpack.c.h.b16 %v293
      %v382 = vunpack.c.l.b16 %v294
      %v383 = vpack.c.b16 %v362, %v359
      %v384 = vpack.c.b16 %v363, %v360
      %v385 = vpack.c.b16 %v364, %v361
      %v386 = vpack.c.b16 %v368, %v365
      %v387 = vpack.c.b16 %v369, %v366
      %v388 = vpack.c.b16 %v370, %v367
      %v389 = vpack.c.b16 %v374, %v371
      %v390 = vpack.c.b16 %v375, %v372
      %v391 = vpack.c.b16 %v376, %v373
      %v392 = vpack.c.b16 %v380, %v377
      %v393 = vpack.c.b16 %v381, %v378
      %v394 = vpack.c.b16 %v382, %v379
      %v455 = vunpack.c.l.b16 %v295
      %v456 = vunpack.c.l.b16 %v296
      %v457 = vunpack.c.l.b16 %v297
      %v458 = vunpack.c.l.b16 %v298
      %v459 = vunpack.c.l.b16 %v299
      %v460 = vunpack.c.l.b16 %v300
      %v461 = vunpack.c.l.b16 %v301
      %v462 = vunpack.c.l.b16 %v302
      %v463 = vunpack.c.l.b16 %v303
      %v464 = vunpack.c.l.b16 %v304
      %v465 = vunpack.c.l.b16 %v305
      %v466 = vunpack.c.l.b16 %v306
      %v467 = vunpack.c.l.b16 %v307
      %v468 = vunpack.c.l.b16 %v308
      %v469 = vunpack.c.l.b16 %v309
      %v470 = vunpack.c.l.b16 %v310
      %v471 = vunpack.c.l.b16 %v311
      %v472 = vunpack.c.l.b16 %v312
      %v473 = vunpack.c.l.b16 %v313
      %v474 = vunpack.c.l.b16 %v314
      %v475 = vunpack.c.l.b16 %v315
      %v476 = vunpack.c.l.b16 %v316
      %v477 = vunpack.c.l.b16 %v317
      %v478 = vunpack.c.l.b16 %v318
      %v479 = vunpack.c.l.b16 %v319
      %v480 = vunpack.c.l.b16 %v320
      %v481 = vunpack.c.l.b16 %v321
      %v482 = vunpack.c.l.b16 %v322
      %v483 = vunpack.c.l.b16 %v323
      %v484 = vunpack.c.l.b16 %v324
      %v485 = vunpack.c.l.b16 %v325
      %v486 = vunpack.c.l.b16 %v326
      %v487 = vunpack.c.l.b16 %v327
      %v488 = vunpack.c.l.b16 %v328
      %v489 = vunpack.c.l.b16 %v329
      %v490 = vunpack.c.l.b16 %v330
      %v491 = vunpack.c.l.b16 %v331
      %v492 = vunpack.c.l.b16 %v332
      %v493 = vunpack.c.l.b16 %v333
      %v494 = vunpack.c.l.b16 %v334
      %v495 = vunpack.c.l.b16 %v335
      %v496 = vunpack.c.l.b16 %v336
      %v497 = vunpack.c.l.b16 %v337
      %v498 = vunpack.c.l.b16 %v338
      %v499 = vunpack.c.l.b16 %v339
      %v500 = vunpack.c.l.b16 %v340
      %v501 = vunpack.c.l.b16 %v341
      %v502 = vunpack.c.l.b16 %v342
      %v503 = vpack.c.b16 %v456, %v455
      %v504 = vpack.c.b16 %v458, %v457
      %v505 = vpack.c.b16 %v460, %v459
      %v506 = vpack.c.b16 %v462, %v461
      %v507 = vpack.c.b16 %v464, %v463
      %v508 = vpack.c.b16 %v466, %v465
      %v509 = vpack.c.b16 %v468, %v467
      %v510 = vpack.c.b16 %v470, %v469
      %v511 = vpack.c.b16 %v472, %v471
      %v512 = vpack.c.b16 %v474, %v473
      %v513 = vpack.c.b16 %v476, %v475
      %v514 = vpack.c.b16 %v478, %v477
      %v515 = vpack.c.b16 %v480, %v479
      %v516 = vpack.c.b16 %v482, %v481
      %v517 = vpack.c.b16 %v484, %v483
      %v518 = vpack.c.b16 %v486, %v485
      %v519 = vpack.c.b16 %v488, %v487
      %v520 = vpack.c.b16 %v490, %v489
      %v521 = vpack.c.b16 %v492, %v491
      %v522 = vpack.c.b16 %v494, %v493
      %v523 = vpack.c.b16 %v496, %v495
      %v524 = vpack.c.b16 %v498, %v497
      %v525 = vpack.c.b16 %v500, %v499
      %v526 = vpack.c.b16 %v502, %v501
      %551 = vmatprep.subr.bf16.mxu0 0
      %552 = vmatpush1.bf16.msra.mxu0 %v503
      %553 = vmatprep.subr.bf16.mxu0 0
      %554 = vmatpush1.bf16.msra.mxu0 %v504
      %555 = vmatprep.subr.bf16.mxu0 0
      %556 = vmatpush1.bf16.msra.mxu0 %v505
      %557 = vmatprep.subr.bf16.mxu0 0
      %558 = vmatpush1.bf16.msra.mxu0 %v506
      %559 = vmatprep.subr.bf16.mxu0 0
      %560 = vmatpush1.bf16.msra.mxu0 %v507
      %561 = vmatprep.subr.bf16.mxu0 0
      %562 = vmatpush1.bf16.msra.mxu0 %v508
      %563 = vmatprep.subr.bf16.mxu0 0
      %564 = vmatpush1.bf16.msra.mxu0 %v509
      %565 = vmatprep.subr.bf16.mxu0 0
      %566 = vmatpush1.bf16.msra.mxu0 %v510
      %567 = vmatprep.subr.bf16.mxu0 0
      %568 = vmatpush1.bf16.msra.mxu0 %v511
      %569 = vmatprep.subr.bf16.mxu0 0
      %570 = vmatpush1.bf16.msra.mxu0 %v512
      %571 = vmatprep.subr.bf16.mxu0 0
      %572 = vmatpush1.bf16.msra.mxu0 %v513
      %573 = vmatprep.subr.bf16.mxu0 0
      %574 = vmatpush1.bf16.msra.mxu0 %v514
      %575 = vmatprep.subr.bf16.mxu0 0
      %576 = vmatpush1.bf16.msra.mxu0 %v515
      %577 = vmatprep.subr.bf16.mxu0 0
      %578 = vmatpush1.bf16.msra.mxu0 %v516
      %579 = vmatprep.subr.bf16.mxu0 0
      %580 = vmatpush1.bf16.msra.mxu0 %v517
      %581 = vmatprep.subr.bf16.mxu0 0
      %582 = vmatpush1.bf16.msra.mxu0 %v518
      %583 = vmatprep.mubr.bf16.mxu0 %v384
      %584 = vmatmul.mubr.bf16.gmra.mrb[0].mxu0 %v383
      %v585 = vpop.f32.mrb[0].mxu0
      %v586 = vadd.f32 0.0, %v585
      %v587 = vpop.f32.mrb[0].mxu0
      %v588 = vpop.f32.mrb[0].mxu0
      %v589 = vadd.f32 0.0, %v588
      %v590 = vpop.f32.mrb[0].mxu0
      %591 = vmatprep.mubr.bf16.mxu0 %v387
      %592 = vmatmul.mubr.bf16.gmra.mrb[0].mxu0 %v386
      %v593 = vpop.f32.mrb[0].mxu0
      %v594 = vadd.f32 0.0, %v593
      %v595 = vpop.f32.mrb[0].mxu0
      %v596 = vpop.f32.mrb[0].mxu0
      %v597 = vadd.f32 0.0, %v596
      %v598 = vpop.f32.mrb[0].mxu0
      %599 = vmatprep.mubr.bf16.mxu0 %v390
      %600 = vmatmul.mubr.bf16.gmra.mrb[0].mxu0 %v389
      %v601 = vpop.f32.mrb[0].mxu0
      %v602 = vadd.f32 0.0, %v601
      %v603 = vpop.f32.mrb[0].mxu0
      %v604 = vpop.f32.mrb[0].mxu0
      %v605 = vadd.f32 0.0, %v604
      %v606 = vpop.f32.mrb[0].mxu0
      %607 = vmatprep.mubr.bf16.mxu0 %v393
      %608 = vmatmul.mubr.bf16.gmra.mrb[0].mxu0 %v392
      %v609 = vpop.f32.mrb[0].mxu0
      %v610 = vadd.f32 0.0, %v609
      %v611 = vpop.f32.mrb[0].mxu0
      %v612 = vpop.f32.mrb[0].mxu0
      %v613 = vadd.f32 0.0, %v612
      %v614 = vpop.f32.mrb[0].mxu0
      %615 = vdwg.mxu0
      %616 = vmatprep.subr.bf16.mxu0 0
      %617 = vmatpush1.bf16.msra.mxu0 %v519
      %618 = vmatprep.subr.bf16.mxu0 0
      %619 = vmatpush1.bf16.msra.mxu0 %v520
      %620 = vmatprep.subr.bf16.mxu0 0
      %621 = vmatpush1.bf16.msra.mxu0 %v521
      %622 = vmatprep.subr.bf16.mxu0 0
      %623 = vmatpush1.bf16.msra.mxu0 %v522
      %624 = vmatprep.subr.bf16.mxu0 0
      %625 = vmatpush1.bf16.msra.mxu0 %v523
      %626 = vmatprep.subr.bf16.mxu0 0
      %627 = vmatpush1.bf16.msra.mxu0 %v524
      %628 = vmatprep.subr.bf16.mxu0 0
      %629 = vmatpush1.bf16.msra.mxu0 %v525
      %630 = vmatprep.subr.bf16.mxu0 0
      %631 = vmatpush1.bf16.msra.mxu0 %v526
      %632 = vmatprep.subr.bf16.mxu0 0
      %633 = vmatpush1.bf16.msra.mxu0 0
      %634 = vmatprep.subr.bf16.mxu0 0
      %635 = vmatpush1.bf16.msra.mxu0 0
      %636 = vmatprep.subr.bf16.mxu0 0
      %637 = vmatpush1.bf16.msra.mxu0 0
      %638 = vmatprep.subr.bf16.mxu0 0
      %639 = vmatpush1.bf16.msra.mxu0 0
      %640 = vmatprep.subr.bf16.mxu0 0
      %641 = vmatpush1.bf16.msra.mxu0 0
      %642 = vmatprep.subr.bf16.mxu0 0
      %643 = vmatpush1.bf16.msra.mxu0 0
      %644 = vmatprep.subr.bf16.mxu0 0
      %645 = vmatpush1.bf16.msra.mxu0 0
      %646 = vmatprep.subr.bf16.mxu0 0
      %647 = vmatpush1.bf16.msra.mxu0 0
      %648 = vmatprep.mubr.bf16.mxu0 0
      %649 = vmatmul.mubr.bf16.gmra.mrb[0].mxu0 %v385
      %v650 = vpop.f32.mrb[0].mxu0
      %v651 = vadd.f32 %v586, %v650
      %v652 = vpop.f32.mrb[0].mxu0
      %v653 = vpop.f32.mrb[0].mxu0
      %v654 = vadd.f32 %v589, %v653
      %v655 = vpop.f32.mrb[0].mxu0
      %656 = vmatprep.mubr.bf16.mxu0 0
      %657 = vmatmul.mubr.bf16.gmra.mrb[0].mxu0 %v388
      %v658 = vpop.f32.mrb[0].mxu0
      %v659 = vadd.f32 %v594, %v658
      %v660 = vpop.f32.mrb[0].mxu0
      %v661 = vpop.f32.mrb[0].mxu0
      %v662 = vadd.f32 %v597, %v661
      %v663 = vpop.f32.mrb[0].mxu0
      %664 = vmatprep.mubr.bf16.mxu0 0
      %665 = vmatmul.mubr.bf16.gmra.mrb[0].mxu0 %v391
      %v666 = vpop.f32.mrb[0].mxu0
      %v667 = vadd.f32 %v602, %v666
      %v668 = vpop.f32.mrb[0].mxu0
      %v669 = vpop.f32.mrb[0].mxu0
      %v670 = vadd.f32 %v605, %v669
      %v671 = vpop.f32.mrb[0].mxu0
      %672 = vmatprep.mubr.bf16.mxu0 0
      %673 = vmatmul.mubr.bf16.gmra.mrb[0].mxu0 %v394
      %v674 = vpop.f32.mrb[0].mxu0
      %v675 = vadd.f32 %v610, %v674
      %v676 = vpop.f32.mrb[0].mxu0
      %v677 = vpop.f32.mrb[0].mxu0
      %v678 = vadd.f32 %v613, %v677
      %v679 = vpop.f32.mrb[0].mxu0
      %680 = vdwg.mxu0
      %v681 = vadd.f32 %v651, %v654
      %v682 = vadd.f32 %v681, %v659
      %v683 = vadd.f32 %v682, %v662
      %v684 = vadd.f32 %v683, %v667
      %v685 = vadd.f32 %v684, %v670
      %v686 = vadd.f32 %v685, %v675
      %v687 = vadd.f32 %v686, %v678
      %v688 = vmul.f32 %v651, %v651
      %v689 = vmul.f32 %v654, %v654
      %v690 = vmul.f32 %v659, %v659
      %v691 = vmul.f32 %v662, %v662
      %v692 = vmul.f32 %v667, %v667
      %v693 = vmul.f32 %v670, %v670
      %v694 = vmul.f32 %v675, %v675
      %v695 = vmul.f32 %v678, %v678
      %v696 = vadd.f32 %v688, %v689
      %v697 = vadd.f32 %v696, %v690
      %v698 = vadd.f32 %v697, %v691
      %v699 = vadd.f32 %v698, %v692
      %v700 = vadd.f32 %v699, %v693
      %v701 = vadd.f32 %v700, %v694
      %v702 = vadd.f32 %v701, %v695
      %703 = vst [vmem:[%s270] sm:$0xff] %v687
      %704 = vst [vmem:[%s277] sm:$0xff] %v702
      %v705 = vpack.c.bf16 %v654, %v651
      %v706 = vpack.c.bf16 %v662, %v659
      %v707 = vpack.c.bf16 %v670, %v667
      %v708 = vpack.c.bf16 %v678, %v675
      %v713 = vunpack.c.l.b16 %v705
      %v714 = vunpack.c.h.b16 %v705
      %v715 = vunpack.c.l.b16 %v706
      %v716 = vunpack.c.h.b16 %v706
      %v717 = vunpack.c.l.b16 %v707
      %v718 = vunpack.c.h.b16 %v707
      %v719 = vunpack.c.l.b16 %v708
      %v720 = vunpack.c.h.b16 %v708
      %v721 = vpack.c.b16 %v713, %v713
      %v722 = vpack.c.b16 %v714, %v714
      %v723 = vpack.c.b16 %v715, %v715
      %v724 = vpack.c.b16 %v716, %v716
      %v725 = vpack.c.b16 %v717, %v717
      %v726 = vpack.c.b16 %v718, %v718
      %v727 = vpack.c.b16 %v719, %v719
      %v728 = vpack.c.b16 %v720, %v720
      %737 = vst [vmem:[%s262] sm:$0xf] %v721
      %738 = vst [vmem:[%s262 + $0x4] sm:$0xf] %v722
      %739 = vst [vmem:[%s262 + $0x8] sm:$0xf] %v723
      %740 = vst [vmem:[%s262 + $0xc] sm:$0xf] %v724
      %741 = vst [vmem:[%s262 + $0x10] sm:$0xf] %v725
      %742 = vst [vmem:[%s262 + $0x14] sm:$0xf] %v726
      %743 = vst [vmem:[%s262 + $0x18] sm:$0xf] %v727
      %744 = vst [vmem:[%s262 + $0x1c] sm:$0xf] %v728
      %s745 = smul.u32 8, %s20
      %p746 = scmp.lt.s32.totalorder %s745, 15
      %s747 = scalar_select %p746, %s745, 15
      %p748 = scmp.lt.s32.totalorder %s21, 0
      %s749 = scalar_select %p748, %s21, 0
      %s750 = sadd.s32 %s749, %s747
      %s751 = smul.addr %s750, 4
      %s752 = scalar_lea.vmem %s2, %s751
      %p753 = scmp.lt.s32.totalorder %s20, 1
      %s754 = scalar_select %p753, %s20, 1
      %p755 = scmp.lt.s32.totalorder %s21, 0
      %s756 = scalar_select %p755, %s21, 0
      %s757 = sadd.s32 %s756, %s754
      %s758 = smul.addr %s757, 8
      %s759 = scalar_lea.vmem %s3, %s758
      %p760 = scmp.lt.s32.totalorder %s20, 1
      %s761 = scalar_select %p760, %s20, 1
      %p762 = scmp.lt.s32.totalorder %s21, 0
      %s763 = scalar_select %p762, %s21, 0
      %s764 = sadd.s32 %s763, %s761
      %s765 = smul.addr %s764, 8
      %s766 = scalar_lea.vmem %s4, %s765
      // Predicated region
      $region29: #{generator_forward.11} parent=27 // pred_check
        %p767 = pneg %p100
      $region30: #{generator_forward.11} parent=27 // pred_check_branch
        %769 = sbr.rel (%p767) target = $region32
      $region31: #{generator_forward.11} parent=27 // pred_region
        %s770 = smul.u32 8, %s20
      $region32: #{generator_forward.11} parent=27 // pred_fallthru
        _
      // Predicated region
      $region33: #{generator_forward.11} parent=27 // pred_check
        %p771 = pneg %p128
      $region34: #{generator_forward.11} parent=27 // pred_check_branch
        %773 = sbr.rel (%p771) target = $region36
      $region35: #{generator_forward.11} parent=27 // pred_region
        _
      $region36: #{generator_forward.11} parent=27 // pred_fallthru
        _
      // Predicated region
      $region37: #{generator_forward.11} parent=27 // pred_check
        %p774 = pneg %p156
      $region38: #{generator_forward.11} parent=27 // pred_check_branch
        %776 = sbr.rel (%p774) target = $region40
      $region39: #{generator_forward.11} parent=27 // pred_region
        _
      $region40: #{generator_forward.11} parent=27 // pred_fallthru
        _
    $region28: #{generator_forward.11} parent=5 // pred_fallthru
      _
    %p777 = scmp.le.s32.totalorder 2, %s11
    // Predicated region
    $region41: #{generator_forward.11} parent=5 // pred_check
      %p778 = pneg %p777
    $region42: #{generator_forward.11} parent=5 // pred_check_branch
      %780 = sbr.rel (%p778) target = $region44
    $region43: #{generator_forward.11} parent=5 // pred_region
      %s781 = ssub.s32 %s11, 2
      // Predicated region
      $region45: #{generator_forward.11} parent=43 // pred_check
        %p782 = pneg %p106
      $region46: #{generator_forward.11} parent=43 // pred_check_branch
        %784 = sbr.rel (%p782) target = $region48
      $region47: #{generator_forward.11} parent=43 // pred_region
        %s785 = smul.u32 8, %s22
        %p786 = scmp.lt.s32.totalorder %s785, 15
        %s787 = scalar_select %p786, %s785, 15
        %p788 = scmp.lt.s32.totalorder %s23, 0
        %s789 = scalar_select %p788, %s23, 0
        %s790 = sadd.s32 %s789, %s787
        %s791 = smul.addr %s790, 4
        %s792 = scalar_lea.vmem %s2, %s791
      $region48: #{generator_forward.11} parent=43 // pred_fallthru
        _
      // Predicated region
      $region49: #{generator_forward.11} parent=43 // pred_check
        %p793 = pneg %p134
      $region50: #{generator_forward.11} parent=43 // pred_check_branch
        %795 = sbr.rel (%p793) target = $region52
      $region51: #{generator_forward.11} parent=43 // pred_region
        %p796 = scmp.lt.s32.totalorder %s22, 1
        %s797 = scalar_select %p796, %s22, 1
        %p798 = scmp.lt.s32.totalorder %s23, 0
        %s799 = scalar_select %p798, %s23, 0
        %s800 = sadd.s32 %s799, %s797
        %s801 = smul.addr %s800, 8
        %s802 = scalar_lea.vmem %s3, %s801
      $region52: #{generator_forward.11} parent=43 // pred_fallthru
        _
      // Predicated region
      $region53: #{generator_forward.11} parent=43 // pred_check
        %p803 = pneg %p162
      $region54: #{generator_forward.11} parent=43 // pred_check_branch
        %805 = sbr.rel (%p803) target = $region56
      $region55: #{generator_forward.11} parent=43 // pred_region
        %p806 = scmp.lt.s32.totalorder %s22, 1
        %s807 = scalar_select %p806, %s22, 1
        %p808 = scmp.lt.s32.totalorder %s23, 0
        %s809 = scalar_select %p808, %s23, 0
        %s810 = sadd.s32 %s809, %s807
        %s811 = smul.addr %s810, 8
        %s812 = scalar_lea.vmem %s4, %s811
      $region56: #{generator_forward.11} parent=43 // pred_fallthru
        _
    $region44: #{generator_forward.11} parent=5 // pred_fallthru
      _
  $region6: #{generator_forward.11} parent=0 // loop_footer
    %s15 = sadd.s32 1, %s11
  $region7: #{generator_forward.11} parent=0 // loop_footer_branch
    %10 = sbr.rel target = $region3
  $region8: #{generator_forward.11} parent=0 // loop_exit
    _

// kernel: generator_forward.13
$region0: #{generator_forward.13}
  #allocation0 [shape = 'u32[]', space=smem, size = 0x4, offset = 0x4, fixed_abs, tag = 'smem constant byte address 0x4 - core index']
  #allocation1 [shape = 'u32[144,128]{1,0:T(1,128)}', space=vmem, size = 0x12000, scoped, tag = 'internal scratch']
  %s0 = inlined_call_operand.vmem [shape: bf16[512,256], index: 0, kind: input, shape index: {}]
  %s1 = inlined_call_operand.vmem [shape: bf16[256,128], index: 1, kind: input, shape index: {}]
  %s2 = inlined_call_operand.vmem [shape: f32[512,128], index: 2, kind: output, shape index: {}]
  %s3 = sld [smem:[#allocation0]]
  $region41: #{generator_forward.13} parent=0
    _
  %s5 = ssub.s32 1, %s3
  %s6 = scalar_select 0, %s5, %s3
  loop: start=0, step=1, limit=4
  $region2: #{generator_forward.13} parent=0 // loop_pre_header
    _
  $region3: #{generator_forward.13} parent=0 // loop_header
    %s8 = sphi 0, %s12
    %p9 = scmp.ge.s32.totalorder %s8, 4
    %s15 = sphi 0, %s27
    %s16 = sphi 0, %s23
    %s17 = sphi 0, %s15
    %s18 = sphi 0, %s16
    %s19 = sphi 0, %s17
    %s20 = sphi 0, %s18
    %s30 = sphi 0, %s32
    %s33 = sphi 0, %s30
    %s34 = sphi 0, %s33
    %s50 = sphi 0, %s34
    %s56 = sphi 0, %s58
    %s59 = sphi 0, %s56
    %s60 = sphi 0, %s59
    %s76 = sphi 0, %s60
    %s84 = sphi 0, %s86
    %s87 = sphi 0, %s84
    %s88 = sphi 0, %s87
    %s104 = sphi 0, %s88
  $region4: #{generator_forward.13} parent=0 // loop_header_branch
    %11 = sbr.rel (%p9) target = $region8
  $region5: #{generator_forward.13} parent=0 // loop_body
    %s13 = ssub.s32 %s8, 1
    %s14 = ssub.s32 %s8, 2
    %s21 = sadd.s32 1, %s16
    %p22 = scmp.ge.s32.totalorder %s21, 1
    %s23 = scalar_select %p22, 0, %s21
    %s24 = sadd.s32 1, %s15
    %s25 = scalar_select %p22, %s24, %s15
    %p26 = scmp.ge.s32.totalorder %s25, 2
    %s27 = scalar_select %p26, 0, %s25
    %s28 = ssub.s32 %s15, %s27
    %p29 = scmp.eq.s32.totalorder %s28, 0
    %s31 = sadd.s32 %s30, 1
    %s32 = scalar_select %p29, %s30, %s31
    %p35 = pneg %p29
    %p36 = scmp.eq.s32.totalorder %s8, 1
    %p37 = por %p35, %p36
    %p38 = scmp.ne.s32.totalorder %s30, %s33
    %p39 = scmp.eq.s32.totalorder %s8, 0
    %p40 = por %p38, %p39
    %p41 = scmp.ne.s32.totalorder %s30, %s33
    %p42 = scmp.eq.s32.totalorder %s13, 1
    %p43 = por %p41, %p42
    %p44 = scmp.ne.s32.totalorder %s33, %s34
    %p45 = scmp.eq.s32.totalorder %s13, 0
    %p46 = por %p44, %p45
    %p47 = scmp.ne.s32.totalorder %s33, %s34
    %p48 = scmp.eq.s32.totalorder %s14, 1
    %p49 = por %p47, %p48
    %p51 = scmp.ne.s32.totalorder %s34, %s50
    %p52 = scmp.eq.s32.totalorder %s14, 0
    %p53 = por %p51, %p52
    %s54 = ssub.s32 %s16, %s23
    %p55 = scmp.eq.s32.totalorder %s54, 0
    %s57 = sadd.s32 %s56, 1
    %s58 = scalar_select %p55, %s56, %s57
    %p61 = pneg %p55
    %p62 = scmp.eq.s32.totalorder %s8, 1
    %p63 = por %p61, %p62
    %p64 = scmp.ne.s32.totalorder %s56, %s59
    %p65 = scmp.eq.s32.totalorder %s8, 0
    %p66 = por %p64, %p65
    %p67 = scmp.ne.s32.totalorder %s56, %s59
    %p68 = scmp.eq.s32.totalorder %s13, 1
    %p69 = por %p67, %p68
    %p70 = scmp.ne.s32.totalorder %s59, %s60
    %p71 = scmp.eq.s32.totalorder %s13, 0
    %p72 = por %p70, %p71
    %p73 = scmp.ne.s32.totalorder %s59, %s60
    %p74 = scmp.eq.s32.totalorder %s14, 1
    %p75 = por %p73, %p74
    %p77 = scmp.ne.s32.totalorder %s60, %s76
    %p78 = scmp.eq.s32.totalorder %s14, 0
    %p79 = por %p77, %p78
    %s80 = ssub.s32 %s15, %s27
    %s81 = ssub.s32 %s16, %s23
    %s82 = sor.u32 %s80, %s81
    %p83 = scmp.eq.s32.totalorder %s82, 0
    %s85 = sadd.s32 %s84, 1
    %s86 = scalar_select %p83, %s84, %s85
    %p89 = pneg %p83
    %p90 = scmp.eq.s32.totalorder %s8, 1
    %p91 = por %p89, %p90
    %p92 = scmp.ne.s32.totalorder %s84, %s87
    %p93 = scmp.eq.s32.totalorder %s8, 0
    %p94 = por %p92, %p93
    %p95 = scmp.ne.s32.totalorder %s84, %s87
    %p96 = scmp.eq.s32.totalorder %s13, 1
    %p97 = por %p95, %p96
    %p98 = scmp.ne.s32.totalorder %s87, %s88
    %p99 = scmp.eq.s32.totalorder %s13, 0
    %p100 = por %p98, %p99
    %p101 = scmp.ne.s32.totalorder %s87, %s88
    %p102 = scmp.eq.s32.totalorder %s14, 1
    %p103 = por %p101, %p102
    %p105 = scmp.ne.s32.totalorder %s88, %s104
    %p106 = scmp.eq.s32.totalorder %s14, 0
    %p107 = por %p105, %p106
    %p108 = scmp.le.s32.totalorder 1, %s8
    %p109 = scmp.lt.s32.totalorder %s8, 3
    %p110 = pnand %p108, %p109
    %p111 = pneg %p110
    // Predicated region
    $region9: #{generator_forward.13} parent=5 // pred_check
      _
    $region10: #{generator_forward.13} parent=5 // pred_check_branch
      %113 = sbr.rel (%p110) target = $region12
    $region11: #{generator_forward.13} parent=5 // pred_region
      %s114 = ssub.s32 %s8, 1
      // Predicated region
      $region13: #{generator_forward.13} parent=11 // pred_check
        %p115 = pneg %p72
      $region14: #{generator_forward.13} parent=11 // pred_check_branch
        %117 = sbr.rel (%p115) target = $region16
      $region15: #{generator_forward.13} parent=11 // pred_region
        %p118 = scmp.lt.s32.totalorder %s18, 0
        %s119 = scalar_select %p118, %s18, 0
        %s120 = smul.addr %s119, 4
        %s121 = scalar_lea.vmem %s1, %s120
      $region16: #{generator_forward.13} parent=11 // pred_fallthru
        _
    $region12: #{generator_forward.13} parent=5 // pred_fallthru
      _
    %p122 = scmp.lt.s32.totalorder %s8, 2
    // Predicated region
    $region17: #{generator_forward.13} parent=5 // pred_check
      %p123 = pneg %p122
    $region18: #{generator_forward.13} parent=5 // pred_check_branch
      %125 = sbr.rel (%p123) target = $region20
    $region19: #{generator_forward.13} parent=5 // pred_region
      // Predicated region
      $region21: #{generator_forward.13} parent=19 // pred_check
        %p126 = pneg %p40
      $region22: #{generator_forward.13} parent=19 // pred_check_branch
        %128 = sbr.rel (%p126) target = $region24
      $region23: #{generator_forward.13} parent=19 // pred_region
        %s129 = smul.u32 32, %s15
        %p130 = scmp.lt.s32.totalorder %s129, 63
        %s131 = scalar_select %p130, %s129, 63
        %s132 = smul.addr %s131, 2
        %s133 = smul.addr %s132, 4
        %s134 = scalar_lea.vmem %s0, %s133
        %s135 = smul.u32 32, %s15
      $region24: #{generator_forward.13} parent=19 // pred_fallthru
        _
    $region20: #{generator_forward.13} parent=5 // pred_fallthru
      _
    %p136 = scmp.le.s32.totalorder 1, %s8
    %p137 = scmp.lt.s32.totalorder %s8, 3
    %p138 = pnand %p136, %p137
    %p139 = pneg %p138
    // Predicated region
    $region25: #{generator_forward.13} parent=5 // pred_check
      _
    $region26: #{generator_forward.13} parent=5 // pred_check_branch
      %141 = sbr.rel (%p138) target = $region28
    $region27: #{generator_forward.13} parent=5 // pred_region
      %s142 = ssub.s32 %s8, 1
      %s143 = smul.u32 32, %s17
      %p144 = scmp.lt.s32.totalorder %s143, 63
      %s145 = scalar_select %p144, %s143, 63
      %s146 = smul.addr %s145, 2
      %s147 = smul.addr %s146, 4
      %s148 = scalar_lea.vmem %s0, %s147
      %p149 = pneg %p46
      %p150 = pneg %p43
      %p151 = scmp.lt.s32.totalorder %s18, 0
      %s152 = scalar_select %p151, %s18, 0
      %s153 = smul.addr %s152, 4
      %s154 = scalar_lea.vmem %s1, %s153
      %p155 = pneg %p72
      %p156 = pneg %p69
      %p157 = pneg %p100
      %p158 = pneg %p97
      %s159 = smul.u32 32, %s17
      %p160 = scmp.lt.s32.totalorder %s159, 63
      %s161 = scalar_select %p160, %s159, 63
      %p162 = scmp.lt.s32.totalorder %s18, 0
      %s163 = scalar_select %p162, %s18, 0
      %s164 = sadd.s32 %s163, %s161
      %s165 = smul.addr %s164, 8
      %s166 = scalar_lea.vmem %s2, %s165
      %s167 = smul.u32 32, %s17
      %p168 = scmp.lt.s32.totalorder %s167, 63
      %s169 = scalar_select %p168, %s167, 63
      %s170 = smul.addr %s169, 2
      %s171 = smul.addr %s170, 4
      %s172 = scalar_lea.vmem %s0, %s171
      %s173 = smul.u32 32, %s17
      %p174 = scmp.lt.s32.totalorder %s18, 0
      %s175 = scalar_select %p174, %s18, 0
      %s176 = smul.addr %s175, 4
      %s177 = scalar_lea.vmem %s1, %s176
      %s178 = smul.u32 32, %s17
      %p179 = scmp.lt.s32.totalorder %s178, 63
      %s180 = scalar_select %p179, %s178, 63
      %p181 = scmp.lt.s32.totalorder %s18, 0
      %s182 = scalar_select %p181, %s18, 0
      %s183 = sadd.s32 %s182, %s180
      %s184 = smul.addr %s183, 8
      %s185 = scalar_lea.vmem %s2, %s184
      %s186 = smul.u32 32, %s17
      %v188 = vld [vmem:[%s172] sm:$0xff]
      %v189 = vld [vmem:[%s172 + $0x8] sm:$0xff]
      %v190 = vld [vmem:[%s172 + $0x10] sm:$0xff]
      %v191 = vld [vmem:[%s172 + $0x18] sm:$0xff]
      %v192 = vld [vmem:[%s172 + $0x20] sm:$0xff]
      %v193 = vld [vmem:[%s172 + $0x28] sm:$0xff]
      %v194 = vld [vmem:[%s172 + $0x30] sm:$0xff]
      %v195 = vld [vmem:[%s172 + $0x38] sm:$0xff]
      %v196 = vld [vmem:[%s172 + $0x40] sm:$0xff]
      %v197 = vld [vmem:[%s172 + $0x48] sm:$0xff]
      %v198 = vld [vmem:[%s172 + $0x50] sm:$0xff]
      %v199 = vld [vmem:[%s172 + $0x58] sm:$0xff]
      %v200 = vld [vmem:[%s172 + $0x60] sm:$0xff]
      %v201 = vld [vmem:[%s172 + $0x68] sm:$0xff]
      %v202 = vld [vmem:[%s172 + $0x70] sm:$0xff]
      %v203 = vld [vmem:[%s172 + $0x78] sm:$0xff]
      %v204 = vld [vmem:[%s172 + $0x80] sm:$0xff]
      %v205 = vld [vmem:[%s172 + $0x88] sm:$0xff]
      %v206 = vld [vmem:[%s172 + $0x90] sm:$0xff]
      %v207 = vld [vmem:[%s172 + $0x98] sm:$0xff]
      %v208 = vld [vmem:[%s172 + $0xa0] sm:$0xff]
      %v209 = vld [vmem:[%s172 + $0xa8] sm:$0xff]
      %v210 = vld [vmem:[%s172 + $0xb0] sm:$0xff]
      %v211 = vld [vmem:[%s172 + $0xb8] sm:$0xff]
      %v212 = vld [vmem:[%s172 + $0xc0] sm:$0xff]
      %v213 = vld [vmem:[%s172 + $0xc8] sm:$0xff]
      %v214 = vld [vmem:[%s172 + $0xd0] sm:$0xff]
      %v215 = vld [vmem:[%s172 + $0xd8] sm:$0xff]
      %v216 = vld [vmem:[%s172 + $0xe0] sm:$0xff]
      %v217 = vld [vmem:[%s172 + $0xe8] sm:$0xff]
      %v218 = vld [vmem:[%s172 + $0xf0] sm:$0xff]
      %v219 = vld [vmem:[%s172 + $0xf8] sm:$0xff]
      %v220 = vld [vmem:[%s177] sm:$0xf]
      %v221 = vld [vmem:[%s177 + $0x4] sm:$0xf]
      %v222 = vld [vmem:[%s177 + $0x8] sm:$0xf]
      %v223 = vld [vmem:[%s177 + $0xc] sm:$0xf]
      %v224 = vld [vmem:[%s177 + $0x10] sm:$0xf]
      %v225 = vld [vmem:[%s177 + $0x14] sm:$0xf]
      %v226 = vld [vmem:[%s177 + $0x18] sm:$0xf]
      %v227 = vld [vmem:[%s177 + $0x1c] sm:$0xf]
      %v228 = vld [vmem:[%s177 + $0x20] sm:$0xf]
      %v229 = vld [vmem:[%s177 + $0x24] sm:$0xf]
      %v230 = vld [vmem:[%s177 + $0x28] sm:$0xf]
      %v231 = vld [vmem:[%s177 + $0x2c] sm:$0xf]
      %v232 = vld [vmem:[%s177 + $0x30] sm:$0xf]
      %v233 = vld [vmem:[%s177 + $0x34] sm:$0xf]
      %v234 = vld [vmem:[%s177 + $0x38] sm:$0xf]
      %v235 = vld [vmem:[%s177 + $0x3c] sm:$0xf]
      %v236 = vld [vmem:[%s177 + $0x40] sm:$0xf]
      %v237 = vld [vmem:[%s177 + $0x44] sm:$0xf]
      %v238 = vld [vmem:[%s177 + $0x48] sm:$0xf]
      %v239 = vld [vmem:[%s177 + $0x4c] sm:$0xf]
      %v240 = vld [vmem:[%s177 + $0x50] sm:$0xf]
      %v241 = vld [vmem:[%s177 + $0x54] sm:$0xf]
      %v242 = vld [vmem:[%s177 + $0x58] sm:$0xf]
      %v243 = vld [vmem:[%s177 + $0x5c] sm:$0xf]
      %v244 = vld [vmem:[%s177 + $0x60] sm:$0xf]
      %v245 = vld [vmem:[%s177 + $0x64] sm:$0xf]
      %v246 = vld [vmem:[%s177 + $0x68] sm:$0xf]
      %v247 = vld [vmem:[%s177 + $0x6c] sm:$0xf]
      %v248 = vld [vmem:[%s177 + $0x70] sm:$0xf]
      %v249 = vld [vmem:[%s177 + $0x74] sm:$0xf]
      %v250 = vld [vmem:[%s177 + $0x78] sm:$0xf]
      %v251 = vld [vmem:[%s177 + $0x7c] sm:$0xf]
      %v284 = vunpack.c.l.b16 %v188
      %v285 = vunpack.c.h.b16 %v188
      %v286 = vunpack.c.l.b16 %v189
      %v287 = vunpack.c.h.b16 %v189
      %v288 = vunpack.c.l.b16 %v190
      %v289 = vunpack.c.h.b16 %v190
      %v290 = vunpack.c.l.b16 %v191
      %v291 = vunpack.c.h.b16 %v191
      %v292 = vunpack.c.l.b16 %v192
      %v293 = vunpack.c.h.b16 %v192
      %v294 = vunpack.c.l.b16 %v193
      %v295 = vunpack.c.h.b16 %v193
      %v296 = vunpack.c.l.b16 %v194
      %v297 = vunpack.c.h.b16 %v194
      %v298 = vunpack.c.l.b16 %v195
      %v299 = vunpack.c.h.b16 %v195
      %v300 = vunpack.c.l.b16 %v196
      %v301 = vunpack.c.h.b16 %v196
      %v302 = vunpack.c.l.b16 %v197
      %v303 = vunpack.c.h.b16 %v197
      %v304 = vunpack.c.l.b16 %v198
      %v305 = vunpack.c.h.b16 %v198
      %v306 = vunpack.c.l.b16 %v199
      %v307 = vunpack.c.h.b16 %v199
      %v308 = vunpack.c.l.b16 %v200
      %v309 = vunpack.c.h.b16 %v200
      %v310 = vunpack.c.l.b16 %v201
      %v311 = vunpack.c.h.b16 %v201
      %v312 = vunpack.c.l.b16 %v202
      %v313 = vunpack.c.h.b16 %v202
      %v314 = vunpack.c.l.b16 %v203
      %v315 = vunpack.c.h.b16 %v203
      %v316 = vunpack.c.l.b16 %v204
      %v317 = vunpack.c.h.b16 %v204
      %v318 = vunpack.c.l.b16 %v205
      %v319 = vunpack.c.h.b16 %v205
      %v320 = vunpack.c.l.b16 %v206
      %v321 = vunpack.c.h.b16 %v206
      %v322 = vunpack.c.l.b16 %v207
      %v323 = vunpack.c.h.b16 %v207
      %v324 = vunpack.c.l.b16 %v208
      %v325 = vunpack.c.h.b16 %v208
      %v326 = vunpack.c.l.b16 %v209
      %v327 = vunpack.c.h.b16 %v209
      %v328 = vunpack.c.l.b16 %v210
      %v329 = vunpack.c.h.b16 %v210
      %v330 = vunpack.c.l.b16 %v211
      %v331 = vunpack.c.h.b16 %v211
      %v332 = vunpack.c.l.b16 %v212
      %v333 = vunpack.c.h.b16 %v212
      %v334 = vunpack.c.l.b16 %v213
      %v335 = vunpack.c.h.b16 %v213
      %v336 = vunpack.c.l.b16 %v214
      %v337 = vunpack.c.h.b16 %v214
      %v338 = vunpack.c.l.b16 %v215
      %v339 = vunpack.c.h.b16 %v215
      %v340 = vunpack.c.l.b16 %v216
      %v341 = vunpack.c.h.b16 %v216
      %v342 = vunpack.c.l.b16 %v217
      %v343 = vunpack.c.h.b16 %v217
      %v344 = vunpack.c.l.b16 %v218
      %v345 = vunpack.c.h.b16 %v218
      %v346 = vunpack.c.l.b16 %v219
      %v347 = vunpack.c.h.b16 %v219
      %v348 = vpack.c.b16 %v286, %v284
      %v349 = vpack.c.b16 %v287, %v285
      %v350 = vpack.c.b16 %v290, %v288
      %v351 = vpack.c.b16 %v291, %v289
      %v352 = vpack.c.b16 %v294, %v292
      %v353 = vpack.c.b16 %v295, %v293
      %v354 = vpack.c.b16 %v298, %v296
      %v355 = vpack.c.b16 %v299, %v297
      %v356 = vpack.c.b16 %v302, %v300
      %v357 = vpack.c.b16 %v303, %v301
      %v358 = vpack.c.b16 %v306, %v304
      %v359 = vpack.c.b16 %v307, %v305
      %v360 = vpack.c.b16 %v310, %v308
      %v361 = vpack.c.b16 %v311, %v309
      %v362 = vpack.c.b16 %v314, %v312
      %v363 = vpack.c.b16 %v315, %v313
      %v364 = vpack.c.b16 %v318, %v316
      %v365 = vpack.c.b16 %v319, %v317
      %v366 = vpack.c.b16 %v322, %v320
      %v367 = vpack.c.b16 %v323, %v321
      %v368 = vpack.c.b16 %v326, %v324
      %v369 = vpack.c.b16 %v327, %v325
      %v370 = vpack.c.b16 %v330, %v328
      %v371 = vpack.c.b16 %v331, %v329
      %v372 = vpack.c.b16 %v334, %v332
      %v373 = vpack.c.b16 %v335, %v333
      %v374 = vpack.c.b16 %v338, %v336
      %v375 = vpack.c.b16 %v339, %v337
      %v376 = vpack.c.b16 %v342, %v340
      %v377 = vpack.c.b16 %v343, %v341
      %v378 = vpack.c.b16 %v346, %v344
      %v379 = vpack.c.b16 %v347, %v345
      %v444 = vunpack.c.l.b16 %v220
      %v445 = vunpack.c.l.b16 %v221
      %v446 = vunpack.c.l.b16 %v222
      %v447 = vunpack.c.l.b16 %v223
      %v448 = vunpack.c.l.b16 %v224
      %v449 = vunpack.c.l.b16 %v225
      %v450 = vunpack.c.l.b16 %v226
      %v451 = vunpack.c.l.b16 %v227
      %v452 = vunpack.c.l.b16 %v228
      %v453 = vunpack.c.l.b16 %v229
      %v454 = vunpack.c.l.b16 %v230
      %v455 = vunpack.c.l.b16 %v231
      %v456 = vunpack.c.l.b16 %v232
      %v457 = vunpack.c.l.b16 %v233
      %v458 = vunpack.c.l.b16 %v234
      %v459 = vunpack.c.l.b16 %v235
      %v460 = vunpack.c.l.b16 %v236
      %v461 = vunpack.c.l.b16 %v237
      %v462 = vunpack.c.l.b16 %v238
      %v463 = vunpack.c.l.b16 %v239
      %v464 = vunpack.c.l.b16 %v240
      %v465 = vunpack.c.l.b16 %v241
      %v466 = vunpack.c.l.b16 %v242
      %v467 = vunpack.c.l.b16 %v243
      %v468 = vunpack.c.l.b16 %v244
      %v469 = vunpack.c.l.b16 %v245
      %v470 = vunpack.c.l.b16 %v246
      %v471 = vunpack.c.l.b16 %v247
      %v472 = vunpack.c.l.b16 %v248
      %v473 = vunpack.c.l.b16 %v249
      %v474 = vunpack.c.l.b16 %v250
      %v475 = vunpack.c.l.b16 %v251
      %v476 = vpack.c.b16 %v445, %v444
      %v477 = vpack.c.b16 %v447, %v446
      %v478 = vpack.c.b16 %v449, %v448
      %v479 = vpack.c.b16 %v451, %v450
      %v480 = vpack.c.b16 %v453, %v452
      %v481 = vpack.c.b16 %v455, %v454
      %v482 = vpack.c.b16 %v457, %v456
      %v483 = vpack.c.b16 %v459, %v458
      %v484 = vpack.c.b16 %v461, %v460
      %v485 = vpack.c.b16 %v463, %v462
      %v486 = vpack.c.b16 %v465, %v464
      %v487 = vpack.c.b16 %v467, %v466
      %v488 = vpack.c.b16 %v469, %v468
      %v489 = vpack.c.b16 %v471, %v470
      %v490 = vpack.c.b16 %v473, %v472
      %v491 = vpack.c.b16 %v475, %v474
      %508 = vmatprep.subr.bf16.mxu0 0
      %509 = vmatpush1.bf16.msra.mxu0 %v476
      %510 = vmatprep.subr.bf16.mxu0 0
      %511 = vmatpush1.bf16.msra.mxu0 %v477
      %512 = vmatprep.subr.bf16.mxu0 0
      %513 = vmatpush1.bf16.msra.mxu0 %v478
      %514 = vmatprep.subr.bf16.mxu0 0
      %515 = vmatpush1.bf16.msra.mxu0 %v479
      %516 = vmatprep.subr.bf16.mxu0 0
      %517 = vmatpush1.bf16.msra.mxu0 %v480
      %518 = vmatprep.subr.bf16.mxu0 0
      %519 = vmatpush1.bf16.msra.mxu0 %v481
      %520 = vmatprep.subr.bf16.mxu0 0
      %521 = vmatpush1.bf16.msra.mxu0 %v482
      %522 = vmatprep.subr.bf16.mxu0 0
      %523 = vmatpush1.bf16.msra.mxu0 %v483
      %524 = vmatprep.subr.bf16.mxu0 0
      %525 = vmatpush1.bf16.msra.mxu0 %v484
      %526 = vmatprep.subr.bf16.mxu0 0
      %527 = vmatpush1.bf16.msra.mxu0 %v485
      %528 = vmatprep.subr.bf16.mxu0 0
      %529 = vmatpush1.bf16.msra.mxu0 %v486
      %530 = vmatprep.subr.bf16.mxu0 0
      %531 = vmatpush1.bf16.msra.mxu0 %v487
      %532 = vmatprep.subr.bf16.mxu0 0
      %533 = vmatpush1.bf16.msra.mxu0 %v488
      %534 = vmatprep.subr.bf16.mxu0 0
      %535 = vmatpush1.bf16.msra.mxu0 %v489
      %536 = vmatprep.subr.bf16.mxu0 0
      %537 = vmatpush1.bf16.msra.mxu0 %v490
      %538 = vmatprep.subr.bf16.mxu0 0
      %539 = vmatpush1.bf16.msra.mxu0 %v491
      %540 = vmatprep.mubr.bf16.mxu0 %v349
      %541 = vmatmul.mubr.bf16.gmra.mrb[0].mxu0 %v348
      %v542 = vpop.f32.mrb[0].mxu0
      %v543 = vadd.f32 0.0, %v542
      %v544 = vpop.f32.mrb[0].mxu0
      %v545 = vpop.f32.mrb[0].mxu0
      %v546 = vadd.f32 0.0, %v545
      %v547 = vpop.f32.mrb[0].mxu0
      %548 = vmatprep.mubr.bf16.mxu0 %v351
      %549 = vmatmul.mubr.bf16.gmra.mrb[0].mxu0 %v350
      %v550 = vpop.f32.mrb[0].mxu0
      %v551 = vadd.f32 0.0, %v550
      %v552 = vpop.f32.mrb[0].mxu0
      %v553 = vpop.f32.mrb[0].mxu0
      %v554 = vadd.f32 0.0, %v553
      %v555 = vpop.f32.mrb[0].mxu0
      %556 = vmatprep.mubr.bf16.mxu0 %v353
      %557 = vmatmul.mubr.bf16.gmra.mrb[0].mxu0 %v352
      %v558 = vpop.f32.mrb[0].mxu0
      %v559 = vadd.f32 0.0, %v558
      %v560 = vpop.f32.mrb[0].mxu0
      %v561 = vpop.f32.mrb[0].mxu0
      %v562 = vadd.f32 0.0, %v561
      %v563 = vpop.f32.mrb[0].mxu0
      %564 = vmatprep.mubr.bf16.mxu0 %v355
      %565 = vmatmul.mubr.bf16.gmra.mrb[0].mxu0 %v354
      %v566 = vpop.f32.mrb[0].mxu0
      %v567 = vadd.f32 0.0, %v566
      %v568 = vpop.f32.mrb[0].mxu0
      %v569 = vpop.f32.mrb[0].mxu0
      %v570 = vadd.f32 0.0, %v569
      %v571 = vpop.f32.mrb[0].mxu0
      %572 = vmatprep.mubr.bf16.mxu0 %v357
      %573 = vmatmul.mubr.bf16.gmra.mrb[0].mxu0 %v356
      %v574 = vpop.f32.mrb[0].mxu0
      %v575 = vadd.f32 0.0, %v574
      %v576 = vpop.f32.mrb[0].mxu0
      %v577 = vpop.f32.mrb[0].mxu0
      %v578 = vadd.f32 0.0, %v577
      %v579 = vpop.f32.mrb[0].mxu0
      %580 = vmatprep.mubr.bf16.mxu0 %v359
      %581 = vmatmul.mubr.bf16.gmra.mrb[0].mxu0 %v358
      %v582 = vpop.f32.mrb[0].mxu0
      %v583 = vadd.f32 0.0, %v582
      %v584 = vpop.f32.mrb[0].mxu0
      %v585 = vpop.f32.mrb[0].mxu0
      %v586 = vadd.f32 0.0, %v585
      %v587 = vpop.f32.mrb[0].mxu0
      %588 = vmatprep.mubr.bf16.mxu0 %v361
      %589 = vmatmul.mubr.bf16.gmra.mrb[0].mxu0 %v360
      %v590 = vpop.f32.mrb[0].mxu0
      %v591 = vadd.f32 0.0, %v590
      %v592 = vpop.f32.mrb[0].mxu0
      %v593 = vpop.f32.mrb[0].mxu0
      %v594 = vadd.f32 0.0, %v593
      %v595 = vpop.f32.mrb[0].mxu0
      %596 = vmatprep.mubr.bf16.mxu0 %v363
      %597 = vmatmul.mubr.bf16.gmra.mrb[0].mxu0 %v362
      %v598 = vpop.f32.mrb[0].mxu0
      %v599 = vadd.f32 0.0, %v598
      %v600 = vpop.f32.mrb[0].mxu0
      %v601 = vpop.f32.mrb[0].mxu0
      %v602 = vadd.f32 0.0, %v601
      %v603 = vpop.f32.mrb[0].mxu0
      %604 = vmatprep.mubr.bf16.mxu0 %v365
      %605 = vmatmul.mubr.bf16.gmra.mrb[0].mxu0 %v364
      %v606 = vpop.f32.mrb[0].mxu0
      %v607 = vadd.f32 0.0, %v606
      %v608 = vpop.f32.mrb[0].mxu0
      %v609 = vpop.f32.mrb[0].mxu0
      %v610 = vadd.f32 0.0, %v609
      %v611 = vpop.f32.mrb[0].mxu0
      %612 = vmatprep.mubr.bf16.mxu0 %v367
      %613 = vmatmul.mubr.bf16.gmra.mrb[0].mxu0 %v366
      %v614 = vpop.f32.mrb[0].mxu0
      %v615 = vadd.f32 0.0, %v614
      %v616 = vpop.f32.mrb[0].mxu0
      %v617 = vpop.f32.mrb[0].mxu0
      %v618 = vadd.f32 0.0, %v617
      %v619 = vpop.f32.mrb[0].mxu0
      %620 = vmatprep.mubr.bf16.mxu0 %v369
      %621 = vmatmul.mubr.bf16.gmra.mrb[0].mxu0 %v368
      %v622 = vpop.f32.mrb[0].mxu0
      %v623 = vadd.f32 0.0, %v622
      %v624 = vpop.f32.mrb[0].mxu0
      %v625 = vpop.f32.mrb[0].mxu0
      %v626 = vadd.f32 0.0, %v625
      %v627 = vpop.f32.mrb[0].mxu0
      %628 = vmatprep.mubr.bf16.mxu0 %v371
      %629 = vmatmul.mubr.bf16.gmra.mrb[0].mxu0 %v370
      %v630 = vpop.f32.mrb[0].mxu0
      %v631 = vadd.f32 0.0, %v630
      %v632 = vpop.f32.mrb[0].mxu0
      %v633 = vpop.f32.mrb[0].mxu0
      %v634 = vadd.f32 0.0, %v633
      %v635 = vpop.f32.mrb[0].mxu0
      %636 = vmatprep.mubr.bf16.mxu0 %v373
      %637 = vmatmul.mubr.bf16.gmra.mrb[0].mxu0 %v372
      %v638 = vpop.f32.mrb[0].mxu0
      %v639 = vadd.f32 0.0, %v638
      %v640 = vpop.f32.mrb[0].mxu0
      %v641 = vpop.f32.mrb[0].mxu0
      %v642 = vadd.f32 0.0, %v641
      %v643 = vpop.f32.mrb[0].mxu0
      %644 = vmatprep.mubr.bf16.mxu0 %v375
      %645 = vmatmul.mubr.bf16.gmra.mrb[0].mxu0 %v374
      %v646 = vpop.f32.mrb[0].mxu0
      %v647 = vadd.f32 0.0, %v646
      %v648 = vpop.f32.mrb[0].mxu0
      %v649 = vpop.f32.mrb[0].mxu0
      %v650 = vadd.f32 0.0, %v649
      %v651 = vpop.f32.mrb[0].mxu0
      %652 = vmatprep.mubr.bf16.mxu0 %v377
      %653 = vmatmul.mubr.bf16.gmra.mrb[0].mxu0 %v376
      %v654 = vpop.f32.mrb[0].mxu0
      %v655 = vadd.f32 0.0, %v654
      %v656 = vpop.f32.mrb[0].mxu0
      %v657 = vpop.f32.mrb[0].mxu0
      %v658 = vadd.f32 0.0, %v657
      %v659 = vpop.f32.mrb[0].mxu0
      %660 = vmatprep.mubr.bf16.mxu0 %v379
      %661 = vmatmul.mubr.bf16.gmra.mrb[0].mxu0 %v378
      %v662 = vpop.f32.mrb[0].mxu0
      %v663 = vadd.f32 0.0, %v662
      %v664 = vpop.f32.mrb[0].mxu0
      %v665 = vpop.f32.mrb[0].mxu0
      %v666 = vadd.f32 0.0, %v665
      %v667 = vpop.f32.mrb[0].mxu0
      %668 = vdwg.mxu0
      %669 = vst [vmem:[%s185] sm:$0xff] %v543
      %670 = vst [vmem:[%s185 + $0x8] sm:$0xff] %v546
      %671 = vst [vmem:[%s185 + $0x10] sm:$0xff] %v551
      %672 = vst [vmem:[%s185 + $0x18] sm:$0xff] %v554
      %673 = vst [vmem:[%s185 + $0x20] sm:$0xff] %v559
      %674 = vst [vmem:[%s185 + $0x28] sm:$0xff] %v562
      %675 = vst [vmem:[%s185 + $0x30] sm:$0xff] %v567
      %676 = vst [vmem:[%s185 + $0x38] sm:$0xff] %v570
      %677 = vst [vmem:[%s185 + $0x40] sm:$0xff] %v575
      %678 = vst [vmem:[%s185 + $0x48] sm:$0xff] %v578
      %679 = vst [vmem:[%s185 + $0x50] sm:$0xff] %v583
      %680 = vst [vmem:[%s185 + $0x58] sm:$0xff] %v586
      %681 = vst [vmem:[%s185 + $0x60] sm:$0xff] %v591
      %682 = vst [vmem:[%s185 + $0x68] sm:$0xff] %v594
      %683 = vst [vmem:[%s185 + $0x70] sm:$0xff] %v599
      %684 = vst [vmem:[%s185 + $0x78] sm:$0xff] %v602
      %685 = vst [vmem:[%s185 + $0x80] sm:$0xff] %v607
      %686 = vst [vmem:[%s185 + $0x88] sm:$0xff] %v610
      %687 = vst [vmem:[%s185 + $0x90] sm:$0xff] %v615
      %688 = vst [vmem:[%s185 + $0x98] sm:$0xff] %v618
      %689 = vst [vmem:[%s185 + $0xa0] sm:$0xff] %v623
      %690 = vst [vmem:[%s185 + $0xa8] sm:$0xff] %v626
      %691 = vst [vmem:[%s185 + $0xb0] sm:$0xff] %v631
      %692 = vst [vmem:[%s185 + $0xb8] sm:$0xff] %v634
      %693 = vst [vmem:[%s185 + $0xc0] sm:$0xff] %v639
      %694 = vst [vmem:[%s185 + $0xc8] sm:$0xff] %v642
      %695 = vst [vmem:[%s185 + $0xd0] sm:$0xff] %v647
      %696 = vst [vmem:[%s185 + $0xd8] sm:$0xff] %v650
      %697 = vst [vmem:[%s185 + $0xe0] sm:$0xff] %v655
      %698 = vst [vmem:[%s185 + $0xe8] sm:$0xff] %v658
      %699 = vst [vmem:[%s185 + $0xf0] sm:$0xff] %v663
      %700 = vst [vmem:[%s185 + $0xf8] sm:$0xff] %v666
      %s701 = smul.u32 32, %s17
      %p702 = scmp.lt.s32.totalorder %s701, 63
      %s703 = scalar_select %p702, %s701, 63
      %p704 = scmp.lt.s32.totalorder %s18, 0
      %s705 = scalar_select %p704, %s18, 0
      %s706 = sadd.s32 %s705, %s703
      %s707 = smul.addr %s706, 8
      %s708 = scalar_lea.vmem %s2, %s707
      // Predicated region
      $region29: #{generator_forward.13} parent=27 // pred_check
        %p709 = pneg %p97
      $region30: #{generator_forward.13} parent=27 // pred_check_branch
        %711 = sbr.rel (%p709) target = $region32
      $region31: #{generator_forward.13} parent=27 // pred_region
        %s712 = smul.u32 32, %s17
      $region32: #{generator_forward.13} parent=27 // pred_fallthru
        _
    $region28: #{generator_forward.13} parent=5 // pred_fallthru
      _
    %p713 = scmp.le.s32.totalorder 2, %s8
    // Predicated region
    $region33: #{generator_forward.13} parent=5 // pred_check
      %p714 = pneg %p713
    $region34: #{generator_forward.13} parent=5 // pred_check_branch
      %716 = sbr.rel (%p714) target = $region36
    $region35: #{generator_forward.13} parent=5 // pred_region
      %s717 = ssub.s32 %s8, 2
      // Predicated region
      $region37: #{generator_forward.13} parent=35 // pred_check
        %p718 = pneg %p103
      $region38: #{generator_forward.13} parent=35 // pred_check_branch
        %720 = sbr.rel (%p718) target = $region40
      $region39: #{generator_forward.13} parent=35 // pred_region
        %s721 = smul.u32 32, %s19
        %p722 = scmp.lt.s32.totalorder %s721, 63
        %s723 = scalar_select %p722, %s721, 63
        %p724 = scmp.lt.s32.totalorder %s20, 0
        %s725 = scalar_select %p724, %s20, 0
        %s726 = sadd.s32 %s725, %s723
        %s727 = smul.addr %s726, 8
        %s728 = scalar_lea.vmem %s2, %s727
      $region40: #{generator_forward.13} parent=35 // pred_fallthru
        _
    $region36: #{generator_forward.13} parent=5 // pred_fallthru
      _
  $region6: #{generator_forward.13} parent=0 // loop_footer
    %s12 = sadd.s32 1, %s8
  $region7: #{generator_forward.13} parent=0 // loop_footer_branch
    %7 = sbr.rel target = $region3
  $region8: #{generator_forward.13} parent=0 // loop_exit
    _

</llo_original>
